<compile_context>
chip_gen: v5e
topology: v5e:2x2
jax: 0.10.0
libtpu: 0.0.40
codegen_flags: <defaults>
</compile_context>

<pallas_src>
import functools

import numpy as np

import jax
import jax.numpy as jnp
from jax import lax
from jax.experimental import pallas as pl
from jax.experimental.pallas import tpu as pltpu

# ------------------------- configuration (small shapes) -------------------------
B, C_IN, H_IN, W_IN = 2, 8, 14, 14       # input (B, C, H, W)
TRANSFORMER_DIM = 8                      # make_divisible(1.0 * 8)
MLP_HIDDEN = int(TRANSFORMER_DIM * 2.0)  # mlp_ratio = 2.0
TRANSFORMER_DEPTH = 2
PATCH = 7                                # patch_size
BLOCK_SIZE = 7                           # block attention window
GRID_SIZE = 7                            # grid attention grid
BN_EPS = 1e-5
GN_EPS = 1e-5

SIDE = 16                                # 14x14 frame embedded top-left in 16x16
LANES = SIDE * SIDE                      # 256 = 2 * 128  -> lane-dense
N_VALID = H_IN * W_IN                    # 196 valid positions
ATTN_SCALE = 1.0 / float(C_IN) ** 0.5
NEG = -1e30                              # additive mask value (exp -> exactly 0)


# ============================ host-side packing helpers ============================

def _round8(n):
    return -(-n // 8) * 8


def _pack_rows(entries, width):
    """Pack (name, array) pairs into one (R, width) f32 slab.

    Each entry starts at a sublane-aligned (multiple-of-8) row offset.  Returns the
    slab and {name: (row_offset, rows, cols)} with static python ints for the kernel.
    """
    parts, meta, off = [], {}, 0
    for name, a in entries:
        a = np.asarray(a, np.float32)
        if a.ndim == 1:
            a = a[:, None]
        h, w = a.shape
        assert w <= width, (name, a.shape, width)
        hp = _round8(h)
        buf = np.zeros((hp, width), np.float32)
        buf[:h, :w] = a
        parts.append(buf)
        meta[name] = (off, int(h), int(w))
        off += hp
    return np.concatenate(parts, axis=0), meta


def _build_masks():
    """Constant masks on the 256-lane top-left frame layout (lane l = y*16 + x)."""
    idx = np.arange(LANES)
    yy, xx = idx // SIDE, idx % SIDE
    valid = (yy < H_IN) & (xx < W_IN)
    blk_id = (yy // BLOCK_SIZE) * (W_IN // BLOCK_SIZE) + (xx // BLOCK_SIZE)
    gh, gw = H_IN // GRID_SIZE, W_IN // GRID_SIZE
    grd_id = (yy % gh) * gw + (xx % gw)
    off_id = (yy % PATCH) * PATCH + (xx % PATCH)          # within-patch pixel offset

    both = valid[:, None] & valid[None, :]
    eye = np.eye(LANES, dtype=bool)                        # keep every row non-empty
    same_blk = both & (blk_id[:, None] == blk_id[None, :])
    same_grd = both & (grd_id[:, None] == grd_id[None, :])
    same_off = both & (off_id[:, None] == off_id[None, :])

    mask_blk = np.where(same_blk | eye, 0.0, NEG).astype(np.float32)
    mask_grd = np.where(same_grd | eye, 0.0, NEG).astype(np.float32)
    gmat = same_off.astype(np.float32)                     # linear-attn patch groups
    vmask = valid.astype(np.float32)[None, :]              # (1, 256)
    return vmask, mask_blk, mask_grd, gmat


def _fold_bn(bn):
    g = np.asarray(bn["gamma"], np.float32)
    b = np.asarray(bn["beta"], np.float32)
    m = np.asarray(bn["mean"], np.float32)
    v = np.asarray(bn["var"], np.float32)
    s = g / np.sqrt(v + BN_EPS)
    return s, b - m * s


def _conv_taps(w4):
    """(Cout, Cin, 3, 3) -> (Cout, 9*Cin), column = (kh*3 + kw)*Cin + ci."""
    co, ci = w4.shape[0], w4.shape[1]
    return w4.transpose(0, 2, 3, 1).reshape(co, 9 * ci)


def prepare_kernel_params(params):
    """Host-side (outside jit): fold BN + attention scale, reorder qkv, pack slabs."""
    c, d = C_IN, TRANSFORMER_DIM
    A = lambda a: np.asarray(a, np.float32)
    w_entries, v_entries = [], []
    addw = lambda n, a: w_entries.append((n, A(a)))
    addv = lambda n, a: v_entries.append((n, A(a)))

    # ---- MDA branch ----
    addw("mda", params["conv_1x1_mda"]["w"]); addv("mda", params["conv_1x1_mda"]["b"])
    for tag in ("blk", "grd"):
        ap = params["block_attn" if tag == "blk" else "grid_attn"]
        wq, bq = A(ap["wqkv"]), A(ap["bqkv"])
        wq = np.concatenate([wq[:c] * ATTN_SCALE, wq[c:]], axis=0)   # fold scale into q
        bq = np.concatenate([bq[:c] * ATTN_SCALE, bq[c:]], axis=0)
        addw(f"{tag}_qkv", wq); addv(f"{tag}_qkv", bq)
        addw(f"{tag}_proj", ap["wproj"]); addv(f"{tag}_proj", ap["bproj"])
    addw("final", params["final_1x1_mda"]["w"]); addv("final", params["final_1x1_mda"]["b"])

    # ---- global branch: conv_nxn_global (BN folded) + conv_1x1_global ----
    s, bias = _fold_bn(params["conv_nxn_global"]["bn"])
    addw("nxn", _conv_taps(A(params["conv_nxn_global"]["w"]) * s[:, None, None, None]))
    addv("nxn", bias)
    addw("g1x1", params["conv_1x1_global"]["w"])           # no bias

    # ---- transformer stack ----
    for i, blk in enumerate(params["transformer"]):
        addv(f"t{i}_n1g", blk["norm1_g"]); addv(f"t{i}_n1b", blk["norm1_b"])
        wqkv, bqkv = A(blk["attn"]["wqkv"]), A(blk["attn"]["bqkv"])
        # reorder rows [q(1); k(d); v(d)] -> [k; v; q] so output slices are aligned
        order = np.concatenate([np.arange(1, 1 + d), np.arange(1 + d, 1 + 2 * d), [0]])
        addw(f"t{i}_qkv", wqkv[order]); addv(f"t{i}_qkv", bqkv[order])
        addw(f"t{i}_out", blk["attn"]["wout"]); addv(f"t{i}_out", blk["attn"]["bout"])
        addv(f"t{i}_n2g", blk["norm2_g"]); addv(f"t{i}_n2b", blk["norm2_b"])
        addw(f"t{i}_mlp1", blk["mlp_w1"]); addv(f"t{i}_mlp1", blk["mlp_b1"])
        addw(f"t{i}_mlp2", blk["mlp_w2"]); addv(f"t{i}_mlp2", blk["mlp_b2"])
    addv("tn_g", params["norm"]["g"]); addv("tn_b", params["norm"]["b"])
    s, bias = _fold_bn(params["conv_proj"]["bn"])
    addw("proj", A(params["conv_proj"]["w"]) * s[:, None]); addv("proj", bias)

    # ---- fusion conv (BN folded) ----
    s, bias = _fold_bn(params["conv_fusion"]["bn"])
    addw("fus", _conv_taps(A(params["conv_fusion"]["w"]) * s[:, None, None, None]))
    addv("fus", bias)

    wslab, wmeta = _pack_rows(w_entries, width=9 * 2 * c)   # width 144 (fusion conv K)
    vslab, vmeta = _pack_rows(v_entries, width=1)
    vmask, mask_blk, mask_grd, gmat = _build_masks()

    arrs = {"wslab": jnp.asarray(wslab), "vslab": jnp.asarray(vslab),
            "vmask": jnp.asarray(vmask), "mask_blk": jnp.asarray(mask_blk),
            "mask_grd": jnp.asarray(mask_grd), "gmat": jnp.asarray(gmat)}
    meta = {"w": wmeta, "v": vmeta}
    return arrs, meta


# ============================== roll-direction probe ==============================

def _probe_roll_mode():
    """Determine pltpu.roll's rotation direction with a 1-op kernel; fall back to a
    slice+concat rotation if roll is unavailable on this build."""
    try:
        def k(x_ref, o_ref):
            o_ref[...] = pltpu.roll(x_ref[...], 1, 1)

        x = jnp.arange(8 * 128, dtype=jnp.float32).reshape(8, 128)
        y = pl.pallas_call(k, out_shape=jax.ShapeDtypeStruct((8, 128), jnp.float32))(x)
        y00 = float(y[0, 0])
        if y00 == float(x[0, 127]):
            return "jnp"      # out[i] = in[(i - shift) % n]
        if y00 == float(x[0, 1]):
            return "inv"      # out[i] = in[(i + shift) % n]
    except Exception:
        pass
    return "concat"


def _rot_lanes(x, left_shift, roll_mode):
    """Circular left rotation along lanes: out[:, i] = x[:, (i + left_shift) % n]."""
    n = x.shape[-1]
    s = left_shift % n
    if s == 0:
        return x
    if roll_mode == "jnp":
        return pltpu.roll(x, n - s, 1)
    if roll_mode == "inv":
        return pltpu.roll(x, s, 1)
    return jnp.concatenate([x[:, s:], x[:, :s]], axis=1)


# ================================ the fused kernel =================================

def _fused_mvit2_kernel(x_ref, vm_ref, mblk_ref, mgrd_ref, gmat_ref, w_ref, v_ref,
                        o_ref, *, meta, depth, roll_mode):
    f32 = jnp.float32
    c, d = C_IN, TRANSFORMER_DIM

    def W(name):
        off, h, wdt = meta["w"][name]
        return w_ref[off:off + h, :wdt]

    def V(name):
        off, h, _ = meta["v"][name]
        return v_ref[off:off + h, :]

    x = x_ref[...]            # (C, 256); non-valid lanes are zero (wrapper padding)
    vm = vm_ref[...]          # (1, 256) valid-lane mask

    # ----- masked full-frame single-head softmax attention (block / grid windows) ----
    def window_attention(inp, add_mask, tag):
        qkv = jnp.dot(W(f"{tag}_qkv"), inp, preferred_element_type=f32) + V(f"{tag}_qkv")
        q, k, v = qkv[0:c], qkv[c:2 * c], qkv[2 * c:3 * c]          # scale folded into q
        s = jnp.dot(q.T, k, preferred_element_type=f32) + add_mask  # (256, 256)
        s = s - jnp.max(s, axis=-1, keepdims=True)
        p = jnp.exp(s)
        p = p * pl.reciprocal(jnp.sum(p, axis=-1, keepdims=True), approx=True)
        # o[ch, i] = sum_j v[ch, j] * p[i, j]
        o = lax.dot_general(v, p, (((1,), (1,)), ((), ())),
                            preferred_element_type=f32)             # (C, 256)
        return jnp.dot(W(f"{tag}_proj"), o, preferred_element_type=f32) + V(f"{tag}_proj")

    # ----- 3x3 same-padding conv as ONE deep matmul over 9 lane-rotated copies -------
    # Valid pixel (y, x) lives at lane y*16 + x; all non-valid lanes of `inp` are zero,
    # so circular wrap-around only ever reads zeros and the valid outputs are exact.
    def conv3x3(inp, wname):
        taps = [_rot_lanes(inp, (kh - 1) * SIDE + (kw - 1), roll_mode)
                for kh in range(3) for kw in range(3)]
        x9 = jnp.concatenate(taps, axis=0)                           # (9*Cin, 256)
        return jnp.dot(W(wname), x9, preferred_element_type=f32)

    # ----- GroupNorm(num_groups=1), statistics restricted to the 196 valid lanes -----
    inv_cnt = 1.0 / (d * N_VALID)

    def group_norm1(t, gname, bname):
        tm = t * vm
        mean = jnp.sum(jnp.sum(tm, axis=1, keepdims=True),
                       axis=0, keepdims=True) * inv_cnt              # (1, 1)
        diff = (t - mean) * vm
        var = jnp.sum(jnp.sum(diff * diff, axis=1, keepdims=True),
                      axis=0, keepdims=True) * inv_cnt
        return (t - mean) * lax.rsqrt(var + GN_EPS) * V(gname) + V(bname)

    # ================================= MDA branch =================================
    mda = jnp.dot(W("mda"), x, preferred_element_type=f32) + V("mda")
    mda = mda + window_attention(mda, mblk_ref[...], "blk")
    mda = mda + window_attention(mda, mgrd_ref[...], "grd")
    mda_out = jnp.dot(W("final"), mda, preferred_element_type=f32) + V("final")

    # ========================== global (MobileViT-v2) branch ======================
    g = jnp.maximum(conv3x3(x, "nxn") + V("nxn"), 0.0)       # conv_nxn_global + ReLU
    t = jnp.dot(W("g1x1"), g, preferred_element_type=f32)    # conv_1x1_global (no bias)

    for i in range(depth):
        # ---- MobileViT-v2 linear self-attention (softmax across patches) ----
        y = group_norm1(t, f"t{i}_n1g", f"t{i}_n1b")
        kvq = jnp.dot(W(f"t{i}_qkv"), y, preferred_element_type=f32) + V(f"t{i}_qkv")
        k, v, q = kvq[0:d], kvq[d:2 * d], kvq[2 * d:2 * d + 1]
        gm = gmat_ref[...]                                    # same-patch-offset groups
        qmax = jnp.max(jnp.where(vm > 0.0, q, NEG), axis=1, keepdims=True)   # (1, 1)
        eq = jnp.exp(q - qmax) * vm                                          # (1, 256)
        z = jnp.dot(eq, gm, preferred_element_type=f32) + (1.0 - vm)
        score = eq * pl.reciprocal(z, approx=True)
        ctx = jnp.dot(k * score, gm, preferred_element_type=f32)             # (D, 256)
        attn = jnp.maximum(v, 0.0) * ctx
        t = t + jnp.dot(W(f"t{i}_out"), attn, preferred_element_type=f32) + V(f"t{i}_out")
        # ---- MLP (1x1 -> SiLU -> 1x1) ----
        y = group_norm1(t, f"t{i}_n2g", f"t{i}_n2b")
        hdn = jnp.dot(W(f"t{i}_mlp1"), y, preferred_element_type=f32) + V(f"t{i}_mlp1")
        hdn = hdn * jax.nn.sigmoid(hdn)
        t = t + jnp.dot(W(f"t{i}_mlp2"), hdn, preferred_element_type=f32) + V(f"t{i}_mlp2")

    y = group_norm1(t, "tn_g", "tn_b")
    glb = jnp.dot(W("proj"), y, preferred_element_type=f32) + V("proj")   # conv_proj

    # =================================== fusion ===================================
    cat = jnp.concatenate([mda_out, glb], axis=0) * vm   # zero padding lanes for conv
    out = jnp.maximum(conv3x3(cat, "fus") + V("fus"), 0.0)
    o_ref[...] = out.astype(o_ref.dtype)


# ================================== full forward ===================================

def _const_spec(a):
    nd = a.ndim
    return pl.BlockSpec(a.shape, lambda b, _nd=nd: (0,) * _nd)


def mvit2_block_forward(arrs, x, *, meta, roll_mode):
    bx, c, h, w = x.shape
    # Embed the HxW frame top-left in a 16x16 = 256-lane slab (only XLA glue left).
    xp = jnp.pad(x, ((0, 0), (0, 0), (0, SIDE - h), (0, SIDE - w)))
    xp = xp.reshape(bx, c, LANES)

    consts = (arrs["vmask"], arrs["mask_blk"], arrs["mask_grd"], arrs["gmat"],
              arrs["wslab"], arrs["vslab"])
    kernel = functools.partial(_fused_mvit2_kernel, meta=meta,
                               depth=TRANSFORMER_DEPTH, roll_mode=roll_mode)
    out = pl.pallas_call(
        kernel,
        out_shape=jax.ShapeDtypeStruct((bx, c, LANES), jnp.float32),
        grid=(bx,),
        in_specs=[pl.BlockSpec((None, c, LANES), lambda b: (b, 0, 0))]
                 + [_const_spec(a) for a in consts],
        out_specs=pl.BlockSpec((None, c, LANES), lambda b: (b, 0, 0)),
        compiler_params=pltpu.CompilerParams(
            dimension_semantics=("parallel",),        # B=2 -> both v7x TensorCores
            vmem_limit_bytes=32 * 1024 * 1024),
    )(xp, *consts)
    return out.reshape(bx, c, SIDE, SIDE)[:, :, :h, :w]


# ================================= parameter init ==================================

def make_params(key):
    c, d, hd = C_IN, TRANSFORMER_DIM, MLP_HIDDEN
    keys = iter(jax.random.split(key, 96))

    def nrm(shape, s=0.1):
        return jax.random.normal(next(keys), shape, jnp.float32) * s

    def bn(cout):
        return {"gamma": 1.0 + nrm((cout,), 0.05), "beta": nrm((cout,), 0.02),
                "mean": nrm((cout,), 0.02), "var": 1.0 + jnp.abs(nrm((cout,), 0.05))}

    def attn(ch):
        return {"wqkv": nrm((3 * ch, ch)), "bqkv": nrm((3 * ch,), 0.02),
                "wproj": nrm((ch, ch)), "bproj": nrm((ch,), 0.02)}

    p = {
        "conv_1x1_mda": {"w": nrm((c, c)), "b": nrm((c,), 0.02)},
        "block_attn": attn(c),
        "grid_attn": attn(c),
        "final_1x1_mda": {"w": nrm((c, c)), "b": nrm((c,), 0.02)},
        "conv_nxn_global": {"w": nrm((c, c, 3, 3)), "bn": bn(c)},
        "conv_1x1_global": {"w": nrm((d, c))},
        "transformer": [],
        "norm": {"g": 1.0 + nrm((d,), 0.05), "b": nrm((d,), 0.02)},
        "conv_proj": {"w": nrm((c, d)), "bn": bn(c)},
        "conv_fusion": {"w": nrm((c, 2 * c, 3, 3)), "bn": bn(c)},
    }
    for _ in range(TRANSFORMER_DEPTH):
        p["transformer"].append({
            "norm1_g": 1.0 + nrm((d,), 0.05), "norm1_b": nrm((d,), 0.02),
            "attn": {"wqkv": nrm((1 + 2 * d, d)), "bqkv": nrm((1 + 2 * d,), 0.02),
                     "wout": nrm((d, d)), "bout": nrm((d,), 0.02)},
            "norm2_g": 1.0 + nrm((d,), 0.05), "norm2_b": nrm((d,), 0.02),
            "mlp_w1": nrm((hd, d)), "mlp_b1": nrm((hd,), 0.02),
            "mlp_w2": nrm((d, hd)), "mlp_b2": nrm((d,), 0.02),
        })
    return p


# ====================================== main =======================================

if __name__ == "__main__":
    key = jax.random.PRNGKey(0)
    kx, kparam = jax.random.split(key)
    x = jax.random.normal(kx, (B, C_IN, H_IN, W_IN), jnp.float32)
    params = make_params(kparam)

    arrs, meta = prepare_kernel_params(params)    # host-side fold / reorder / pack
    roll_mode = _probe_roll_mode()                # pltpu.roll direction (or fallback)

    fwd = jax.jit(functools.partial(mvit2_block_forward, meta=meta, roll_mode=roll_mode))
    out = fwd(arrs, x)
    jax.block_until_ready(out)
    assert out.shape == (B, C_IN, H_IN, W_IN), out.shape
    assert bool(jnp.all(jnp.isfinite(out)))
    print("KERNEL_OK")
</pallas_src>

<mosaic_0001>
module attributes {stable_mosaic.version = 11 : i64} {
  func.func @k(%arg0: memref<8x128xf32, #tpu.memory_space<vmem>>, %arg1: memref<8x128xf32, #tpu.memory_space<vmem>>) attributes {dimension_semantics = [], scalar_prefetch = 0 : i64, scratch_operands = 0 : i64, tpu.core_type = #tpu.core_type<tc>} {
    %c0 = arith.constant 0 : index
    %c0_0 = arith.constant 0 : index
    %0 = vector.load %arg0[%c0, %c0_0] : memref<8x128xf32, #tpu.memory_space<vmem>>, vector<8x128xf32>
    %c1_i32 = arith.constant 1 : i32
    %1 = tpu.dynamic_rotate %0 by %c1_i32 dim 1 : vector<8x128xf32>, i32 -> vector<8x128xf32>
    %c0_1 = arith.constant 0 : index
    %c0_2 = arith.constant 0 : index
    %2 = vector.load %arg1[%c0_1, %c0_2] : memref<8x128xf32, #tpu.memory_space<vmem>>, vector<8x128xf32>
    tpu.vector_store %arg1[%c0_1, %c0_2], %1 {strides = array<i32>} : memref<8x128xf32, #tpu.memory_space<vmem>>, vector<8x128xf32>,
    return
  }
}

module attributes {stable_mosaic.version = 11 : i64} {
  func.func @_fused_mvit2_kernel(%arg0: i32, %arg1: memref<1x8x256xf32, #tpu.memory_space<vmem>>, %arg2: memref<1x256xf32, #tpu.memory_space<vmem>>, %arg3: memref<256x256xf32, #tpu.memory_space<vmem>>, %arg4: memref<256x256xf32, #tpu.memory_space<vmem>>, %arg5: memref<256x256xf32, #tpu.memory_space<vmem>>, %arg6: memref<224x144xf32, #tpu.memory_space<vmem>>, %arg7: memref<296x1xf32, #tpu.memory_space<vmem>>, %arg8: memref<1x8x256xf32, #tpu.memory_space<vmem>>) attributes {dimension_semantics = [#tpu.dimension_semantics<parallel>], iteration_bounds = array<i64: 2>, scalar_prefetch = 0 : i64, scratch_operands = 0 : i64, tpu.core_type = #tpu.core_type<tc>, window_params = [{transform_indices = @transform_0, window_bounds = array<i64: 1, 8, 256>}, {pipeline_mode = #tpu.pipeline_mode<synchronous>, transform_indices = @transform_1, window_bounds = array<i64: 1, 256>}, {pipeline_mode = #tpu.pipeline_mode<synchronous>, transform_indices = @transform_2, window_bounds = array<i64: 256, 256>}, {pipeline_mode = #tpu.pipeline_mode<synchronous>, transform_indices = @transform_3, window_bounds = array<i64: 256, 256>}, {pipeline_mode = #tpu.pipeline_mode<synchronous>, transform_indices = @transform_4, window_bounds = array<i64: 256, 256>}, {pipeline_mode = #tpu.pipeline_mode<synchronous>, transform_indices = @transform_5, window_bounds = array<i64: 224, 144>}, {pipeline_mode = #tpu.pipeline_mode<synchronous>, transform_indices = @transform_6, window_bounds = array<i64: 296, 1>}, {transform_indices = @transform_7, window_bounds = array<i64: 1, 8, 256>}]} {
    %c0 = arith.constant 0 : index
    %c0_0 = arith.constant 0 : index
    %c0_1 = arith.constant 0 : index
    %0 = vector.load %arg1[%c0, %c0_0, %c0_1] : memref<1x8x256xf32, #tpu.memory_space<vmem>>, vector<1x8x256xf32>
    %1 = vector.shape_cast %0 : vector<1x8x256xf32> to vector<8x256xf32>
    %c0_2 = arith.constant 0 : index
    %c0_3 = arith.constant 0 : index
    %2 = vector.load %arg2[%c0_2, %c0_3] : memref<1x256xf32, #tpu.memory_space<vmem>>, vector<1x256xf32>
    %c0_4 = arith.constant 0 : index
    %c0_5 = arith.constant 0 : index
    %3 = vector.load %arg6[%c0_4, %c0_5] : memref<224x144xf32, #tpu.memory_space<vmem>>, vector<8x8xf32>
    %cst = arith.constant dense<0.000000e+00> : vector<8x256xf32>
    %4 = tpu.matmul %3, %1, %cst {dimension_numbers = #tpu.dot_dimension_numbers<[1], [0], [0], [1], [0, 0, 1, 1], [], []>} : vector<8x8xf32>, vector<8x256xf32>, vector<8x256xf32> -> vector<8x256xf32>
    %c0_6 = arith.constant 0 : index
    %c0_7 = arith.constant 0 : index
    %5 = vector.load %arg7[%c0_6, %c0_7] : memref<296x1xf32, #tpu.memory_space<vmem>>, vector<8x1xf32>
    %6 = vector.broadcast %5 : vector<8x1xf32> to vector<8x256xf32>
    %7 = arith.addf %4, %6 : vector<8x256xf32>
    %c0_8 = arith.constant 0 : index
    %c0_9 = arith.constant 0 : index
    %8 = vector.load %arg3[%c0_8, %c0_9] : memref<256x256xf32, #tpu.memory_space<vmem>>, vector<256x256xf32>
    %c8 = arith.constant 8 : index
    %c0_10 = arith.constant 0 : index
    %9 = vector.load %arg6[%c8, %c0_10] : memref<224x144xf32, #tpu.memory_space<vmem>>, vector<24x8xf32>
    %cst_11 = arith.constant dense<0.000000e+00> : vector<24x256xf32>
    %10 = tpu.matmul %9, %7, %cst_11 {dimension_numbers = #tpu.dot_dimension_numbers<[1], [0], [0], [1], [0, 0, 1, 1], [], []>} : vector<24x8xf32>, vector<8x256xf32>, vector<24x256xf32> -> vector<24x256xf32>
    %c8_12 = arith.constant 8 : index
    %c0_13 = arith.constant 0 : index
    %11 = vector.load %arg7[%c8_12, %c0_13] : memref<296x1xf32, #tpu.memory_space<vmem>>, vector<24x1xf32>
    %12 = vector.broadcast %11 : vector<24x1xf32> to vector<24x256xf32>
    %13 = arith.addf %10, %12 : vector<24x256xf32>
    %14 = vector.extract_strided_slice %13 {offsets = [0, 0], sizes = [8, 256], strides = [1, 1]} : vector<24x256xf32> to vector<8x256xf32>
    %15 = vector.extract_strided_slice %13 {offsets = [8, 0], sizes = [8, 256], strides = [1, 1]} : vector<24x256xf32> to vector<8x256xf32>
    %16 = vector.extract_strided_slice %13 {offsets = [16, 0], sizes = [8, 256], strides = [1, 1]} : vector<24x256xf32> to vector<8x256xf32>
    %17 = tpu.transpose %14, [1, 0] : vector<8x256xf32> -> vector<256x8xf32>
    %cst_14 = arith.constant dense<0.000000e+00> : vector<256x256xf32>
    %18 = tpu.matmul %17, %15, %cst_14 {dimension_numbers = #tpu.dot_dimension_numbers<[1], [0], [0], [1], [0, 0, 1, 1], [], []>} : vector<256x8xf32>, vector<8x256xf32>, vector<256x256xf32> -> vector<256x256xf32>
    %19 = arith.addf %18, %8 : vector<256x256xf32>
    %cst_15 = arith.constant dense<0xFF800000> : vector<256xf32>
    %20 = vector.multi_reduction <maximumf>, %19, %cst_15 [1] : vector<256x256xf32> to vector<256xf32>
    %21 = vector.shape_cast %20 : vector<256xf32> to vector<256x1xf32>
    %22 = vector.broadcast %21 : vector<256x1xf32> to vector<256x256xf32>
    %23 = arith.subf %19, %22 : vector<256x256xf32>
    %24 = math.exp %23 : vector<256x256xf32>
    %cst_16 = arith.constant dense<0.000000e+00> : vector<256xf32>
    %25 = vector.multi_reduction <add>, %24, %cst_16 [1] : vector<256x256xf32> to vector<256xf32>
    %26 = vector.shape_cast %25 : vector<256xf32> to vector<256x1xf32>
    %27 = tpu.reciprocal %26 {approx = true} : vector<256x1xf32> -> vector<256x1xf32>
    %28 = vector.broadcast %27 : vector<256x1xf32> to vector<256x256xf32>
    %29 = arith.mulf %24, %28 : vector<256x256xf32>
    %cst_17 = arith.constant dense<0.000000e+00> : vector<8x256xf32>
    %30 = tpu.matmul %16, %29, %cst_17 {dimension_numbers = #tpu.dot_dimension_numbers<[1], [1], [0], [0], [0, 0, 1, 0], [], []>} : vector<8x256xf32>, vector<256x256xf32>, vector<8x256xf32> -> vector<8x256xf32>
    %c32 = arith.constant 32 : index
    %c0_18 = arith.constant 0 : index
    %31 = vector.load %arg6[%c32, %c0_18] : memref<224x144xf32, #tpu.memory_space<vmem>>, vector<8x8xf32>
    %cst_19 = arith.constant dense<0.000000e+00> : vector<8x256xf32>
    %32 = tpu.matmul %31, %30, %cst_19 {dimension_numbers = #tpu.dot_dimension_numbers<[1], [0], [0], [1], [0, 0, 1, 1], [], []>} : vector<8x8xf32>, vector<8x256xf32>, vector<8x256xf32> -> vector<8x256xf32>
    %c32_20 = arith.constant 32 : index
    %c0_21 = arith.constant 0 : index
    %33 = vector.load %arg7[%c32_20, %c0_21] : memref<296x1xf32, #tpu.memory_space<vmem>>, vector<8x1xf32>
    %34 = vector.broadcast %33 : vector<8x1xf32> to vector<8x256xf32>
    %35 = arith.addf %32, %34 : vector<8x256xf32>
    %36 = arith.addf %7, %35 : vector<8x256xf32>
    %c0_22 = arith.constant 0 : index
    %c0_23 = arith.constant 0 : index
    %37 = vector.load %arg4[%c0_22, %c0_23] : memref<256x256xf32, #tpu.memory_space<vmem>>, vector<256x256xf32>
    %c40 = arith.constant 40 : index
    %c0_24 = arith.constant 0 : index
    %38 = vector.load %arg6[%c40, %c0_24] : memref<224x144xf32, #tpu.memory_space<vmem>>, vector<24x8xf32>
    %cst_25 = arith.constant dense<0.000000e+00> : vector<24x256xf32>
    %39 = tpu.matmul %38, %36, %cst_25 {dimension_numbers = #tpu.dot_dimension_numbers<[1], [0], [0], [1], [0, 0, 1, 1], [], []>} : vector<24x8xf32>, vector<8x256xf32>, vector<24x256xf32> -> vector<24x256xf32>
    %c40_26 = arith.constant 40 : index
    %c0_27 = arith.constant 0 : index
    %40 = vector.load %arg7[%c40_26, %c0_27] : memref<296x1xf32, #tpu.memory_space<vmem>>, vector<24x1xf32>
    %41 = vector.broadcast %40 : vector<24x1xf32> to vector<24x256xf32>
    %42 = arith.addf %39, %41 : vector<24x256xf32>
    %43 = vector.extract_strided_slice %42 {offsets = [0, 0], sizes = [8, 256], strides = [1, 1]} : vector<24x256xf32> to vector<8x256xf32>
    %44 = vector.extract_strided_slice %42 {offsets = [8, 0], sizes = [8, 256], strides = [1, 1]} : vector<24x256xf32> to vector<8x256xf32>
    %45 = vector.extract_strided_slice %42 {offsets = [16, 0], sizes = [8, 256], strides = [1, 1]} : vector<24x256xf32> to vector<8x256xf32>
    %46 = tpu.transpose %43, [1, 0] : vector<8x256xf32> -> vector<256x8xf32>
    %cst_28 = arith.constant dense<0.000000e+00> : vector<256x256xf32>
    %47 = tpu.matmul %46, %44, %cst_28 {dimension_numbers = #tpu.dot_dimension_numbers<[1], [0], [0], [1], [0, 0, 1, 1], [], []>} : vector<256x8xf32>, vector<8x256xf32>, vector<256x256xf32> -> vector<256x256xf32>
    %48 = arith.addf %47, %37 : vector<256x256xf32>
    %cst_29 = arith.constant dense<0xFF800000> : vector<256xf32>
    %49 = vector.multi_reduction <maximumf>, %48, %cst_29 [1] : vector<256x256xf32> to vector<256xf32>
    %50 = vector.shape_cast %49 : vector<256xf32> to vector<256x1xf32>
    %51 = vector.broadcast %50 : vector<256x1xf32> to vector<256x256xf32>
    %52 = arith.subf %48, %51 : vector<256x256xf32>
    %53 = math.exp %52 : vector<256x256xf32>
    %cst_30 = arith.constant dense<0.000000e+00> : vector<256xf32>
    %54 = vector.multi_reduction <add>, %53, %cst_30 [1] : vector<256x256xf32> to vector<256xf32>
    %55 = vector.shape_cast %54 : vector<256xf32> to vector<256x1xf32>
    %56 = tpu.reciprocal %55 {approx = true} : vector<256x1xf32> -> vector<256x1xf32>
    %57 = vector.broadcast %56 : vector<256x1xf32> to vector<256x256xf32>
    %58 = arith.mulf %53, %57 : vector<256x256xf32>
    %cst_31 = arith.constant dense<0.000000e+00> : vector<8x256xf32>
    %59 = tpu.matmul %45, %58, %cst_31 {dimension_numbers = #tpu.dot_dimension_numbers<[1], [1], [0], [0], [0, 0, 1, 0], [], []>} : vector<8x256xf32>, vector<256x256xf32>, vector<8x256xf32> -> vector<8x256xf32>
    %c64 = arith.constant 64 : index
    %c0_32 = arith.constant 0 : index
    %60 = vector.load %arg6[%c64, %c0_32] : memref<224x144xf32, #tpu.memory_space<vmem>>, vector<8x8xf32>
    %cst_33 = arith.constant dense<0.000000e+00> : vector<8x256xf32>
    %61 = tpu.matmul %60, %59, %cst_33 {dimension_numbers = #tpu.dot_dimension_numbers<[1], [0], [0], [1], [0, 0, 1, 1], [], []>} : vector<8x8xf32>, vector<8x256xf32>, vector<8x256xf32> -> vector<8x256xf32>
    %c64_34 = arith.constant 64 : index
    %c0_35 = arith.constant 0 : index
    %62 = vector.load %arg7[%c64_34, %c0_35] : memref<296x1xf32, #tpu.memory_space<vmem>>, vector<8x1xf32>
    %63 = vector.broadcast %62 : vector<8x1xf32> to vector<8x256xf32>
    %64 = arith.addf %61, %63 : vector<8x256xf32>
    %65 = arith.addf %36, %64 : vector<8x256xf32>
    %c72 = arith.constant 72 : index
    %c0_36 = arith.constant 0 : index
    %66 = vector.load %arg6[%c72, %c0_36] : memref<224x144xf32, #tpu.memory_space<vmem>>, vector<8x8xf32>
    %cst_37 = arith.constant dense<0.000000e+00> : vector<8x256xf32>
    %67 = tpu.matmul %66, %65, %cst_37 {dimension_numbers = #tpu.dot_dimension_numbers<[1], [0], [0], [1], [0, 0, 1, 1], [], []>} : vector<8x8xf32>, vector<8x256xf32>, vector<8x256xf32> -> vector<8x256xf32>
    %c72_38 = arith.constant 72 : index
    %c0_39 = arith.constant 0 : index
    %68 = vector.load %arg7[%c72_38, %c0_39] : memref<296x1xf32, #tpu.memory_space<vmem>>, vector<8x1xf32>
    %69 = vector.broadcast %68 : vector<8x1xf32> to vector<8x256xf32>
    %70 = arith.addf %67, %69 : vector<8x256xf32>
    %71 = vector.extract_strided_slice %1 {offsets = [0, 239], sizes = [8, 17], strides = [1, 1]} : vector<8x256xf32> to vector<8x17xf32>
    %72 = vector.extract_strided_slice %1 {offsets = [0, 0], sizes = [8, 239], strides = [1, 1]} : vector<8x256xf32> to vector<8x239xf32>
    %73 = tpu.concatenate %71, %72 in 1 : vector<8x17xf32>, vector<8x239xf32> -> vector<8x256xf32>
    %74 = vector.extract_strided_slice %1 {offsets = [0, 240], sizes = [8, 16], strides = [1, 1]} : vector<8x256xf32> to vector<8x16xf32>
    %75 = vector.extract_strided_slice %1 {offsets = [0, 0], sizes = [8, 240], strides = [1, 1]} : vector<8x256xf32> to vector<8x240xf32>
    %76 = tpu.concatenate %74, %75 in 1 : vector<8x16xf32>, vector<8x240xf32> -> vector<8x256xf32>
    %77 = vector.extract_strided_slice %1 {offsets = [0, 241], sizes = [8, 15], strides = [1, 1]} : vector<8x256xf32> to vector<8x15xf32>
    %78 = vector.extract_strided_slice %1 {offsets = [0, 0], sizes = [8, 241], strides = [1, 1]} : vector<8x256xf32> to vector<8x241xf32>
    %79 = tpu.concatenate %77, %78 in 1 : vector<8x15xf32>, vector<8x241xf32> -> vector<8x256xf32>
    %80 = vector.extract_strided_slice %1 {offsets = [0, 255], sizes = [8, 1], strides = [1, 1]} : vector<8x256xf32> to vector<8x1xf32>
    %81 = vector.extract_strided_slice %1 {offsets = [0, 0], sizes = [8, 255], strides = [1, 1]} : vector<8x256xf32> to vector<8x255xf32>
    %82 = tpu.concatenate %80, %81 in 1 : vector<8x1xf32>, vector<8x255xf32> -> vector<8x256xf32>
    %83 = vector.extract_strided_slice %1 {offsets = [0, 1], sizes = [8, 255], strides = [1, 1]} : vector<8x256xf32> to vector<8x255xf32>
    %84 = vector.extract_strided_slice %1 {offsets = [0, 0], sizes = [8, 1], strides = [1, 1]} : vector<8x256xf32> to vector<8x1xf32>
    %85 = tpu.concatenate %83, %84 in 1 : vector<8x255xf32>, vector<8x1xf32> -> vector<8x256xf32>
    %86 = vector.extract_strided_slice %1 {offsets = [0, 15], sizes = [8, 241], strides = [1, 1]} : vector<8x256xf32> to vector<8x241xf32>
    %87 = vector.extract_strided_slice %1 {offsets = [0, 0], sizes = [8, 15], strides = [1, 1]} : vector<8x256xf32> to vector<8x15xf32>
    %88 = tpu.concatenate %86, %87 in 1 : vector<8x241xf32>, vector<8x15xf32> -> vector<8x256xf32>
    %89 = vector.extract_strided_slice %1 {offsets = [0, 16], sizes = [8, 240], strides = [1, 1]} : vector<8x256xf32> to vector<8x240xf32>
    %90 = vector.extract_strided_slice %1 {offsets = [0, 0], sizes = [8, 16], strides = [1, 1]} : vector<8x256xf32> to vector<8x16xf32>
    %91 = tpu.concatenate %89, %90 in 1 : vector<8x240xf32>, vector<8x16xf32> -> vector<8x256xf32>
    %92 = vector.extract_strided_slice %1 {offsets = [0, 17], sizes = [8, 239], strides = [1, 1]} : vector<8x256xf32> to vector<8x239xf32>
    %93 = vector.extract_strided_slice %1 {offsets = [0, 0], sizes = [8, 17], strides = [1, 1]} : vector<8x256xf32> to vector<8x17xf32>
    %94 = tpu.concatenate %92, %93 in 1 : vector<8x239xf32>, vector<8x17xf32> -> vector<8x256xf32>
    %95 = tpu.concatenate %73, %76, %79, %82, %1, %85, %88, %91, %94 in 0 : vector<8x256xf32>, vector<8x256xf32>, vector<8x256xf32>, vector<8x256xf32>, vector<8x256xf32>, vector<8x256xf32>, vector<8x256xf32>, vector<8x256xf32>, vector<8x256xf32> -> vector<72x256xf32>
    %c80 = arith.constant 80 : index
    %c0_40 = arith.constant 0 : index
    %96 = vector.load %arg6[%c80, %c0_40] : memref<224x144xf32, #tpu.memory_space<vmem>>, vector<8x72xf32>
    %cst_41 = arith.constant dense<0.000000e+00> : vector<8x256xf32>
    %97 = tpu.matmul %96, %95, %cst_41 {dimension_numbers = #tpu.dot_dimension_numbers<[1], [0], [0], [1], [0, 0, 1, 1], [], []>} : vector<8x72xf32>, vector<72x256xf32>, vector<8x256xf32> -> vector<8x256xf32>
    %c80_42 = arith.constant 80 : index
    %c0_43 = arith.constant 0 : index
    %98 = vector.load %arg7[%c80_42, %c0_43] : memref<296x1xf32, #tpu.memory_space<vmem>>, vector<8x1xf32>
    %99 = vector.broadcast %98 : vector<8x1xf32> to vector<8x256xf32>
    %100 = arith.addf %97, %99 : vector<8x256xf32>
    %cst_44 = arith.constant 0.000000e+00 : f32
    %101 = vector.broadcast %cst_44 : f32 to vector<8x256xf32>
    %102 = arith.maximumf %100, %101 : vector<8x256xf32>
    %c88 = arith.constant 88 : index
    %c0_45 = arith.constant 0 : index
    %103 = vector.load %arg6[%c88, %c0_45] : memref<224x144xf32, #tpu.memory_space<vmem>>, vector<8x8xf32>
    %cst_46 = arith.constant dense<0.000000e+00> : vector<8x256xf32>
    %104 = tpu.matmul %103, %102, %cst_46 {dimension_numbers = #tpu.dot_dimension_numbers<[1], [0], [0], [1], [0, 0, 1, 1], [], []>} : vector<8x8xf32>, vector<8x256xf32>, vector<8x256xf32> -> vector<8x256xf32>
    %105 = vector.broadcast %2 : vector<1x256xf32> to vector<8x256xf32>
    %106 = arith.mulf %104, %105 : vector<8x256xf32>
    %cst_47 = arith.constant dense<0.000000e+00> : vector<8xf32>
    %107 = vector.multi_reduction <add>, %106, %cst_47 [1] : vector<8x256xf32> to vector<8xf32>
    %108 = vector.shape_cast %107 : vector<8xf32> to vector<8x1xf32>
    %cst_48 = arith.constant dense<0.000000e+00> : vector<1xf32>
    %109 = vector.multi_reduction <add>, %108, %cst_48 [0] : vector<8x1xf32> to vector<1xf32>
    %110 = vector.shape_cast %109 : vector<1xf32> to vector<1x1xf32>
    %cst_49 = arith.constant 6.37755089E-4 : f32
    %111 = vector.broadcast %cst_49 : f32 to vector<1x1xf32>
    %112 = arith.mulf %110, %111 : vector<1x1xf32>
    %113 = vector.broadcast %112 : vector<1x1xf32> to vector<8x256xf32>
    %114 = arith.subf %104, %113 : vector<8x256xf32>
    %115 = vector.broadcast %2 : vector<1x256xf32> to vector<8x256xf32>
    %116 = arith.mulf %114, %115 : vector<8x256xf32>
    %117 = arith.mulf %116, %116 : vector<8x256xf32>
    %cst_50 = arith.constant dense<0.000000e+00> : vector<8xf32>
    %118 = vector.multi_reduction <add>, %117, %cst_50 [1] : vector<8x256xf32> to vector<8xf32>
    %119 = vector.shape_cast %118 : vector<8xf32> to vector<8x1xf32>
    %cst_51 = arith.constant dense<0.000000e+00> : vector<1xf32>
    %120 = vector.multi_reduction <add>, %119, %cst_51 [0] : vector<8x1xf32> to vector<1xf32>
    %121 = vector.shape_cast %120 : vector<1xf32> to vector<1x1xf32>
    %cst_52 = arith.constant 6.37755089E-4 : f32
    %122 = vector.broadcast %cst_52 : f32 to vector<1x1xf32>
    %123 = arith.mulf %121, %122 : vector<1x1xf32>
    %124 = vector.broadcast %112 : vector<1x1xf32> to vector<8x256xf32>
    %125 = arith.subf %104, %124 : vector<8x256xf32>
    %cst_53 = arith.constant 9.99999974E-6 : f32
    %126 = vector.broadcast %cst_53 : f32 to vector<1x1xf32>
    %127 = arith.addf %123, %126 : vector<1x1xf32>
    %128 = math.rsqrt %127 : vector<1x1xf32>
    %129 = vector.broadcast %128 : vector<1x1xf32> to vector<8x256xf32>
    %130 = arith.mulf %125, %129 : vector<8x256xf32>
    %c88_54 = arith.constant 88 : index
    %c0_55 = arith.constant 0 : index
    %131 = vector.load %arg7[%c88_54, %c0_55] : memref<296x1xf32, #tpu.memory_space<vmem>>, vector<8x1xf32>
    %132 = vector.broadcast %131 : vector<8x1xf32> to vector<8x256xf32>
    %133 = arith.mulf %130, %132 : vector<8x256xf32>
    %c96 = arith.constant 96 : index
    %c0_56 = arith.constant 0 : index
    %134 = vector.load %arg7[%c96, %c0_56] : memref<296x1xf32, #tpu.memory_space<vmem>>, vector<8x1xf32>
    %135 = vector.broadcast %134 : vector<8x1xf32> to vector<8x256xf32>
    %136 = arith.addf %133, %135 : vector<8x256xf32>
    %c96_57 = arith.constant 96 : index
    %c0_58 = arith.constant 0 : index
    %137 = vector.load %arg6[%c96_57, %c0_58] : memref<224x144xf32, #tpu.memory_space<vmem>>, vector<17x8xf32>
    %cst_59 = arith.constant dense<0.000000e+00> : vector<17x256xf32>
    %138 = tpu.matmul %137, %136, %cst_59 {dimension_numbers = #tpu.dot_dimension_numbers<[1], [0], [0], [1], [0, 0, 1, 1], [], []>} : vector<17x8xf32>, vector<8x256xf32>, vector<17x256xf32> -> vector<17x256xf32>
    %c104 = arith.constant 104 : index
    %c0_60 = arith.constant 0 : index
    %139 = vector.load %arg7[%c104, %c0_60] : memref<296x1xf32, #tpu.memory_space<vmem>>, vector<17x1xf32>
    %140 = vector.broadcast %139 : vector<17x1xf32> to vector<17x256xf32>
    %141 = arith.addf %138, %140 : vector<17x256xf32>
    %142 = vector.extract_strided_slice %141 {offsets = [0, 0], sizes = [8, 256], strides = [1, 1]} : vector<17x256xf32> to vector<8x256xf32>
    %143 = vector.extract_strided_slice %141 {offsets = [8, 0], sizes = [8, 256], strides = [1, 1]} : vector<17x256xf32> to vector<8x256xf32>
    %144 = vector.extract_strided_slice %141 {offsets = [16, 0], sizes = [1, 256], strides = [1, 1]} : vector<17x256xf32> to vector<1x256xf32>
    %c0_61 = arith.constant 0 : index
    %c0_62 = arith.constant 0 : index
    %145 = vector.load %arg5[%c0_61, %c0_62] : memref<256x256xf32, #tpu.memory_space<vmem>>, vector<256x256xf32>
    %cst_63 = arith.constant 0.000000e+00 : f32
    %146 = vector.broadcast %cst_63 : f32 to vector<1x256xf32>
    %147 = arith.cmpf ogt, %2, %146 : vector<1x256xf32>
    %cst_64 = arith.constant -1.000000e+30 : f32
    %148 = vector.broadcast %cst_64 : f32 to vector<1x256xf32>
    %149 = arith.select %147, %144, %148 : vector<1x256xi1>, vector<1x256xf32>
    %cst_65 = arith.constant dense<0xFF800000> : vector<1xf32>
    %150 = vector.multi_reduction <maximumf>, %149, %cst_65 [1] : vector<1x256xf32> to vector<1xf32>
    %151 = vector.shape_cast %150 : vector<1xf32> to vector<1x1xf32>
    %152 = vector.broadcast %151 : vector<1x1xf32> to vector<1x256xf32>
    %153 = arith.subf %144, %152 : vector<1x256xf32>
    %154 = math.exp %153 : vector<1x256xf32>
    %155 = arith.mulf %154, %2 : vector<1x256xf32>
    %cst_66 = arith.constant dense<0.000000e+00> : vector<1x256xf32>
    %156 = tpu.matmul %155, %145, %cst_66 {dimension_numbers = #tpu.dot_dimension_numbers<[1], [0], [0], [1], [0, 0, 1, 1], [], []>} : vector<1x256xf32>, vector<256x256xf32>, vector<1x256xf32> -> vector<1x256xf32>
    %cst_67 = arith.constant 1.000000e+00 : f32
    %157 = vector.broadcast %cst_67 : f32 to vector<1x256xf32>
    %158 = arith.subf %157, %2 : vector<1x256xf32>
    %159 = arith.addf %156, %158 : vector<1x256xf32>
    %160 = tpu.reciprocal %159 {approx = true} : vector<1x256xf32> -> vector<1x256xf32>
    %161 = arith.mulf %155, %160 : vector<1x256xf32>
    %162 = vector.broadcast %161 : vector<1x256xf32> to vector<8x256xf32>
    %163 = arith.mulf %142, %162 : vector<8x256xf32>
    %cst_68 = arith.constant dense<0.000000e+00> : vector<8x256xf32>
    %164 = tpu.matmul %163, %145, %cst_68 {dimension_numbers = #tpu.dot_dimension_numbers<[1], [0], [0], [1], [0, 0, 1, 1], [], []>} : vector<8x256xf32>, vector<256x256xf32>, vector<8x256xf32> -> vector<8x256xf32>
    %cst_69 = arith.constant 0.000000e+00 : f32
    %165 = vector.broadcast %cst_69 : f32 to vector<8x256xf32>
    %166 = arith.maximumf %143, %165 : vector<8x256xf32>
    %167 = arith.mulf %166, %164 : vector<8x256xf32>
    %c120 = arith.constant 120 : index
    %c0_70 = arith.constant 0 : index
    %168 = vector.load %arg6[%c120, %c0_70] : memref<224x144xf32, #tpu.memory_space<vmem>>, vector<8x8xf32>
    %cst_71 = arith.constant dense<0.000000e+00> : vector<8x256xf32>
    %169 = tpu.matmul %168, %167, %cst_71 {dimension_numbers = #tpu.dot_dimension_numbers<[1], [0], [0], [1], [0, 0, 1, 1], [], []>} : vector<8x8xf32>, vector<8x256xf32>, vector<8x256xf32> -> vector<8x256xf32>
    %170 = arith.addf %104, %169 : vector<8x256xf32>
    %c128 = arith.constant 128 : index
    %c0_72 = arith.constant 0 : index
    %171 = vector.load %arg7[%c128, %c0_72] : memref<296x1xf32, #tpu.memory_space<vmem>>, vector<8x1xf32>
    %172 = vector.broadcast %171 : vector<8x1xf32> to vector<8x256xf32>
    %173 = arith.addf %170, %172 : vector<8x256xf32>
    %174 = vector.broadcast %2 : vector<1x256xf32> to vector<8x256xf32>
    %175 = arith.mulf %173, %174 : vector<8x256xf32>
    %cst_73 = arith.constant dense<0.000000e+00> : vector<8xf32>
    %176 = vector.multi_reduction <add>, %175, %cst_73 [1] : vector<8x256xf32> to vector<8xf32>
    %177 = vector.shape_cast %176 : vector<8xf32> to vector<8x1xf32>
    %cst_74 = arith.constant dense<0.000000e+00> : vector<1xf32>
    %178 = vector.multi_reduction <add>, %177, %cst_74 [0] : vector<8x1xf32> to vector<1xf32>
    %179 = vector.shape_cast %178 : vector<1xf32> to vector<1x1xf32>
    %cst_75 = arith.constant 6.37755089E-4 : f32
    %180 = vector.broadcast %cst_75 : f32 to vector<1x1xf32>
    %181 = arith.mulf %179, %180 : vector<1x1xf32>
    %182 = vector.broadcast %181 : vector<1x1xf32> to vector<8x256xf32>
    %183 = arith.subf %173, %182 : vector<8x256xf32>
    %184 = vector.broadcast %2 : vector<1x256xf32> to vector<8x256xf32>
    %185 = arith.mulf %183, %184 : vector<8x256xf32>
    %186 = arith.mulf %185, %185 : vector<8x256xf32>
    %cst_76 = arith.constant dense<0.000000e+00> : vector<8xf32>
    %187 = vector.multi_reduction <add>, %186, %cst_76 [1] : vector<8x256xf32> to vector<8xf32>
    %188 = vector.shape_cast %187 : vector<8xf32> to vector<8x1xf32>
    %cst_77 = arith.constant dense<0.000000e+00> : vector<1xf32>
    %189 = vector.multi_reduction <add>, %188, %cst_77 [0] : vector<8x1xf32> to vector<1xf32>
    %190 = vector.shape_cast %189 : vector<1xf32> to vector<1x1xf32>
    %cst_78 = arith.constant 6.37755089E-4 : f32
    %191 = vector.broadcast %cst_78 : f32 to vector<1x1xf32>
    %192 = arith.mulf %190, %191 : vector<1x1xf32>
    %193 = vector.broadcast %181 : vector<1x1xf32> to vector<8x256xf32>
    %194 = arith.subf %173, %193 : vector<8x256xf32>
    %cst_79 = arith.constant 9.99999974E-6 : f32
    %195 = vector.broadcast %cst_79 : f32 to vector<1x1xf32>
    %196 = arith.addf %192, %195 : vector<1x1xf32>
    %197 = math.rsqrt %196 : vector<1x1xf32>
    %198 = vector.broadcast %197 : vector<1x1xf32> to vector<8x256xf32>
    %199 = arith.mulf %194, %198 : vector<8x256xf32>
    %c136 = arith.constant 136 : index
    %c0_80 = arith.constant 0 : index
    %200 = vector.load %arg7[%c136, %c0_80] : memref<296x1xf32, #tpu.memory_space<vmem>>, vector<8x1xf32>
    %201 = vector.broadcast %200 : vector<8x1xf32> to vector<8x256xf32>
    %202 = arith.mulf %199, %201 : vector<8x256xf32>
    %c144 = arith.constant 144 : index
    %c0_81 = arith.constant 0 : index
    %203 = vector.load %arg7[%c144, %c0_81] : memref<296x1xf32, #tpu.memory_space<vmem>>, vector<8x1xf32>
    %204 = vector.broadcast %203 : vector<8x1xf32> to vector<8x256xf32>
    %205 = arith.addf %202, %204 : vector<8x256xf32>
    %c128_82 = arith.constant 128 : index
    %c0_83 = arith.constant 0 : index
    %206 = vector.load %arg6[%c128_82, %c0_83] : memref<224x144xf32, #tpu.memory_space<vmem>>, vector<16x8xf32>
    %cst_84 = arith.constant dense<0.000000e+00> : vector<16x256xf32>
    %207 = tpu.matmul %206, %205, %cst_84 {dimension_numbers = #tpu.dot_dimension_numbers<[1], [0], [0], [1], [0, 0, 1, 1], [], []>} : vector<16x8xf32>, vector<8x256xf32>, vector<16x256xf32> -> vector<16x256xf32>
    %c152 = arith.constant 152 : index
    %c0_85 = arith.constant 0 : index
    %208 = vector.load %arg7[%c152, %c0_85] : memref<296x1xf32, #tpu.memory_space<vmem>>, vector<16x1xf32>
    %209 = vector.broadcast %208 : vector<16x1xf32> to vector<16x256xf32>
    %210 = arith.addf %207, %209 : vector<16x256xf32>
    %211 = arith.negf %210 : vector<16x256xf32>
    %212 = math.exp %211 : vector<16x256xf32>
    %cst_86 = arith.constant 1.000000e+00 : f32
    %213 = vector.broadcast %cst_86 : f32 to vector<16x256xf32>
    %214 = arith.addf %213, %212 : vector<16x256xf32>
    %215 = arith.divf %213, %214 : vector<16x256xf32>
    %216 = arith.mulf %210, %215 : vector<16x256xf32>
    %c144_87 = arith.constant 144 : index
    %c0_88 = arith.constant 0 : index
    %217 = vector.load %arg6[%c144_87, %c0_88] : memref<224x144xf32, #tpu.memory_space<vmem>>, vector<8x16xf32>
    %cst_89 = arith.constant dense<0.000000e+00> : vector<8x256xf32>
    %218 = tpu.matmul %217, %216, %cst_89 {dimension_numbers = #tpu.dot_dimension_numbers<[1], [0], [0], [1], [0, 0, 1, 1], [], []>} : vector<8x16xf32>, vector<16x256xf32>, vector<8x256xf32> -> vector<8x256xf32>
    %219 = arith.addf %173, %218 : vector<8x256xf32>
    %c168 = arith.constant 168 : index
    %c0_90 = arith.constant 0 : index
    %220 = vector.load %arg7[%c168, %c0_90] : memref<296x1xf32, #tpu.memory_space<vmem>>, vector<8x1xf32>
    %221 = vector.broadcast %220 : vector<8x1xf32> to vector<8x256xf32>
    %222 = arith.addf %219, %221 : vector<8x256xf32>
    %223 = vector.broadcast %2 : vector<1x256xf32> to vector<8x256xf32>
    %224 = arith.mulf %222, %223 : vector<8x256xf32>
    %cst_91 = arith.constant dense<0.000000e+00> : vector<8xf32>
    %225 = vector.multi_reduction <add>, %224, %cst_91 [1] : vector<8x256xf32> to vector<8xf32>
    %226 = vector.shape_cast %225 : vector<8xf32> to vector<8x1xf32>
    %cst_92 = arith.constant dense<0.000000e+00> : vector<1xf32>
    %227 = vector.multi_reduction <add>, %226, %cst_92 [0] : vector<8x1xf32> to vector<1xf32>
    %228 = vector.shape_cast %227 : vector<1xf32> to vector<1x1xf32>
    %cst_93 = arith.constant 6.37755089E-4 : f32
    %229 = vector.broadcast %cst_93 : f32 to vector<1x1xf32>
    %230 = arith.mulf %228, %229 : vector<1x1xf32>
    %231 = vector.broadcast %230 : vector<1x1xf32> to vector<8x256xf32>
    %232 = arith.subf %222, %231 : vector<8x256xf32>
    %233 = vector.broadcast %2 : vector<1x256xf32> to vector<8x256xf32>
    %234 = arith.mulf %232, %233 : vector<8x256xf32>
    %235 = arith.mulf %234, %234 : vector<8x256xf32>
    %cst_94 = arith.constant dense<0.000000e+00> : vector<8xf32>
    %236 = vector.multi_reduction <add>, %235, %cst_94 [1] : vector<8x256xf32> to vector<8xf32>
    %237 = vector.shape_cast %236 : vector<8xf32> to vector<8x1xf32>
    %cst_95 = arith.constant dense<0.000000e+00> : vector<1xf32>
    %238 = vector.multi_reduction <add>, %237, %cst_95 [0] : vector<8x1xf32> to vector<1xf32>
    %239 = vector.shape_cast %238 : vector<1xf32> to vector<1x1xf32>
    %cst_96 = arith.constant 6.37755089E-4 : f32
    %240 = vector.broadcast %cst_96 : f32 to vector<1x1xf32>
    %241 = arith.mulf %239, %240 : vector<1x1xf32>
    %242 = vector.broadcast %230 : vector<1x1xf32> to vector<8x256xf32>
    %243 = arith.subf %222, %242 : vector<8x256xf32>
    %cst_97 = arith.constant 9.99999974E-6 : f32
    %244 = vector.broadcast %cst_97 : f32 to vector<1x1xf32>
    %245 = arith.addf %241, %244 : vector<1x1xf32>
    %246 = math.rsqrt %245 : vector<1x1xf32>
    %247 = vector.broadcast %246 : vector<1x1xf32> to vector<8x256xf32>
    %248 = arith.mulf %243, %247 : vector<8x256xf32>
    %c176 = arith.constant 176 : index
    %c0_98 = arith.constant 0 : index
    %249 = vector.load %arg7[%c176, %c0_98] : memref<296x1xf32, #tpu.memory_space<vmem>>, vector<8x1xf32>
    %250 = vector.broadcast %249 : vector<8x1xf32> to vector<8x256xf32>
    %251 = arith.mulf %248, %250 : vector<8x256xf32>
    %c184 = arith.constant 184 : index
    %c0_99 = arith.constant 0 : index
    %252 = vector.load %arg7[%c184, %c0_99] : memref<296x1xf32, #tpu.memory_space<vmem>>, vector<8x1xf32>
    %253 = vector.broadcast %252 : vector<8x1xf32> to vector<8x256xf32>
    %254 = arith.addf %251, %253 : vector<8x256xf32>
    %c152_100 = arith.constant 152 : index
    %c0_101 = arith.constant 0 : index
    %255 = vector.load %arg6[%c152_100, %c0_101] : memref<224x144xf32, #tpu.memory_space<vmem>>, vector<17x8xf32>
    %cst_102 = arith.constant dense<0.000000e+00> : vector<17x256xf32>
    %256 = tpu.matmul %255, %254, %cst_102 {dimension_numbers = #tpu.dot_dimension_numbers<[1], [0], [0], [1], [0, 0, 1, 1], [], []>} : vector<17x8xf32>, vector<8x256xf32>, vector<17x256xf32> -> vector<17x256xf32>
    %c192 = arith.constant 192 : index
    %c0_103 = arith.constant 0 : index
    %257 = vector.load %arg7[%c192, %c0_103] : memref<296x1xf32, #tpu.memory_space<vmem>>, vector<17x1xf32>
    %258 = vector.broadcast %257 : vector<17x1xf32> to vector<17x256xf32>
    %259 = arith.addf %256, %258 : vector<17x256xf32>
    %260 = vector.extract_strided_slice %259 {offsets = [0, 0], sizes = [8, 256], strides = [1, 1]} : vector<17x256xf32> to vector<8x256xf32>
    %261 = vector.extract_strided_slice %259 {offsets = [8, 0], sizes = [8, 256], strides = [1, 1]} : vector<17x256xf32> to vector<8x256xf32>
    %262 = vector.extract_strided_slice %259 {offsets = [16, 0], sizes = [1, 256], strides = [1, 1]} : vector<17x256xf32> to vector<1x256xf32>
    %c0_104 = arith.constant 0 : index
    %c0_105 = arith.constant 0 : index
    %263 = vector.load %arg5[%c0_104, %c0_105] : memref<256x256xf32, #tpu.memory_space<vmem>>, vector<256x256xf32>
    %cst_106 = arith.constant 0.000000e+00 : f32
    %264 = vector.broadcast %cst_106 : f32 to vector<1x256xf32>
    %265 = arith.cmpf ogt, %2, %264 : vector<1x256xf32>
    %cst_107 = arith.constant -1.000000e+30 : f32
    %266 = vector.broadcast %cst_107 : f32 to vector<1x256xf32>
    %267 = arith.select %265, %262, %266 : vector<1x256xi1>, vector<1x256xf32>
    %cst_108 = arith.constant dense<0xFF800000> : vector<1xf32>
    %268 = vector.multi_reduction <maximumf>, %267, %cst_108 [1] : vector<1x256xf32> to vector<1xf32>
    %269 = vector.shape_cast %268 : vector<1xf32> to vector<1x1xf32>
    %270 = vector.broadcast %269 : vector<1x1xf32> to vector<1x256xf32>
    %271 = arith.subf %262, %270 : vector<1x256xf32>
    %272 = math.exp %271 : vector<1x256xf32>
    %273 = arith.mulf %272, %2 : vector<1x256xf32>
    %cst_109 = arith.constant dense<0.000000e+00> : vector<1x256xf32>
    %274 = tpu.matmul %273, %263, %cst_109 {dimension_numbers = #tpu.dot_dimension_numbers<[1], [0], [0], [1], [0, 0, 1, 1], [], []>} : vector<1x256xf32>, vector<256x256xf32>, vector<1x256xf32> -> vector<1x256xf32>
    %cst_110 = arith.constant 1.000000e+00 : f32
    %275 = vector.broadcast %cst_110 : f32 to vector<1x256xf32>
    %276 = arith.subf %275, %2 : vector<1x256xf32>
    %277 = arith.addf %274, %276 : vector<1x256xf32>
    %278 = tpu.reciprocal %277 {approx = true} : vector<1x256xf32> -> vector<1x256xf32>
    %279 = arith.mulf %273, %278 : vector<1x256xf32>
    %280 = vector.broadcast %279 : vector<1x256xf32> to vector<8x256xf32>
    %281 = arith.mulf %260, %280 : vector<8x256xf32>
    %cst_111 = arith.constant dense<0.000000e+00> : vector<8x256xf32>
    %282 = tpu.matmul %281, %263, %cst_111 {dimension_numbers = #tpu.dot_dimension_numbers<[1], [0], [0], [1], [0, 0, 1, 1], [], []>} : vector<8x256xf32>, vector<256x256xf32>, vector<8x256xf32> -> vector<8x256xf32>
    %cst_112 = arith.constant 0.000000e+00 : f32
    %283 = vector.broadcast %cst_112 : f32 to vector<8x256xf32>
    %284 = arith.maximumf %261, %283 : vector<8x256xf32>
    %285 = arith.mulf %284, %282 : vector<8x256xf32>
    %c176_113 = arith.constant 176 : index
    %c0_114 = arith.constant 0 : index
    %286 = vector.load %arg6[%c176_113, %c0_114] : memref<224x144xf32, #tpu.memory_space<vmem>>, vector<8x8xf32>
    %cst_115 = arith.constant dense<0.000000e+00> : vector<8x256xf32>
    %287 = tpu.matmul %286, %285, %cst_115 {dimension_numbers = #tpu.dot_dimension_numbers<[1], [0], [0], [1], [0, 0, 1, 1], [], []>} : vector<8x8xf32>, vector<8x256xf32>, vector<8x256xf32> -> vector<8x256xf32>
    %288 = arith.addf %222, %287 : vector<8x256xf32>
    %c216 = arith.constant 216 : index
    %c0_116 = arith.constant 0 : index
    %289 = vector.load %arg7[%c216, %c0_116] : memref<296x1xf32, #tpu.memory_space<vmem>>, vector<8x1xf32>
    %290 = vector.broadcast %289 : vector<8x1xf32> to vector<8x256xf32>
    %291 = arith.addf %288, %290 : vector<8x256xf32>
    %292 = vector.broadcast %2 : vector<1x256xf32> to vector<8x256xf32>
    %293 = arith.mulf %291, %292 : vector<8x256xf32>
    %cst_117 = arith.constant dense<0.000000e+00> : vector<8xf32>
    %294 = vector.multi_reduction <add>, %293, %cst_117 [1] : vector<8x256xf32> to vector<8xf32>
    %295 = vector.shape_cast %294 : vector<8xf32> to vector<8x1xf32>
    %cst_118 = arith.constant dense<0.000000e+00> : vector<1xf32>
    %296 = vector.multi_reduction <add>, %295, %cst_118 [0] : vector<8x1xf32> to vector<1xf32>
    %297 = vector.shape_cast %296 : vector<1xf32> to vector<1x1xf32>
    %cst_119 = arith.constant 6.37755089E-4 : f32
    %298 = vector.broadcast %cst_119 : f32 to vector<1x1xf32>
    %299 = arith.mulf %297, %298 : vector<1x1xf32>
    %300 = vector.broadcast %299 : vector<1x1xf32> to vector<8x256xf32>
    %301 = arith.subf %291, %300 : vector<8x256xf32>
    %302 = vector.broadcast %2 : vector<1x256xf32> to vector<8x256xf32>
    %303 = arith.mulf %301, %302 : vector<8x256xf32>
    %304 = arith.mulf %303, %303 : vector<8x256xf32>
    %cst_120 = arith.constant dense<0.000000e+00> : vector<8xf32>
    %305 = vector.multi_reduction <add>, %304, %cst_120 [1] : vector<8x256xf32> to vector<8xf32>
    %306 = vector.shape_cast %305 : vector<8xf32> to vector<8x1xf32>
    %cst_121 = arith.constant dense<0.000000e+00> : vector<1xf32>
    %307 = vector.multi_reduction <add>, %306, %cst_121 [0] : vector<8x1xf32> to vector<1xf32>
    %308 = vector.shape_cast %307 : vector<1xf32> to vector<1x1xf32>
    %cst_122 = arith.constant 6.37755089E-4 : f32
    %309 = vector.broadcast %cst_122 : f32 to vector<1x1xf32>
    %310 = arith.mulf %308, %309 : vector<1x1xf32>
    %311 = vector.broadcast %299 : vector<1x1xf32> to vector<8x256xf32>
    %312 = arith.subf %291, %311 : vector<8x256xf32>
    %cst_123 = arith.constant 9.99999974E-6 : f32
    %313 = vector.broadcast %cst_123 : f32 to vector<1x1xf32>
    %314 = arith.addf %310, %313 : vector<1x1xf32>
    %315 = math.rsqrt %314 : vector<1x1xf32>
    %316 = vector.broadcast %315 : vector<1x1xf32> to vector<8x256xf32>
    %317 = arith.mulf %312, %316 : vector<8x256xf32>
    %c224 = arith.constant 224 : index
    %c0_124 = arith.constant 0 : index
    %318 = vector.load %arg7[%c224, %c0_124] : memref<296x1xf32, #tpu.memory_space<vmem>>, vector<8x1xf32>
    %319 = vector.broadcast %318 : vector<8x1xf32> to vector<8x256xf32>
    %320 = arith.mulf %317, %319 : vector<8x256xf32>
    %c232 = arith.constant 232 : index
    %c0_125 = arith.constant 0 : index
    %321 = vector.load %arg7[%c232, %c0_125] : memref<296x1xf32, #tpu.memory_space<vmem>>, vector<8x1xf32>
    %322 = vector.broadcast %321 : vector<8x1xf32> to vector<8x256xf32>
    %323 = arith.addf %320, %322 : vector<8x256xf32>
    %c184_126 = arith.constant 184 : index
    %c0_127 = arith.constant 0 : index
    %324 = vector.load %arg6[%c184_126, %c0_127] : memref<224x144xf32, #tpu.memory_space<vmem>>, vector<16x8xf32>
    %cst_128 = arith.constant dense<0.000000e+00> : vector<16x256xf32>
    %325 = tpu.matmul %324, %323, %cst_128 {dimension_numbers = #tpu.dot_dimension_numbers<[1], [0], [0], [1], [0, 0, 1, 1], [], []>} : vector<16x8xf32>, vector<8x256xf32>, vector<16x256xf32> -> vector<16x256xf32>
    %c240 = arith.constant 240 : index
    %c0_129 = arith.constant 0 : index
    %326 = vector.load %arg7[%c240, %c0_129] : memref<296x1xf32, #tpu.memory_space<vmem>>, vector<16x1xf32>
    %327 = vector.broadcast %326 : vector<16x1xf32> to vector<16x256xf32>
    %328 = arith.addf %325, %327 : vector<16x256xf32>
    %329 = arith.negf %328 : vector<16x256xf32>
    %330 = math.exp %329 : vector<16x256xf32>
    %cst_130 = arith.constant 1.000000e+00 : f32
    %331 = vector.broadcast %cst_130 : f32 to vector<16x256xf32>
    %332 = arith.addf %331, %330 : vector<16x256xf32>
    %333 = arith.divf %331, %332 : vector<16x256xf32>
    %334 = arith.mulf %328, %333 : vector<16x256xf32>
    %c200 = arith.constant 200 : index
    %c0_131 = arith.constant 0 : index
    %335 = vector.load %arg6[%c200, %c0_131] : memref<224x144xf32, #tpu.memory_space<vmem>>, vector<8x16xf32>
    %cst_132 = arith.constant dense<0.000000e+00> : vector<8x256xf32>
    %336 = tpu.matmul %335, %334, %cst_132 {dimension_numbers = #tpu.dot_dimension_numbers<[1], [0], [0], [1], [0, 0, 1, 1], [], []>} : vector<8x16xf32>, vector<16x256xf32>, vector<8x256xf32> -> vector<8x256xf32>
    %337 = arith.addf %291, %336 : vector<8x256xf32>
    %c256 = arith.constant 256 : index
    %c0_133 = arith.constant 0 : index
    %338 = vector.load %arg7[%c256, %c0_133] : memref<296x1xf32, #tpu.memory_space<vmem>>, vector<8x1xf32>
    %339 = vector.broadcast %338 : vector<8x1xf32> to vector<8x256xf32>
    %340 = arith.addf %337, %339 : vector<8x256xf32>
    %341 = vector.broadcast %2 : vector<1x256xf32> to vector<8x256xf32>
    %342 = arith.mulf %340, %341 : vector<8x256xf32>
    %cst_134 = arith.constant dense<0.000000e+00> : vector<8xf32>
    %343 = vector.multi_reduction <add>, %342, %cst_134 [1] : vector<8x256xf32> to vector<8xf32>
    %344 = vector.shape_cast %343 : vector<8xf32> to vector<8x1xf32>
    %cst_135 = arith.constant dense<0.000000e+00> : vector<1xf32>
    %345 = vector.multi_reduction <add>, %344, %cst_135 [0] : vector<8x1xf32> to vector<1xf32>
    %346 = vector.shape_cast %345 : vector<1xf32> to vector<1x1xf32>
    %cst_136 = arith.constant 6.37755089E-4 : f32
    %347 = vector.broadcast %cst_136 : f32 to vector<1x1xf32>
    %348 = arith.mulf %346, %347 : vector<1x1xf32>
    %349 = vector.broadcast %348 : vector<1x1xf32> to vector<8x256xf32>
    %350 = arith.subf %340, %349 : vector<8x256xf32>
    %351 = vector.broadcast %2 : vector<1x256xf32> to vector<8x256xf32>
    %352 = arith.mulf %350, %351 : vector<8x256xf32>
    %353 = arith.mulf %352, %352 : vector<8x256xf32>
    %cst_137 = arith.constant dense<0.000000e+00> : vector<8xf32>
    %354 = vector.multi_reduction <add>, %353, %cst_137 [1] : vector<8x256xf32> to vector<8xf32>
    %355 = vector.shape_cast %354 : vector<8xf32> to vector<8x1xf32>
    %cst_138 = arith.constant dense<0.000000e+00> : vector<1xf32>
    %356 = vector.multi_reduction <add>, %355, %cst_138 [0] : vector<8x1xf32> to vector<1xf32>
    %357 = vector.shape_cast %356 : vector<1xf32> to vector<1x1xf32>
    %cst_139 = arith.constant 6.37755089E-4 : f32
    %358 = vector.broadcast %cst_139 : f32 to vector<1x1xf32>
    %359 = arith.mulf %357, %358 : vector<1x1xf32>
    %360 = vector.broadcast %348 : vector<1x1xf32> to vector<8x256xf32>
    %361 = arith.subf %340, %360 : vector<8x256xf32>
    %cst_140 = arith.constant 9.99999974E-6 : f32
    %362 = vector.broadcast %cst_140 : f32 to vector<1x1xf32>
    %363 = arith.addf %359, %362 : vector<1x1xf32>
    %364 = math.rsqrt %363 : vector<1x1xf32>
    %365 = vector.broadcast %364 : vector<1x1xf32> to vector<8x256xf32>
    %366 = arith.mulf %361, %365 : vector<8x256xf32>
    %c264 = arith.constant 264 : index
    %c0_141 = arith.constant 0 : index
    %367 = vector.load %arg7[%c264, %c0_141] : memref<296x1xf32, #tpu.memory_space<vmem>>, vector<8x1xf32>
    %368 = vector.broadcast %367 : vector<8x1xf32> to vector<8x256xf32>
    %369 = arith.mulf %366, %368 : vector<8x256xf32>
    %c272 = arith.constant 272 : index
    %c0_142 = arith.constant 0 : index
    %370 = vector.load %arg7[%c272, %c0_142] : memref<296x1xf32, #tpu.memory_space<vmem>>, vector<8x1xf32>
    %371 = vector.broadcast %370 : vector<8x1xf32> to vector<8x256xf32>
    %372 = arith.addf %369, %371 : vector<8x256xf32>
    %c208 = arith.constant 208 : index
    %c0_143 = arith.constant 0 : index
    %373 = vector.load %arg6[%c208, %c0_143] : memref<224x144xf32, #tpu.memory_space<vmem>>, vector<8x8xf32>
    %cst_144 = arith.constant dense<0.000000e+00> : vector<8x256xf32>
    %374 = tpu.matmul %373, %372, %cst_144 {dimension_numbers = #tpu.dot_dimension_numbers<[1], [0], [0], [1], [0, 0, 1, 1], [], []>} : vector<8x8xf32>, vector<8x256xf32>, vector<8x256xf32> -> vector<8x256xf32>
    %c280 = arith.constant 280 : index
    %c0_145 = arith.constant 0 : index
    %375 = vector.load %arg7[%c280, %c0_145] : memref<296x1xf32, #tpu.memory_space<vmem>>, vector<8x1xf32>
    %376 = vector.broadcast %375 : vector<8x1xf32> to vector<8x256xf32>
    %377 = arith.addf %374, %376 : vector<8x256xf32>
    %378 = tpu.concatenate %70, %377 in 0 : vector<8x256xf32>, vector<8x256xf32> -> vector<16x256xf32>
    %379 = vector.broadcast %2 : vector<1x256xf32> to vector<16x256xf32>
    %380 = arith.mulf %378, %379 : vector<16x256xf32>
    %381 = vector.extract_strided_slice %380 {offsets = [0, 239], sizes = [16, 17], strides = [1, 1]} : vector<16x256xf32> to vector<16x17xf32>
    %382 = vector.extract_strided_slice %380 {offsets = [0, 0], sizes = [16, 239], strides = [1, 1]} : vector<16x256xf32> to vector<16x239xf32>
    %383 = tpu.concatenate %381, %382 in 1 : vector<16x17xf32>, vector<16x239xf32> -> vector<16x256xf32>
    %384 = vector.extract_strided_slice %380 {offsets = [0, 240], sizes = [16, 16], strides = [1, 1]} : vector<16x256xf32> to vector<16x16xf32>
    %385 = vector.extract_strided_slice %380 {offsets = [0, 0], sizes = [16, 240], strides = [1, 1]} : vector<16x256xf32> to vector<16x240xf32>
    %386 = tpu.concatenate %384, %385 in 1 : vector<16x16xf32>, vector<16x240xf32> -> vector<16x256xf32>
    %387 = vector.extract_strided_slice %380 {offsets = [0, 241], sizes = [16, 15], strides = [1, 1]} : vector<16x256xf32> to vector<16x15xf32>
    %388 = vector.extract_strided_slice %380 {offsets = [0, 0], sizes = [16, 241], strides = [1, 1]} : vector<16x256xf32> to vector<16x241xf32>
    %389 = tpu.concatenate %387, %388 in 1 : vector<16x15xf32>, vector<16x241xf32> -> vector<16x256xf32>
    %390 = vector.extract_strided_slice %380 {offsets = [0, 255], sizes = [16, 1], strides = [1, 1]} : vector<16x256xf32> to vector<16x1xf32>
    %391 = vector.extract_strided_slice %380 {offsets = [0, 0], sizes = [16, 255], strides = [1, 1]} : vector<16x256xf32> to vector<16x255xf32>
    %392 = tpu.concatenate %390, %391 in 1 : vector<16x1xf32>, vector<16x255xf32> -> vector<16x256xf32>
    %393 = vector.extract_strided_slice %380 {offsets = [0, 1], sizes = [16, 255], strides = [1, 1]} : vector<16x256xf32> to vector<16x255xf32>
    %394 = vector.extract_strided_slice %380 {offsets = [0, 0], sizes = [16, 1], strides = [1, 1]} : vector<16x256xf32> to vector<16x1xf32>
    %395 = tpu.concatenate %393, %394 in 1 : vector<16x255xf32>, vector<16x1xf32> -> vector<16x256xf32>
    %396 = vector.extract_strided_slice %380 {offsets = [0, 15], sizes = [16, 241], strides = [1, 1]} : vector<16x256xf32> to vector<16x241xf32>
    %397 = vector.extract_strided_slice %380 {offsets = [0, 0], sizes = [16, 15], strides = [1, 1]} : vector<16x256xf32> to vector<16x15xf32>
    %398 = tpu.concatenate %396, %397 in 1 : vector<16x241xf32>, vector<16x15xf32> -> vector<16x256xf32>
    %399 = vector.extract_strided_slice %380 {offsets = [0, 16], sizes = [16, 240], strides = [1, 1]} : vector<16x256xf32> to vector<16x240xf32>
    %400 = vector.extract_strided_slice %380 {offsets = [0, 0], sizes = [16, 16], strides = [1, 1]} : vector<16x256xf32> to vector<16x16xf32>
    %401 = tpu.concatenate %399, %400 in 1 : vector<16x240xf32>, vector<16x16xf32> -> vector<16x256xf32>
    %402 = vector.extract_strided_slice %380 {offsets = [0, 17], sizes = [16, 239], strides = [1, 1]} : vector<16x256xf32> to vector<16x239xf32>
    %403 = vector.extract_strided_slice %380 {offsets = [0, 0], sizes = [16, 17], strides = [1, 1]} : vector<16x256xf32> to vector<16x17xf32>
    %404 = tpu.concatenate %402, %403 in 1 : vector<16x239xf32>, vector<16x17xf32> -> vector<16x256xf32>
    %405 = tpu.concatenate %383, %386, %389, %392, %380, %395, %398, %401, %404 in 0 : vector<16x256xf32>, vector<16x256xf32>, vector<16x256xf32>, vector<16x256xf32>, vector<16x256xf32>, vector<16x256xf32>, vector<16x256xf32>, vector<16x256xf32>, vector<16x256xf32> -> vector<144x256xf32>
    %c216_146 = arith.constant 216 : index
    %c0_147 = arith.constant 0 : index
    %406 = vector.load %arg6[%c216_146, %c0_147] : memref<224x144xf32, #tpu.memory_space<vmem>>, vector<8x144xf32>
    %cst_148 = arith.constant dense<0.000000e+00> : vector<8x256xf32>
    %407 = tpu.matmul %406, %405, %cst_148 {dimension_numbers = #tpu.dot_dimension_numbers<[1], [0], [0], [1], [0, 0, 1, 1], [], []>} : vector<8x144xf32>, vector<144x256xf32>, vector<8x256xf32> -> vector<8x256xf32>
    %c288 = arith.constant 288 : index
    %c0_149 = arith.constant 0 : index
    %408 = vector.load %arg7[%c288, %c0_149] : memref<296x1xf32, #tpu.memory_space<vmem>>, vector<8x1xf32>
    %409 = vector.broadcast %408 : vector<8x1xf32> to vector<8x256xf32>
    %410 = arith.addf %407, %409 : vector<8x256xf32>
    %cst_150 = arith.constant 0.000000e+00 : f32
    %411 = vector.broadcast %cst_150 : f32 to vector<8x256xf32>
    %412 = arith.maximumf %410, %411 : vector<8x256xf32>
    %c0_151 = arith.constant 0 : index
    %c0_152 = arith.constant 0 : index
    %c0_153 = arith.constant 0 : index
    %413 = vector.load %arg8[%c0_151, %c0_152, %c0_153] : memref<1x8x256xf32, #tpu.memory_space<vmem>>, vector<1x8x256xf32>
    %414 = vector.shape_cast %413 : vector<1x8x256xf32> to vector<8x256xf32>
    %415 = vector.shape_cast %412 : vector<8x256xf32> to vector<1x8x256xf32>
    tpu.vector_store %arg8[%c0_151, %c0_152, %c0_153], %415 {strides = array<i32>} : memref<1x8x256xf32, #tpu.memory_space<vmem>>, vector<1x8x256xf32>,
    return
  }
  func.func @transform_0(%arg0: i32) -> (i32, i32, i32) {
    %c0_i32 = arith.constant 0 : i32
    %c0_i32_0 = arith.constant 0 : i32
    %c0_i32_1 = arith.constant 0 : i32
    return %arg0, %c0_i32, %c0_i32_0 : i32, i32, i32
  }
  func.func @transform_1(%arg0: i32) -> (i32, i32) {
    %c0_i32 = arith.constant 0 : i32
    %c0_i32_0 = arith.constant 0 : i32
    %c0_i32_1 = arith.constant 0 : i32
    return %c0_i32, %c0_i32_0 : i32, i32
  }
  func.func @transform_2(%arg0: i32) -> (i32, i32) {
    %c0_i32 = arith.constant 0 : i32
    %c0_i32_0 = arith.constant 0 : i32
    %c0_i32_1 = arith.constant 0 : i32
    return %c0_i32, %c0_i32_0 : i32, i32
  }
  func.func @transform_3(%arg0: i32) -> (i32, i32) {
    %c0_i32 = arith.constant 0 : i32
    %c0_i32_0 = arith.constant 0 : i32
    %c0_i32_1 = arith.constant 0 : i32
    return %c0_i32, %c0_i32_0 : i32, i32
  }
  func.func @transform_4(%arg0: i32) -> (i32, i32) {
    %c0_i32 = arith.constant 0 : i32
    %c0_i32_0 = arith.constant 0 : i32
    %c0_i32_1 = arith.constant 0 : i32
    return %c0_i32, %c0_i32_0 : i32, i32
  }
  func.func @transform_5(%arg0: i32) -> (i32, i32) {
    %c0_i32 = arith.constant 0 : i32
    %c0_i32_0 = arith.constant 0 : i32
    %c0_i32_1 = arith.constant 0 : i32
    return %c0_i32, %c0_i32_0 : i32, i32
  }
  func.func @transform_6(%arg0: i32) -> (i32, i32) {
    %c0_i32 = arith.constant 0 : i32
    %c0_i32_0 = arith.constant 0 : i32
    %c0_i32_1 = arith.constant 0 : i32
    return %c0_i32, %c0_i32_0 : i32, i32
  }
  func.func @transform_7(%arg0: i32) -> (i32, i32, i32) {
    %c0_i32 = arith.constant 0 : i32
    %c0_i32_0 = arith.constant 0 : i32
    %c0_i32_1 = arith.constant 0 : i32
    return %arg0, %c0_i32, %c0_i32_0 : i32, i32, i32
  }
}

</mosaic_0001>

<llo_original>
// kernel: tpu_custom_call.1
$region0: #{tpu_custom_call.1}
  #allocation0 [shape = 'u32[]', space=smem, size = 0x4, offset = 0x4, fixed_abs, tag = 'smem constant byte address 0x4 - core index']
  #allocation1 [shape = 'u32[72,128]{1,0:T(1,128)}', space=vmem, size = 0x9000, scoped, tag = 'internal scratch']
  %s0 = inlined_call_operand.hbm [shape: f32[8,128], index: 0, kind: input, shape index: {}]
  %s1 = inlined_call_operand.hbm [shape: f32[8,128], index: 1, kind: output, shape index: {}]
  %s2 = sld [smem:[#allocation0]]
  $region18: #{tpu_custom_call.1} parent=0
    _
  %s4 = ssub.s32 1, %s2
  %s5 = scalar_select 0, %s4, %s2
  $region1: #{tpu_custom_call.1} parent=0
    #allocation2 [shape = 'u8[4096]{0}', space=vmem, size = 0x1000, scoped, tag = 'input window, operand 0, single buffered']
    #allocation3 [shape = 's32[1]{0}', space=sflag, size = 0x4, scoped, tag = 'scoped memory for tpu_custom_call.1']
    #allocation4 [shape = 's32[1]{0}', space=sflag, size = 0x4, scoped, tag = 'scoped memory for tpu_custom_call.1']
    #allocation5 [shape = 'u8[4096]{0}', space=vmem, size = 0x1000, scoped, tag = 'output window, operand 0, single buffered']
    %6 = vsyncpa [#allocation3], 0
    %7 = vsyncpa [#allocation4], 0
    // Predicated region
    $region2: #{tpu_custom_call.1} parent=1 // pred_check
      _
    $region3: #{tpu_custom_call.1} parent=1 // pred_check_branch
      %9 = sbr.rel (0) target = $region5
    $region4: #{tpu_custom_call.1} parent=1 // pred_region
      %11 = vsyncadd [#allocation3], 0
      %s13 = sshll.u32 %s0, 4
      %s14 = int_to_ptr.hbm [resolvable:$true] %s13
      %s15 = sshll.u32 [#allocation2], 4
      %s16 = int_to_ptr.vmem [resolvable:$true] %s15
      %18 = dma.hbm_to_vmem [thread:$0]  %s14, 128, %s16, [#allocation3]
    $region5: #{tpu_custom_call.1} parent=1 // pred_fallthru
      _
    // Predicated region
    $region6: #{tpu_custom_call.1} parent=1 // pred_check
      _
    $region7: #{tpu_custom_call.1} parent=1 // pred_check_branch
      %20 = sbr.rel (0) target = $region9
    $region8: #{tpu_custom_call.1} parent=1 // pred_region
      %22 = dma.done [#allocation3], 128
    $region9: #{tpu_custom_call.1} parent=1 // pred_fallthru
      _
    %v23 = vld [vmem:[#allocation2] sm:$0xff]
    %24 = vrot.lane.b32.xlu0 %v23, 1
    %v25 = vpop.permute.xlu0 %24
    %26 = vst [vmem:[#allocation5] sm:$0xff] %v25
    // Predicated region
    $region10: #{tpu_custom_call.1} parent=1 // pred_check
      _
    $region11: #{tpu_custom_call.1} parent=1 // pred_check_branch
      %28 = sbr.rel (0) target = $region13
    $region12: #{tpu_custom_call.1} parent=1 // pred_region
      %30 = vsyncadd [#allocation4], 0
      %s32 = sshll.u32 [#allocation5], 4
      %s33 = int_to_ptr.vmem [resolvable:$true] %s32
      %s34 = sshll.u32 %s1, 4
      %s35 = int_to_ptr.hbm [resolvable:$true] %s34
      %37 = dma.vmem_to_hbm [thread:$0]  %s33, 128, %s35, [#allocation4]
    $region13: #{tpu_custom_call.1} parent=1 // pred_fallthru
      _
    // Predicated region
    $region14: #{tpu_custom_call.1} parent=1 // pred_check
      _
    $region15: #{tpu_custom_call.1} parent=1 // pred_check_branch
      %39 = sbr.rel (0) target = $region17
    $region16: #{tpu_custom_call.1} parent=1 // pred_region
      %41 = dma.done [#allocation4], 128
    $region17: #{tpu_custom_call.1} parent=1 // pred_fallthru
      _
    %42 = vsyncpa [#allocation3], 1
    %43 = vsyncpa [#allocation4], 1

// kernel: mvit2_block_forward.1
$region0: #{mvit2_block_forward.1}
  #allocation0 [shape = 'u32[]', space=smem, size = 0x4, offset = 0x4, fixed_abs, tag = 'smem constant byte address 0x4 - core index']
  #allocation1 [shape = 'u32[72,128]{1,0:T(1,128)}', space=vmem, size = 0x9000, scoped, tag = 'internal scratch']
  %s0 = inlined_call_operand.vmem [shape: f32[2,8,256], index: 0, kind: input, shape index: {}]
  %s1 = inlined_call_operand.vmem [shape: f32[1,256], index: 1, kind: input, shape index: {}]
  %s2 = inlined_call_operand.vmem [shape: f32[256,256], index: 2, kind: input, shape index: {}]
  %s3 = inlined_call_operand.vmem [shape: f32[256,256], index: 3, kind: input, shape index: {}]
  %s4 = inlined_call_operand.vmem [shape: f32[256,256], index: 4, kind: input, shape index: {}]
  %s5 = inlined_call_operand.vmem [shape: f32[224,144], index: 5, kind: input, shape index: {}]
  %s6 = inlined_call_operand.vmem [shape: f32[296,1], index: 6, kind: input, shape index: {}]
  %s7 = inlined_call_operand.vmem [shape: f32[2,8,256], index: 7, kind: output, shape index: {}]
  %s8 = sld [smem:[#allocation0]]
  $region61: #{mvit2_block_forward.1} parent=0
    _
  %s10 = ssub.s32 1, %s8
  %s11 = scalar_select 0, %s10, %s8
  loop: start=0, step=1, limit=4
  $region2: #{mvit2_block_forward.1} parent=0 // loop_pre_header
    _
  $region3: #{mvit2_block_forward.1} parent=0 // loop_header
    %s13 = sphi 0, %s17
    %p14 = scmp.ge.s32.totalorder %s13, 4
    %s23 = sphi 0, %s25
    %s26 = sphi 0, %s23
    %s27 = sphi 0, %s26
    %s43 = sphi 0, %s27
    %s47 = sphi 0, %s47
    %s49 = sphi 0, %s47
    %s50 = sphi 0, %s49
    %s64 = sphi 0, %s50
    %s68 = sphi 0, %s68
    %s70 = sphi 0, %s68
    %s71 = sphi 0, %s70
    %s85 = sphi 0, %s71
    %s89 = sphi 0, %s89
    %s91 = sphi 0, %s89
    %s92 = sphi 0, %s91
    %s106 = sphi 0, %s92
    %s110 = sphi 0, %s110
    %s112 = sphi 0, %s110
    %s113 = sphi 0, %s112
    %s127 = sphi 0, %s113
    %s131 = sphi 0, %s131
    %s133 = sphi 0, %s131
    %s134 = sphi 0, %s133
    %s148 = sphi 0, %s134
    %s152 = sphi 0, %s152
    %s154 = sphi 0, %s152
    %s155 = sphi 0, %s154
    %s169 = sphi 0, %s155
    %s175 = sphi 0, %s177
    %s178 = sphi 0, %s175
    %s179 = sphi 0, %s178
    %s195 = sphi 0, %s179
  $region4: #{mvit2_block_forward.1} parent=0 // loop_header_branch
    %16 = sbr.rel (%p14) target = $region8
  $region5: #{mvit2_block_forward.1} parent=0 // loop_body
    %s18 = ssub.s32 %s13, 1
    %s19 = ssub.s32 %s13, 2
    %s20 = sadd.s32 %s13, 1
    %s21 = ssub.s32 %s13, %s20
    %p22 = scmp.eq.s32.totalorder %s21, 0
    %s24 = sadd.s32 %s23, 1
    %s25 = scalar_select %p22, %s23, %s24
    %p28 = pneg %p22
    %p29 = scmp.eq.s32.totalorder %s13, 1
    %p30 = por %p28, %p29
    %p31 = scmp.ne.s32.totalorder %s23, %s26
    %p32 = scmp.eq.s32.totalorder %s13, 0
    %p33 = por %p31, %p32
    %p34 = scmp.ne.s32.totalorder %s23, %s26
    %p35 = scmp.eq.s32.totalorder %s18, 1
    %p36 = por %p34, %p35
    %p37 = scmp.ne.s32.totalorder %s26, %s27
    %p38 = scmp.eq.s32.totalorder %s18, 0
    %p39 = por %p37, %p38
    %p40 = scmp.ne.s32.totalorder %s26, %s27
    %p41 = scmp.eq.s32.totalorder %s19, 1
    %p42 = por %p40, %p41
    %p44 = scmp.ne.s32.totalorder %s27, %s43
    %p45 = scmp.eq.s32.totalorder %s19, 0
    %p46 = por %p44, %p45
    %s48 = sadd.s32 %s47, 1
    %p51 = scmp.eq.s32.totalorder %s13, 1
    %p52 = scmp.ne.s32.totalorder %s47, %s49
    %p53 = scmp.eq.s32.totalorder %s13, 0
    %p54 = por %p52, %p53
    %p55 = scmp.ne.s32.totalorder %s47, %s49
    %p56 = scmp.eq.s32.totalorder %s18, 1
    %p57 = por %p55, %p56
    %p58 = scmp.ne.s32.totalorder %s49, %s50
    %p59 = scmp.eq.s32.totalorder %s18, 0
    %p60 = por %p58, %p59
    %p61 = scmp.ne.s32.totalorder %s49, %s50
    %p62 = scmp.eq.s32.totalorder %s19, 1
    %p63 = por %p61, %p62
    %p65 = scmp.ne.s32.totalorder %s50, %s64
    %p66 = scmp.eq.s32.totalorder %s19, 0
    %p67 = por %p65, %p66
    %s69 = sadd.s32 %s68, 1
    %p72 = scmp.eq.s32.totalorder %s13, 1
    %p73 = scmp.ne.s32.totalorder %s68, %s70
    %p74 = scmp.eq.s32.totalorder %s13, 0
    %p75 = por %p73, %p74
    %p76 = scmp.ne.s32.totalorder %s68, %s70
    %p77 = scmp.eq.s32.totalorder %s18, 1
    %p78 = por %p76, %p77
    %p79 = scmp.ne.s32.totalorder %s70, %s71
    %p80 = scmp.eq.s32.totalorder %s18, 0
    %p81 = por %p79, %p80
    %p82 = scmp.ne.s32.totalorder %s70, %s71
    %p83 = scmp.eq.s32.totalorder %s19, 1
    %p84 = por %p82, %p83
    %p86 = scmp.ne.s32.totalorder %s71, %s85
    %p87 = scmp.eq.s32.totalorder %s19, 0
    %p88 = por %p86, %p87
    %s90 = sadd.s32 %s89, 1
    %p93 = scmp.eq.s32.totalorder %s13, 1
    %p94 = scmp.ne.s32.totalorder %s89, %s91
    %p95 = scmp.eq.s32.totalorder %s13, 0
    %p96 = por %p94, %p95
    %p97 = scmp.ne.s32.totalorder %s89, %s91
    %p98 = scmp.eq.s32.totalorder %s18, 1
    %p99 = por %p97, %p98
    %p100 = scmp.ne.s32.totalorder %s91, %s92
    %p101 = scmp.eq.s32.totalorder %s18, 0
    %p102 = por %p100, %p101
    %p103 = scmp.ne.s32.totalorder %s91, %s92
    %p104 = scmp.eq.s32.totalorder %s19, 1
    %p105 = por %p103, %p104
    %p107 = scmp.ne.s32.totalorder %s92, %s106
    %p108 = scmp.eq.s32.totalorder %s19, 0
    %p109 = por %p107, %p108
    %s111 = sadd.s32 %s110, 1
    %p114 = scmp.eq.s32.totalorder %s13, 1
    %p115 = scmp.ne.s32.totalorder %s110, %s112
    %p116 = scmp.eq.s32.totalorder %s13, 0
    %p117 = por %p115, %p116
    %p118 = scmp.ne.s32.totalorder %s110, %s112
    %p119 = scmp.eq.s32.totalorder %s18, 1
    %p120 = por %p118, %p119
    %p121 = scmp.ne.s32.totalorder %s112, %s113
    %p122 = scmp.eq.s32.totalorder %s18, 0
    %p123 = por %p121, %p122
    %p124 = scmp.ne.s32.totalorder %s112, %s113
    %p125 = scmp.eq.s32.totalorder %s19, 1
    %p126 = por %p124, %p125
    %p128 = scmp.ne.s32.totalorder %s113, %s127
    %p129 = scmp.eq.s32.totalorder %s19, 0
    %p130 = por %p128, %p129
    %s132 = sadd.s32 %s131, 1
    %p135 = scmp.eq.s32.totalorder %s13, 1
    %p136 = scmp.ne.s32.totalorder %s131, %s133
    %p137 = scmp.eq.s32.totalorder %s13, 0
    %p138 = por %p136, %p137
    %p139 = scmp.ne.s32.totalorder %s131, %s133
    %p140 = scmp.eq.s32.totalorder %s18, 1
    %p141 = por %p139, %p140
    %p142 = scmp.ne.s32.totalorder %s133, %s134
    %p143 = scmp.eq.s32.totalorder %s18, 0
    %p144 = por %p142, %p143
    %p145 = scmp.ne.s32.totalorder %s133, %s134
    %p146 = scmp.eq.s32.totalorder %s19, 1
    %p147 = por %p145, %p146
    %p149 = scmp.ne.s32.totalorder %s134, %s148
    %p150 = scmp.eq.s32.totalorder %s19, 0
    %p151 = por %p149, %p150
    %s153 = sadd.s32 %s152, 1
    %p156 = scmp.eq.s32.totalorder %s13, 1
    %p157 = scmp.ne.s32.totalorder %s152, %s154
    %p158 = scmp.eq.s32.totalorder %s13, 0
    %p159 = por %p157, %p158
    %p160 = scmp.ne.s32.totalorder %s152, %s154
    %p161 = scmp.eq.s32.totalorder %s18, 1
    %p162 = por %p160, %p161
    %p163 = scmp.ne.s32.totalorder %s154, %s155
    %p164 = scmp.eq.s32.totalorder %s18, 0
    %p165 = por %p163, %p164
    %p166 = scmp.ne.s32.totalorder %s154, %s155
    %p167 = scmp.eq.s32.totalorder %s19, 1
    %p168 = por %p166, %p167
    %p170 = scmp.ne.s32.totalorder %s155, %s169
    %p171 = scmp.eq.s32.totalorder %s19, 0
    %p172 = por %p170, %p171
    %s173 = ssub.s32 %s13, %s20
    %p174 = scmp.eq.s32.totalorder %s173, 0
    %s176 = sadd.s32 %s175, 1
    %s177 = scalar_select %p174, %s175, %s176
    %p180 = pneg %p174
    %p181 = scmp.eq.s32.totalorder %s13, 1
    %p182 = por %p180, %p181
    %p183 = scmp.ne.s32.totalorder %s175, %s178
    %p184 = scmp.eq.s32.totalorder %s13, 0
    %p185 = por %p183, %p184
    %p186 = scmp.ne.s32.totalorder %s175, %s178
    %p187 = scmp.eq.s32.totalorder %s18, 1
    %p188 = por %p186, %p187
    %p189 = scmp.ne.s32.totalorder %s178, %s179
    %p190 = scmp.eq.s32.totalorder %s18, 0
    %p191 = por %p189, %p190
    %p192 = scmp.ne.s32.totalorder %s178, %s179
    %p193 = scmp.eq.s32.totalorder %s19, 1
    %p194 = por %p192, %p193
    %p196 = scmp.ne.s32.totalorder %s179, %s195
    %p197 = scmp.eq.s32.totalorder %s19, 0
    %p198 = por %p196, %p197
    %p199 = scmp.le.s32.totalorder 1, %s13
    %p200 = scmp.lt.s32.totalorder %s13, 3
    %p201 = pnand %p199, %p200
    %p202 = pneg %p201
    // Predicated region
    $region9: #{mvit2_block_forward.1} parent=5 // pred_check
      _
    $region10: #{mvit2_block_forward.1} parent=5 // pred_check_branch
      %204 = sbr.rel (%p201) target = $region12
    $region11: #{mvit2_block_forward.1} parent=5 // pred_region
      %s205 = ssub.s32 %s13, 1
      // Predicated region
      $region13: #{mvit2_block_forward.1} parent=11 // pred_check
        %p206 = pneg %p60
      $region14: #{mvit2_block_forward.1} parent=11 // pred_check_branch
        %208 = sbr.rel (%p206) target = $region16
      $region15: #{mvit2_block_forward.1} parent=11 // pred_region
        _
      $region16: #{mvit2_block_forward.1} parent=11 // pred_fallthru
        _
      // Predicated region
      $region17: #{mvit2_block_forward.1} parent=11 // pred_check
        %p209 = pneg %p81
      $region18: #{mvit2_block_forward.1} parent=11 // pred_check_branch
        %211 = sbr.rel (%p209) target = $region20
      $region19: #{mvit2_block_forward.1} parent=11 // pred_region
        _
      $region20: #{mvit2_block_forward.1} parent=11 // pred_fallthru
        _
      // Predicated region
      $region21: #{mvit2_block_forward.1} parent=11 // pred_check
        %p212 = pneg %p102
      $region22: #{mvit2_block_forward.1} parent=11 // pred_check_branch
        %214 = sbr.rel (%p212) target = $region24
      $region23: #{mvit2_block_forward.1} parent=11 // pred_region
        _
      $region24: #{mvit2_block_forward.1} parent=11 // pred_fallthru
        _
      // Predicated region
      $region25: #{mvit2_block_forward.1} parent=11 // pred_check
        %p215 = pneg %p123
      $region26: #{mvit2_block_forward.1} parent=11 // pred_check_branch
        %217 = sbr.rel (%p215) target = $region28
      $region27: #{mvit2_block_forward.1} parent=11 // pred_region
        _
      $region28: #{mvit2_block_forward.1} parent=11 // pred_fallthru
        _
      // Predicated region
      $region29: #{mvit2_block_forward.1} parent=11 // pred_check
        %p218 = pneg %p144
      $region30: #{mvit2_block_forward.1} parent=11 // pred_check_branch
        %220 = sbr.rel (%p218) target = $region32
      $region31: #{mvit2_block_forward.1} parent=11 // pred_region
        _
      $region32: #{mvit2_block_forward.1} parent=11 // pred_fallthru
        _
      // Predicated region
      $region33: #{mvit2_block_forward.1} parent=11 // pred_check
        %p221 = pneg %p165
      $region34: #{mvit2_block_forward.1} parent=11 // pred_check_branch
        %223 = sbr.rel (%p221) target = $region36
      $region35: #{mvit2_block_forward.1} parent=11 // pred_region
        _
      $region36: #{mvit2_block_forward.1} parent=11 // pred_fallthru
        _
    $region12: #{mvit2_block_forward.1} parent=5 // pred_fallthru
      _
    %p224 = scmp.lt.s32.totalorder %s13, 2
    // Predicated region
    $region37: #{mvit2_block_forward.1} parent=5 // pred_check
      %p225 = pneg %p224
    $region38: #{mvit2_block_forward.1} parent=5 // pred_check_branch
      %227 = sbr.rel (%p225) target = $region40
    $region39: #{mvit2_block_forward.1} parent=5 // pred_region
      // Predicated region
      $region41: #{mvit2_block_forward.1} parent=39 // pred_check
        %p228 = pneg %p33
      $region42: #{mvit2_block_forward.1} parent=39 // pred_check_branch
        %230 = sbr.rel (%p228) target = $region44
      $region43: #{mvit2_block_forward.1} parent=39 // pred_region
        %p231 = scmp.lt.s32.totalorder %s13, 1
        %s232 = scalar_select %p231, %s13, 1
        %s233 = smul.addr %s232, 2
        %s234 = smul.addr %s233, 8
        %s235 = scalar_lea.vmem %s0, %s234
      $region44: #{mvit2_block_forward.1} parent=39 // pred_fallthru
        _
    $region40: #{mvit2_block_forward.1} parent=5 // pred_fallthru
      _
    %p236 = scmp.le.s32.totalorder 1, %s13
    %p237 = scmp.lt.s32.totalorder %s13, 3
    %p238 = pnand %p236, %p237
    %p239 = pneg %p238
    // Predicated region
    $region45: #{mvit2_block_forward.1} parent=5 // pred_check
      _
    $region46: #{mvit2_block_forward.1} parent=5 // pred_check_branch
      %241 = sbr.rel (%p238) target = $region48
    $region47: #{mvit2_block_forward.1} parent=5 // pred_region
      %s242 = ssub.s32 %s13, 1
      %p243 = scmp.lt.s32.totalorder %s18, 1
      %s244 = scalar_select %p243, %s18, 1
      %s245 = smul.addr %s244, 2
      %s246 = smul.addr %s245, 8
      %s247 = scalar_lea.vmem %s0, %s246
      %p248 = pneg %p39
      %p249 = pneg %p36
      %p250 = pneg %p60
      %p251 = pneg %p57
      %p252 = pneg %p81
      %p253 = pneg %p78
      %p254 = pneg %p102
      %p255 = pneg %p99
      %p256 = pneg %p123
      %p257 = pneg %p120
      %p258 = pneg %p144
      %p259 = pneg %p141
      %p260 = pneg %p165
      %p261 = pneg %p162
      %p262 = pneg %p191
      %p263 = pneg %p188
      %p264 = scmp.lt.s32.totalorder %s18, 1
      %s265 = scalar_select %p264, %s18, 1
      %s266 = smul.addr %s265, 2
      %s267 = smul.addr %s266, 8
      %s268 = scalar_lea.vmem %s7, %s267
      %p269 = scmp.lt.s32.totalorder %s18, 1
      %s270 = scalar_select %p269, %s18, 1
      %s271 = smul.addr %s270, 2
      %s272 = smul.addr %s271, 8
      %s273 = scalar_lea.vmem %s0, %s272
      %p274 = scmp.lt.s32.totalorder %s18, 1
      %s275 = scalar_select %p274, %s18, 1
      %s276 = smul.addr %s275, 2
      %s277 = smul.addr %s276, 8
      %s278 = scalar_lea.vmem %s7, %s277
      %v279 = vld [vmem:[%s273] sm:$0xff]
      %v280 = vld [vmem:[%s273 + $0x8] sm:$0xff]
      %v281 = vld [vmem:[%s1] sm:$0x3]
      %v282 = vld [vmem:[%s5] sm:$0xff]
      %v283 = vld [vmem:[%s6] sm:$0xff]
      %285 = vset.pattern.permute.xlu0 0
      %286 = vperm.xlu0 %285, %v283
      %v287 = vpop.permute.xlu0 %286
      %vm289 = vcmask 64512
      %v291 = vsel %vm289, %v282, 0
      %293 = vmatpush.msra.mxu0 0.0
      %294 = vmatpush.msra.mxu0 0.0
      %295 = vmatpush.msra.mxu0 0.0
      %296 = vmatpush.msra.mxu0 0.0
      %297 = vmatpush.msra.mxu0 0.0
      %298 = vmatpush.msra.mxu0 0.0
      %299 = vmatpush.msra.mxu0 0.0
      %300 = vmatpush.msra.mxu0 0.0
      %301 = vmatpush.msra.mxu0 0.0
      %302 = vmatpush.msra.mxu0 0.0
      %303 = vmatpush.msra.mxu0 0.0
      %304 = vmatpush.msra.mxu0 0.0
      %305 = vmatpush.msra.mxu0 0.0
      %306 = vmatpush.msra.mxu0 0.0
      %307 = vmatpush.msra.mxu0 0.0
      %308 = vmatpush.msra.mxu0 %v279
      %309 = vmatmul.f32.gmra.mxu0 %v291
      %v310 = vpop.f32.mrf.mxu0
      %v311 = vadd.f32 %v287, %v310
      %312 = vdwg.mxu0
      %313 = vmatpush.msra.mxu0 0.0
      %314 = vmatpush.msra.mxu0 0.0
      %315 = vmatpush.msra.mxu0 0.0
      %316 = vmatpush.msra.mxu0 0.0
      %317 = vmatpush.msra.mxu0 0.0
      %318 = vmatpush.msra.mxu0 0.0
      %319 = vmatpush.msra.mxu0 0.0
      %320 = vmatpush.msra.mxu0 0.0
      %321 = vmatpush.msra.mxu0 0.0
      %322 = vmatpush.msra.mxu0 0.0
      %323 = vmatpush.msra.mxu0 0.0
      %324 = vmatpush.msra.mxu0 0.0
      %325 = vmatpush.msra.mxu0 0.0
      %326 = vmatpush.msra.mxu0 0.0
      %327 = vmatpush.msra.mxu0 0.0
      %328 = vmatpush.msra.mxu0 %v280
      %329 = vmatmul.f32.gmra.mxu0 %v291
      %v330 = vpop.f32.mrf.mxu0
      %v331 = vadd.f32 %v287, %v330
      %332 = vdwg.mxu0
      %v333 = vld [vmem:[%s2] sm:$0xff]
      %v334 = vld [vmem:[%s2 + $0x8] sm:$0xff]
      %v335 = vld [vmem:[%s2 + $0x10] sm:$0xff]
      %v336 = vld [vmem:[%s2 + $0x18] sm:$0xff]
      %v337 = vld [vmem:[%s2 + $0x20] sm:$0xff]
      %v338 = vld [vmem:[%s2 + $0x28] sm:$0xff]
      %v339 = vld [vmem:[%s2 + $0x30] sm:$0xff]
      %v340 = vld [vmem:[%s2 + $0x38] sm:$0xff]
      %v341 = vld [vmem:[%s2 + $0x40] sm:$0xff]
      %v342 = vld [vmem:[%s2 + $0x48] sm:$0xff]
      %v343 = vld [vmem:[%s2 + $0x50] sm:$0xff]
      %v344 = vld [vmem:[%s2 + $0x58] sm:$0xff]
      %v345 = vld [vmem:[%s2 + $0x60] sm:$0xff]
      %v346 = vld [vmem:[%s2 + $0x68] sm:$0xff]
      %v347 = vld [vmem:[%s2 + $0x70] sm:$0xff]
      %v348 = vld [vmem:[%s2 + $0x78] sm:$0xff]
      %v349 = vld [vmem:[%s2 + $0x80] sm:$0xff]
      %v350 = vld [vmem:[%s2 + $0x88] sm:$0xff]
      %v351 = vld [vmem:[%s2 + $0x90] sm:$0xff]
      %v352 = vld [vmem:[%s2 + $0x98] sm:$0xff]
      %v353 = vld [vmem:[%s2 + $0xa0] sm:$0xff]
      %v354 = vld [vmem:[%s2 + $0xa8] sm:$0xff]
      %v355 = vld [vmem:[%s2 + $0xb0] sm:$0xff]
      %v356 = vld [vmem:[%s2 + $0xb8] sm:$0xff]
      %v357 = vld [vmem:[%s2 + $0xc0] sm:$0xff]
      %v358 = vld [vmem:[%s2 + $0xc8] sm:$0xff]
      %v359 = vld [vmem:[%s2 + $0xd0] sm:$0xff]
      %v360 = vld [vmem:[%s2 + $0xd8] sm:$0xff]
      %v361 = vld [vmem:[%s2 + $0xe0] sm:$0xff]
      %v362 = vld [vmem:[%s2 + $0xe8] sm:$0xff]
      %v363 = vld [vmem:[%s2 + $0xf0] sm:$0xff]
      %v364 = vld [vmem:[%s2 + $0xf8] sm:$0xff]
      %v365 = vld [vmem:[%s2 + $0x100] sm:$0xff]
      %v366 = vld [vmem:[%s2 + $0x108] sm:$0xff]
      %v367 = vld [vmem:[%s2 + $0x110] sm:$0xff]
      %v368 = vld [vmem:[%s2 + $0x118] sm:$0xff]
      %v369 = vld [vmem:[%s2 + $0x120] sm:$0xff]
      %v370 = vld [vmem:[%s2 + $0x128] sm:$0xff]
      %v371 = vld [vmem:[%s2 + $0x130] sm:$0xff]
      %v372 = vld [vmem:[%s2 + $0x138] sm:$0xff]
      %v373 = vld [vmem:[%s2 + $0x140] sm:$0xff]
      %v374 = vld [vmem:[%s2 + $0x148] sm:$0xff]
      %v375 = vld [vmem:[%s2 + $0x150] sm:$0xff]
      %v376 = vld [vmem:[%s2 + $0x158] sm:$0xff]
      %v377 = vld [vmem:[%s2 + $0x160] sm:$0xff]
      %v378 = vld [vmem:[%s2 + $0x168] sm:$0xff]
      %v379 = vld [vmem:[%s2 + $0x170] sm:$0xff]
      %v380 = vld [vmem:[%s2 + $0x178] sm:$0xff]
      %v381 = vld [vmem:[%s2 + $0x180] sm:$0xff]
      %v382 = vld [vmem:[%s2 + $0x188] sm:$0xff]
      %v383 = vld [vmem:[%s2 + $0x190] sm:$0xff]
      %v384 = vld [vmem:[%s2 + $0x198] sm:$0xff]
      %v385 = vld [vmem:[%s2 + $0x1a0] sm:$0xff]
      %v386 = vld [vmem:[%s2 + $0x1a8] sm:$0xff]
      %v387 = vld [vmem:[%s2 + $0x1b0] sm:$0xff]
      %v388 = vld [vmem:[%s2 + $0x1b8] sm:$0xff]
      %v389 = vld [vmem:[%s2 + $0x1c0] sm:$0xff]
      %v390 = vld [vmem:[%s2 + $0x1c8] sm:$0xff]
      %v391 = vld [vmem:[%s2 + $0x1d0] sm:$0xff]
      %v392 = vld [vmem:[%s2 + $0x1d8] sm:$0xff]
      %v393 = vld [vmem:[%s2 + $0x1e0] sm:$0xff]
      %v394 = vld [vmem:[%s2 + $0x1e8] sm:$0xff]
      %v395 = vld [vmem:[%s2 + $0x1f0] sm:$0xff]
      %v396 = vld [vmem:[%s2 + $0x1f8] sm:$0xff]
      %v397 = vld [vmem:[%s5 + $0x10] sm:$0xff]
      %v398 = vld [vmem:[%s5 + $0x20] sm:$0xff]
      %v399 = vld [vmem:[%s5 + $0x30] sm:$0xff]
      %v400 = vld [vmem:[%s6 + $0x8] sm:$0xff]
      %v401 = vld [vmem:[%s6 + $0x10] sm:$0xff]
      %v402 = vld [vmem:[%s6 + $0x18] sm:$0xff]
      %404 = vset.pattern.permute.xlu0 0
      %405 = vperm.xlu0 %404, %v400
      %v406 = vpop.permute.xlu0 %405
      %409 = vset.pattern.permute.xlu0 0
      %410 = vperm.xlu0 %409, %v401
      %v411 = vpop.permute.xlu0 %410
      %414 = vset.pattern.permute.xlu0 0
      %415 = vperm.xlu0 %414, %v402
      %v416 = vpop.permute.xlu0 %415
      %v419 = vsel %vm289, %v397, 0
      %v422 = vsel %vm289, %v398, 0
      %v425 = vsel %vm289, %v399, 0
      %427 = vmatpush.msra.mxu0 0.0
      %428 = vmatpush.msra.mxu0 0.0
      %429 = vmatpush.msra.mxu0 0.0
      %430 = vmatpush.msra.mxu0 0.0
      %431 = vmatpush.msra.mxu0 0.0
      %432 = vmatpush.msra.mxu0 0.0
      %433 = vmatpush.msra.mxu0 0.0
      %434 = vmatpush.msra.mxu0 0.0
      %435 = vmatpush.msra.mxu0 0.0
      %436 = vmatpush.msra.mxu0 0.0
      %437 = vmatpush.msra.mxu0 0.0
      %438 = vmatpush.msra.mxu0 0.0
      %439 = vmatpush.msra.mxu0 0.0
      %440 = vmatpush.msra.mxu0 0.0
      %441 = vmatpush.msra.mxu0 0.0
      %442 = vmatpush.msra.mxu0 %v311
      %443 = vmatmul.f32.gmra.mxu0 %v419
      %v444 = vpop.f32.mrf.mxu0
      %v445 = vadd.f32 %v406, %v444
      %446 = vmatmul.f32.gmra.mxu0 %v422
      %v447 = vpop.f32.mrf.mxu0
      %v448 = vadd.f32 %v411, %v447
      %449 = vmatmul.f32.gmra.mxu0 %v425
      %v450 = vpop.f32.mrf.mxu0
      %v451 = vadd.f32 %v416, %v450
      %452 = vdwg.mxu0
      %453 = vmatpush.msra.mxu0 0.0
      %454 = vmatpush.msra.mxu0 0.0
      %455 = vmatpush.msra.mxu0 0.0
      %456 = vmatpush.msra.mxu0 0.0
      %457 = vmatpush.msra.mxu0 0.0
      %458 = vmatpush.msra.mxu0 0.0
      %459 = vmatpush.msra.mxu0 0.0
      %460 = vmatpush.msra.mxu0 0.0
      %461 = vmatpush.msra.mxu0 0.0
      %462 = vmatpush.msra.mxu0 0.0
      %463 = vmatpush.msra.mxu0 0.0
      %464 = vmatpush.msra.mxu0 0.0
      %465 = vmatpush.msra.mxu0 0.0
      %466 = vmatpush.msra.mxu0 0.0
      %467 = vmatpush.msra.mxu0 0.0
      %468 = vmatpush.msra.mxu0 %v331
      %469 = vmatmul.f32.gmra.mxu0 %v419
      %v470 = vpop.f32.mrf.mxu0
      %v471 = vadd.f32 %v406, %v470
      %472 = vmatmul.f32.gmra.mxu0 %v422
      %v473 = vpop.f32.mrf.mxu0
      %v474 = vadd.f32 %v411, %v473
      %475 = vmatmul.f32.gmra.mxu0 %v425
      %v476 = vpop.f32.mrf.mxu0
      %v477 = vadd.f32 %v416, %v476
      %478 = vdwg.mxu0
      %479 = vxpose.xlu0.b32.start [1/16] %v445, 128
      %480 = vxpose.xlu0.b32.cont [2/16] 0.0, 128
      %481 = vxpose.xlu0.b32.cont [3/16] 0.0, 128
      %482 = vxpose.xlu0.b32.cont [4/16] 0.0, 128
      %483 = vxpose.xlu0.b32.cont [5/16] 0.0, 128
      %484 = vxpose.xlu0.b32.cont [6/16] 0.0, 128
      %485 = vxpose.xlu0.b32.cont [7/16] 0.0, 128
      %486 = vxpose.xlu0.b32.cont [8/16] 0.0, 128
      %487 = vxpose.xlu0.b32.cont [9/16] 0.0, 128
      %488 = vxpose.xlu0.b32.cont [10/16] 0.0, 128
      %489 = vxpose.xlu0.b32.cont [11/16] 0.0, 128
      %490 = vxpose.xlu0.b32.cont [12/16] 0.0, 128
      %491 = vxpose.xlu0.b32.cont [13/16] 0.0, 128
      %492 = vxpose.xlu0.b32.cont [14/16] 0.0, 128
      %493 = vxpose.xlu0.b32.cont [15/16] 0.0, 128
      %494 = vxpose.xlu0.b32.end [16/16] 0.0, 128
      %v495 = vpop.trf.xlu0
      %v496 = vpop.trf.xlu0
      %v497 = vpop.trf.xlu0
      %v498 = vpop.trf.xlu0
      %v499 = vpop.trf.xlu0
      %v500 = vpop.trf.xlu0
      %v501 = vpop.trf.xlu0
      %v502 = vpop.trf.xlu0
      %v503 = vpop.trf.xlu0
      %v504 = vpop.trf.xlu0
      %v505 = vpop.trf.xlu0
      %v506 = vpop.trf.xlu0
      %v507 = vpop.trf.xlu0
      %v508 = vpop.trf.xlu0
      %v509 = vpop.trf.xlu0
      %v510 = vpop.trf.xlu0
      %511 = vxpose.xlu0.b32.start [1/16] %v471, 128
      %512 = vxpose.xlu0.b32.cont [2/16] 0.0, 128
      %513 = vxpose.xlu0.b32.cont [3/16] 0.0, 128
      %514 = vxpose.xlu0.b32.cont [4/16] 0.0, 128
      %515 = vxpose.xlu0.b32.cont [5/16] 0.0, 128
      %516 = vxpose.xlu0.b32.cont [6/16] 0.0, 128
      %517 = vxpose.xlu0.b32.cont [7/16] 0.0, 128
      %518 = vxpose.xlu0.b32.cont [8/16] 0.0, 128
      %519 = vxpose.xlu0.b32.cont [9/16] 0.0, 128
      %520 = vxpose.xlu0.b32.cont [10/16] 0.0, 128
      %521 = vxpose.xlu0.b32.cont [11/16] 0.0, 128
      %522 = vxpose.xlu0.b32.cont [12/16] 0.0, 128
      %523 = vxpose.xlu0.b32.cont [13/16] 0.0, 128
      %524 = vxpose.xlu0.b32.cont [14/16] 0.0, 128
      %525 = vxpose.xlu0.b32.cont [15/16] 0.0, 128
      %526 = vxpose.xlu0.b32.end [16/16] 0.0, 128
      %v527 = vpop.trf.xlu0
      %v528 = vpop.trf.xlu0
      %v529 = vpop.trf.xlu0
      %v530 = vpop.trf.xlu0
      %v531 = vpop.trf.xlu0
      %v532 = vpop.trf.xlu0
      %v533 = vpop.trf.xlu0
      %v534 = vpop.trf.xlu0
      %v535 = vpop.trf.xlu0
      %v536 = vpop.trf.xlu0
      %v537 = vpop.trf.xlu0
      %v538 = vpop.trf.xlu0
      %v539 = vpop.trf.xlu0
      %v540 = vpop.trf.xlu0
      %v541 = vpop.trf.xlu0
      %v542 = vpop.trf.xlu0
      %v544 = vsel %vm289, %v495, 0
      %v547 = vsel %vm289, %v496, 0
      %v550 = vsel %vm289, %v497, 0
      %v553 = vsel %vm289, %v498, 0
      %v556 = vsel %vm289, %v499, 0
      %v559 = vsel %vm289, %v500, 0
      %v562 = vsel %vm289, %v501, 0
      %v565 = vsel %vm289, %v502, 0
      %v568 = vsel %vm289, %v503, 0
      %v571 = vsel %vm289, %v504, 0
      %v574 = vsel %vm289, %v505, 0
      %v577 = vsel %vm289, %v506, 0
      %v580 = vsel %vm289, %v507, 0
      %v583 = vsel %vm289, %v508, 0
      %v586 = vsel %vm289, %v509, 0
      %v589 = vsel %vm289, %v510, 0
      %v592 = vsel %vm289, %v527, 0
      %v595 = vsel %vm289, %v528, 0
      %v598 = vsel %vm289, %v529, 0
      %v601 = vsel %vm289, %v530, 0
      %v604 = vsel %vm289, %v531, 0
      %v607 = vsel %vm289, %v532, 0
      %v610 = vsel %vm289, %v533, 0
      %v613 = vsel %vm289, %v534, 0
      %v616 = vsel %vm289, %v535, 0
      %v619 = vsel %vm289, %v536, 0
      %v622 = vsel %vm289, %v537, 0
      %v625 = vsel %vm289, %v538, 0
      %v628 = vsel %vm289, %v539, 0
      %v631 = vsel %vm289, %v540, 0
      %v634 = vsel %vm289, %v541, 0
      %v637 = vsel %vm289, %v542, 0
      %639 = vmatpush.msra.mxu0 0.0
      %640 = vmatpush.msra.mxu0 0.0
      %641 = vmatpush.msra.mxu0 0.0
      %642 = vmatpush.msra.mxu0 0.0
      %643 = vmatpush.msra.mxu0 0.0
      %644 = vmatpush.msra.mxu0 0.0
      %645 = vmatpush.msra.mxu0 0.0
      %646 = vmatpush.msra.mxu0 0.0
      %647 = vmatpush.msra.mxu0 0.0
      %648 = vmatpush.msra.mxu0 0.0
      %649 = vmatpush.msra.mxu0 0.0
      %650 = vmatpush.msra.mxu0 0.0
      %651 = vmatpush.msra.mxu0 0.0
      %652 = vmatpush.msra.mxu0 0.0
      %653 = vmatpush.msra.mxu0 0.0
      %654 = vmatpush.msra.mxu0 %v448
      %655 = vmatmul.f32.gmra.mxu0 %v544
      %v656 = vpop.f32.mrf.mxu0
      %v657 = vadd.f32 %v333, %v656
      %658 = vmatmul.f32.gmra.mxu0 %v547
      %v659 = vpop.f32.mrf.mxu0
      %v660 = vadd.f32 %v335, %v659
      %661 = vmatmul.f32.gmra.mxu0 %v550
      %v662 = vpop.f32.mrf.mxu0
      %v663 = vadd.f32 %v337, %v662
      %664 = vmatmul.f32.gmra.mxu0 %v553
      %v665 = vpop.f32.mrf.mxu0
      %v666 = vadd.f32 %v339, %v665
      %667 = vmatmul.f32.gmra.mxu0 %v556
      %v668 = vpop.f32.mrf.mxu0
      %v669 = vadd.f32 %v341, %v668
      %670 = vmatmul.f32.gmra.mxu0 %v559
      %v671 = vpop.f32.mrf.mxu0
      %v672 = vadd.f32 %v343, %v671
      %673 = vmatmul.f32.gmra.mxu0 %v562
      %v674 = vpop.f32.mrf.mxu0
      %v675 = vadd.f32 %v345, %v674
      %676 = vmatmul.f32.gmra.mxu0 %v565
      %v677 = vpop.f32.mrf.mxu0
      %v678 = vadd.f32 %v347, %v677
      %679 = vmatmul.f32.gmra.mxu0 %v568
      %v680 = vpop.f32.mrf.mxu0
      %v681 = vadd.f32 %v349, %v680
      %682 = vmatmul.f32.gmra.mxu0 %v571
      %v683 = vpop.f32.mrf.mxu0
      %v684 = vadd.f32 %v351, %v683
      %685 = vmatmul.f32.gmra.mxu0 %v574
      %v686 = vpop.f32.mrf.mxu0
      %v687 = vadd.f32 %v353, %v686
      %688 = vmatmul.f32.gmra.mxu0 %v577
      %v689 = vpop.f32.mrf.mxu0
      %v690 = vadd.f32 %v355, %v689
      %691 = vmatmul.f32.gmra.mxu0 %v580
      %v692 = vpop.f32.mrf.mxu0
      %v693 = vadd.f32 %v357, %v692
      %694 = vmatmul.f32.gmra.mxu0 %v583
      %v695 = vpop.f32.mrf.mxu0
      %v696 = vadd.f32 %v359, %v695
      %697 = vmatmul.f32.gmra.mxu0 %v586
      %v698 = vpop.f32.mrf.mxu0
      %v699 = vadd.f32 %v361, %v698
      %700 = vmatmul.f32.gmra.mxu0 %v589
      %v701 = vpop.f32.mrf.mxu0
      %v702 = vadd.f32 %v363, %v701
      %703 = vmatmul.f32.gmra.mxu0 %v592
      %v704 = vpop.f32.mrf.mxu0
      %v705 = vadd.f32 %v365, %v704
      %706 = vmatmul.f32.gmra.mxu0 %v595
      %v707 = vpop.f32.mrf.mxu0
      %v708 = vadd.f32 %v367, %v707
      %709 = vmatmul.f32.gmra.mxu0 %v598
      %v710 = vpop.f32.mrf.mxu0
      %v711 = vadd.f32 %v369, %v710
      %712 = vmatmul.f32.gmra.mxu0 %v601
      %v713 = vpop.f32.mrf.mxu0
      %v714 = vadd.f32 %v371, %v713
      %715 = vmatmul.f32.gmra.mxu0 %v604
      %v716 = vpop.f32.mrf.mxu0
      %v717 = vadd.f32 %v373, %v716
      %718 = vmatmul.f32.gmra.mxu0 %v607
      %v719 = vpop.f32.mrf.mxu0
      %v720 = vadd.f32 %v375, %v719
      %721 = vmatmul.f32.gmra.mxu0 %v610
      %v722 = vpop.f32.mrf.mxu0
      %v723 = vadd.f32 %v377, %v722
      %724 = vmatmul.f32.gmra.mxu0 %v613
      %v725 = vpop.f32.mrf.mxu0
      %v726 = vadd.f32 %v379, %v725
      %727 = vmatmul.f32.gmra.mxu0 %v616
      %v728 = vpop.f32.mrf.mxu0
      %v729 = vadd.f32 %v381, %v728
      %730 = vmatmul.f32.gmra.mxu0 %v619
      %v731 = vpop.f32.mrf.mxu0
      %v732 = vadd.f32 %v383, %v731
      %733 = vmatmul.f32.gmra.mxu0 %v622
      %v734 = vpop.f32.mrf.mxu0
      %v735 = vadd.f32 %v385, %v734
      %736 = vmatmul.f32.gmra.mxu0 %v625
      %v737 = vpop.f32.mrf.mxu0
      %v738 = vadd.f32 %v387, %v737
      %739 = vmatmul.f32.gmra.mxu0 %v628
      %v740 = vpop.f32.mrf.mxu0
      %v741 = vadd.f32 %v389, %v740
      %742 = vmatmul.f32.gmra.mxu0 %v631
      %v743 = vpop.f32.mrf.mxu0
      %v744 = vadd.f32 %v391, %v743
      %745 = vmatmul.f32.gmra.mxu0 %v634
      %v746 = vpop.f32.mrf.mxu0
      %v747 = vadd.f32 %v393, %v746
      %748 = vmatmul.f32.gmra.mxu0 %v637
      %v749 = vpop.f32.mrf.mxu0
      %v750 = vadd.f32 %v395, %v749
      %751 = vdwg.mxu0
      %752 = vmatpush.msra.mxu0 0.0
      %753 = vmatpush.msra.mxu0 0.0
      %754 = vmatpush.msra.mxu0 0.0
      %755 = vmatpush.msra.mxu0 0.0
      %756 = vmatpush.msra.mxu0 0.0
      %757 = vmatpush.msra.mxu0 0.0
      %758 = vmatpush.msra.mxu0 0.0
      %759 = vmatpush.msra.mxu0 0.0
      %760 = vmatpush.msra.mxu0 0.0
      %761 = vmatpush.msra.mxu0 0.0
      %762 = vmatpush.msra.mxu0 0.0
      %763 = vmatpush.msra.mxu0 0.0
      %764 = vmatpush.msra.mxu0 0.0
      %765 = vmatpush.msra.mxu0 0.0
      %766 = vmatpush.msra.mxu0 0.0
      %767 = vmatpush.msra.mxu0 %v474
      %768 = vmatmul.f32.gmra.mxu0 %v544
      %v769 = vpop.f32.mrf.mxu0
      %v770 = vadd.f32 %v334, %v769
      %771 = vmatmul.f32.gmra.mxu0 %v547
      %v772 = vpop.f32.mrf.mxu0
      %v773 = vadd.f32 %v336, %v772
      %774 = vmatmul.f32.gmra.mxu0 %v550
      %v775 = vpop.f32.mrf.mxu0
      %v776 = vadd.f32 %v338, %v775
      %777 = vmatmul.f32.gmra.mxu0 %v553
      %v778 = vpop.f32.mrf.mxu0
      %v779 = vadd.f32 %v340, %v778
      %780 = vmatmul.f32.gmra.mxu0 %v556
      %v781 = vpop.f32.mrf.mxu0
      %v782 = vadd.f32 %v342, %v781
      %783 = vmatmul.f32.gmra.mxu0 %v559
      %v784 = vpop.f32.mrf.mxu0
      %v785 = vadd.f32 %v344, %v784
      %786 = vmatmul.f32.gmra.mxu0 %v562
      %v787 = vpop.f32.mrf.mxu0
      %v788 = vadd.f32 %v346, %v787
      %789 = vmatmul.f32.gmra.mxu0 %v565
      %v790 = vpop.f32.mrf.mxu0
      %v791 = vadd.f32 %v348, %v790
      %792 = vmatmul.f32.gmra.mxu0 %v568
      %v793 = vpop.f32.mrf.mxu0
      %v794 = vadd.f32 %v350, %v793
      %795 = vmatmul.f32.gmra.mxu0 %v571
      %v796 = vpop.f32.mrf.mxu0
      %v797 = vadd.f32 %v352, %v796
      %798 = vmatmul.f32.gmra.mxu0 %v574
      %v799 = vpop.f32.mrf.mxu0
      %v800 = vadd.f32 %v354, %v799
      %801 = vmatmul.f32.gmra.mxu0 %v577
      %v802 = vpop.f32.mrf.mxu0
      %v803 = vadd.f32 %v356, %v802
      %804 = vmatmul.f32.gmra.mxu0 %v580
      %v805 = vpop.f32.mrf.mxu0
      %v806 = vadd.f32 %v358, %v805
      %807 = vmatmul.f32.gmra.mxu0 %v583
      %v808 = vpop.f32.mrf.mxu0
      %v809 = vadd.f32 %v360, %v808
      %810 = vmatmul.f32.gmra.mxu0 %v586
      %v811 = vpop.f32.mrf.mxu0
      %v812 = vadd.f32 %v362, %v811
      %813 = vmatmul.f32.gmra.mxu0 %v589
      %v814 = vpop.f32.mrf.mxu0
      %v815 = vadd.f32 %v364, %v814
      %816 = vmatmul.f32.gmra.mxu0 %v592
      %v817 = vpop.f32.mrf.mxu0
      %v818 = vadd.f32 %v366, %v817
      %819 = vmatmul.f32.gmra.mxu0 %v595
      %v820 = vpop.f32.mrf.mxu0
      %v821 = vadd.f32 %v368, %v820
      %822 = vmatmul.f32.gmra.mxu0 %v598
      %v823 = vpop.f32.mrf.mxu0
      %v824 = vadd.f32 %v370, %v823
      %825 = vmatmul.f32.gmra.mxu0 %v601
      %v826 = vpop.f32.mrf.mxu0
      %v827 = vadd.f32 %v372, %v826
      %828 = vmatmul.f32.gmra.mxu0 %v604
      %v829 = vpop.f32.mrf.mxu0
      %v830 = vadd.f32 %v374, %v829
      %831 = vmatmul.f32.gmra.mxu0 %v607
      %v832 = vpop.f32.mrf.mxu0
      %v833 = vadd.f32 %v376, %v832
      %834 = vmatmul.f32.gmra.mxu0 %v610
      %v835 = vpop.f32.mrf.mxu0
      %v836 = vadd.f32 %v378, %v835
      %837 = vmatmul.f32.gmra.mxu0 %v613
      %v838 = vpop.f32.mrf.mxu0
      %v839 = vadd.f32 %v380, %v838
      %840 = vmatmul.f32.gmra.mxu0 %v616
      %v841 = vpop.f32.mrf.mxu0
      %v842 = vadd.f32 %v382, %v841
      %843 = vmatmul.f32.gmra.mxu0 %v619
      %v844 = vpop.f32.mrf.mxu0
      %v845 = vadd.f32 %v384, %v844
      %846 = vmatmul.f32.gmra.mxu0 %v622
      %v847 = vpop.f32.mrf.mxu0
      %v848 = vadd.f32 %v386, %v847
      %849 = vmatmul.f32.gmra.mxu0 %v625
      %v850 = vpop.f32.mrf.mxu0
      %v851 = vadd.f32 %v388, %v850
      %852 = vmatmul.f32.gmra.mxu0 %v628
      %v853 = vpop.f32.mrf.mxu0
      %v854 = vadd.f32 %v390, %v853
      %855 = vmatmul.f32.gmra.mxu0 %v631
      %v856 = vpop.f32.mrf.mxu0
      %v857 = vadd.f32 %v392, %v856
      %858 = vmatmul.f32.gmra.mxu0 %v634
      %v859 = vpop.f32.mrf.mxu0
      %v860 = vadd.f32 %v394, %v859
      %861 = vmatmul.f32.gmra.mxu0 %v637
      %v862 = vpop.f32.mrf.mxu0
      %v863 = vadd.f32 %v396, %v862
      %864 = vdwg.mxu0
      %v865 = vmax.f32 %v657, %v770
      %866 = vmax.xlane.f32.xlu0 %v865
      %v867 = vpop.xlane.xlu0 %866
      %v868 = vmax.f32 %v660, %v773
      %869 = vmax.xlane.f32.xlu0 %v868
      %v870 = vpop.xlane.xlu0 %869
      %v871 = vmax.f32 %v663, %v776
      %872 = vmax.xlane.f32.xlu0 %v871
      %v873 = vpop.xlane.xlu0 %872
      %v874 = vmax.f32 %v666, %v779
      %875 = vmax.xlane.f32.xlu0 %v874
      %v876 = vpop.xlane.xlu0 %875
      %v877 = vmax.f32 %v669, %v782
      %878 = vmax.xlane.f32.xlu0 %v877
      %v879 = vpop.xlane.xlu0 %878
      %v880 = vmax.f32 %v672, %v785
      %881 = vmax.xlane.f32.xlu0 %v880
      %v882 = vpop.xlane.xlu0 %881
      %v883 = vmax.f32 %v675, %v788
      %884 = vmax.xlane.f32.xlu0 %v883
      %v885 = vpop.xlane.xlu0 %884
      %v886 = vmax.f32 %v678, %v791
      %887 = vmax.xlane.f32.xlu0 %v886
      %v888 = vpop.xlane.xlu0 %887
      %v889 = vmax.f32 %v681, %v794
      %890 = vmax.xlane.f32.xlu0 %v889
      %v891 = vpop.xlane.xlu0 %890
      %v892 = vmax.f32 %v684, %v797
      %893 = vmax.xlane.f32.xlu0 %v892
      %v894 = vpop.xlane.xlu0 %893
      %v895 = vmax.f32 %v687, %v800
      %896 = vmax.xlane.f32.xlu0 %v895
      %v897 = vpop.xlane.xlu0 %896
      %v898 = vmax.f32 %v690, %v803
      %899 = vmax.xlane.f32.xlu0 %v898
      %v900 = vpop.xlane.xlu0 %899
      %v901 = vmax.f32 %v693, %v806
      %902 = vmax.xlane.f32.xlu0 %v901
      %v903 = vpop.xlane.xlu0 %902
      %v904 = vmax.f32 %v696, %v809
      %905 = vmax.xlane.f32.xlu0 %v904
      %v906 = vpop.xlane.xlu0 %905
      %v907 = vmax.f32 %v699, %v812
      %908 = vmax.xlane.f32.xlu0 %v907
      %v909 = vpop.xlane.xlu0 %908
      %v910 = vmax.f32 %v702, %v815
      %911 = vmax.xlane.f32.xlu0 %v910
      %v912 = vpop.xlane.xlu0 %911
      %v913 = vmax.f32 %v705, %v818
      %914 = vmax.xlane.f32.xlu0 %v913
      %v915 = vpop.xlane.xlu0 %914
      %v916 = vmax.f32 %v708, %v821
      %917 = vmax.xlane.f32.xlu0 %v916
      %v918 = vpop.xlane.xlu0 %917
      %v919 = vmax.f32 %v711, %v824
      %920 = vmax.xlane.f32.xlu0 %v919
      %v921 = vpop.xlane.xlu0 %920
      %v922 = vmax.f32 %v714, %v827
      %923 = vmax.xlane.f32.xlu0 %v922
      %v924 = vpop.xlane.xlu0 %923
      %v925 = vmax.f32 %v717, %v830
      %926 = vmax.xlane.f32.xlu0 %v925
      %v927 = vpop.xlane.xlu0 %926
      %v928 = vmax.f32 %v720, %v833
      %929 = vmax.xlane.f32.xlu0 %v928
      %v930 = vpop.xlane.xlu0 %929
      %v931 = vmax.f32 %v723, %v836
      %932 = vmax.xlane.f32.xlu0 %v931
      %v933 = vpop.xlane.xlu0 %932
      %v934 = vmax.f32 %v726, %v839
      %935 = vmax.xlane.f32.xlu0 %v934
      %v936 = vpop.xlane.xlu0 %935
      %v937 = vmax.f32 %v729, %v842
      %938 = vmax.xlane.f32.xlu0 %v937
      %v939 = vpop.xlane.xlu0 %938
      %v940 = vmax.f32 %v732, %v845
      %941 = vmax.xlane.f32.xlu0 %v940
      %v942 = vpop.xlane.xlu0 %941
      %v943 = vmax.f32 %v735, %v848
      %944 = vmax.xlane.f32.xlu0 %v943
      %v945 = vpop.xlane.xlu0 %944
      %v946 = vmax.f32 %v738, %v851
      %947 = vmax.xlane.f32.xlu0 %v946
      %v948 = vpop.xlane.xlu0 %947
      %v949 = vmax.f32 %v741, %v854
      %950 = vmax.xlane.f32.xlu0 %v949
      %v951 = vpop.xlane.xlu0 %950
      %v952 = vmax.f32 %v744, %v857
      %953 = vmax.xlane.f32.xlu0 %v952
      %v954 = vpop.xlane.xlu0 %953
      %v955 = vmax.f32 %v747, %v860
      %956 = vmax.xlane.f32.xlu0 %v955
      %v957 = vpop.xlane.xlu0 %956
      %v958 = vmax.f32 %v750, %v863
      %959 = vmax.xlane.f32.xlu0 %v958
      %v960 = vpop.xlane.xlu0 %959
      %v961 = vsub.f32 %v657, %v867
      %v962 = vsub.f32 %v770, %v867
      %v963 = vsub.f32 %v660, %v870
      %v964 = vsub.f32 %v773, %v870
      %v965 = vsub.f32 %v663, %v873
      %v966 = vsub.f32 %v776, %v873
      %v967 = vsub.f32 %v666, %v876
      %v968 = vsub.f32 %v779, %v876
      %v969 = vsub.f32 %v669, %v879
      %v970 = vsub.f32 %v782, %v879
      %v971 = vsub.f32 %v672, %v882
      %v972 = vsub.f32 %v785, %v882
      %v973 = vsub.f32 %v675, %v885
      %v974 = vsub.f32 %v788, %v885
      %v975 = vsub.f32 %v678, %v888
      %v976 = vsub.f32 %v791, %v888
      %v977 = vsub.f32 %v681, %v891
      %v978 = vsub.f32 %v794, %v891
      %v979 = vsub.f32 %v684, %v894
      %v980 = vsub.f32 %v797, %v894
      %v981 = vsub.f32 %v687, %v897
      %v982 = vsub.f32 %v800, %v897
      %v983 = vsub.f32 %v690, %v900
      %v984 = vsub.f32 %v803, %v900
      %v985 = vsub.f32 %v693, %v903
      %v986 = vsub.f32 %v806, %v903
      %v987 = vsub.f32 %v696, %v906
      %v988 = vsub.f32 %v809, %v906
      %v989 = vsub.f32 %v699, %v909
      %v990 = vsub.f32 %v812, %v909
      %v991 = vsub.f32 %v702, %v912
      %v992 = vsub.f32 %v815, %v912
      %v993 = vsub.f32 %v705, %v915
      %v994 = vsub.f32 %v818, %v915
      %v995 = vsub.f32 %v708, %v918
      %v996 = vsub.f32 %v821, %v918
      %v997 = vsub.f32 %v711, %v921
      %v998 = vsub.f32 %v824, %v921
      %v999 = vsub.f32 %v714, %v924
      %v1000 = vsub.f32 %v827, %v924
      %v1001 = vsub.f32 %v717, %v927
      %v1002 = vsub.f32 %v830, %v927
      %v1003 = vsub.f32 %v720, %v930
      %v1004 = vsub.f32 %v833, %v930
      %v1005 = vsub.f32 %v723, %v933
      %v1006 = vsub.f32 %v836, %v933
      %v1007 = vsub.f32 %v726, %v936
      %v1008 = vsub.f32 %v839, %v936
      %v1009 = vsub.f32 %v729, %v939
      %v1010 = vsub.f32 %v842, %v939
      %v1011 = vsub.f32 %v732, %v942
      %v1012 = vsub.f32 %v845, %v942
      %v1013 = vsub.f32 %v735, %v945
      %v1014 = vsub.f32 %v848, %v945
      %v1015 = vsub.f32 %v738, %v948
      %v1016 = vsub.f32 %v851, %v948
      %v1017 = vsub.f32 %v741, %v951
      %v1018 = vsub.f32 %v854, %v951
      %v1019 = vsub.f32 %v744, %v954
      %v1020 = vsub.f32 %v857, %v954
      %v1021 = vsub.f32 %v747, %v957
      %v1022 = vsub.f32 %v860, %v957
      %v1023 = vsub.f32 %v750, %v960
      %v1024 = vsub.f32 %v863, %v960
      %v1025 = vmul.f32 %v961, 1.442695
      %v1026 = vpow.pop %v1025
      %v1027 = vmul.f32 %v962, 1.442695
      %v1028 = vpow.pop %v1027
      %v1029 = vmul.f32 %v963, 1.442695
      %v1030 = vpow.pop %v1029
      %v1031 = vmul.f32 %v964, 1.442695
      %v1032 = vpow.pop %v1031
      %v1033 = vmul.f32 %v965, 1.442695
      %v1034 = vpow.pop %v1033
      %v1035 = vmul.f32 %v966, 1.442695
      %v1036 = vpow.pop %v1035
      %v1037 = vmul.f32 %v967, 1.442695
      %v1038 = vpow.pop %v1037
      %v1039 = vmul.f32 %v968, 1.442695
      %v1040 = vpow.pop %v1039
      %v1041 = vmul.f32 %v969, 1.442695
      %v1042 = vpow.pop %v1041
      %v1043 = vmul.f32 %v970, 1.442695
      %v1044 = vpow.pop %v1043
      %v1045 = vmul.f32 %v971, 1.442695
      %v1046 = vpow.pop %v1045
      %v1047 = vmul.f32 %v972, 1.442695
      %v1048 = vpow.pop %v1047
      %v1049 = vmul.f32 %v973, 1.442695
      %v1050 = vpow.pop %v1049
      %v1051 = vmul.f32 %v974, 1.442695
      %v1052 = vpow.pop %v1051
      %v1053 = vmul.f32 %v975, 1.442695
      %v1054 = vpow.pop %v1053
      %v1055 = vmul.f32 %v976, 1.442695
      %v1056 = vpow.pop %v1055
      %v1057 = vmul.f32 %v977, 1.442695
      %v1058 = vpow.pop %v1057
      %v1059 = vmul.f32 %v978, 1.442695
      %v1060 = vpow.pop %v1059
      %v1061 = vmul.f32 %v979, 1.442695
      %v1062 = vpow.pop %v1061
      %v1063 = vmul.f32 %v980, 1.442695
      %v1064 = vpow.pop %v1063
      %v1065 = vmul.f32 %v981, 1.442695
      %v1066 = vpow.pop %v1065
      %v1067 = vmul.f32 %v982, 1.442695
      %v1068 = vpow.pop %v1067
      %v1069 = vmul.f32 %v983, 1.442695
      %v1070 = vpow.pop %v1069
      %v1071 = vmul.f32 %v984, 1.442695
      %v1072 = vpow.pop %v1071
      %v1073 = vmul.f32 %v985, 1.442695
      %v1074 = vpow.pop %v1073
      %v1075 = vmul.f32 %v986, 1.442695
      %v1076 = vpow.pop %v1075
      %v1077 = vmul.f32 %v987, 1.442695
      %v1078 = vpow.pop %v1077
      %v1079 = vmul.f32 %v988, 1.442695
      %v1080 = vpow.pop %v1079
      %v1081 = vmul.f32 %v989, 1.442695
      %v1082 = vpow.pop %v1081
      %v1083 = vmul.f32 %v990, 1.442695
      %v1084 = vpow.pop %v1083
      %v1085 = vmul.f32 %v991, 1.442695
      %v1086 = vpow.pop %v1085
      %v1087 = vmul.f32 %v992, 1.442695
      %v1088 = vpow.pop %v1087
      %v1089 = vmul.f32 %v993, 1.442695
      %v1090 = vpow.pop %v1089
      %v1091 = vmul.f32 %v994, 1.442695
      %v1092 = vpow.pop %v1091
      %v1093 = vmul.f32 %v995, 1.442695
      %v1094 = vpow.pop %v1093
      %v1095 = vmul.f32 %v996, 1.442695
      %v1096 = vpow.pop %v1095
      %v1097 = vmul.f32 %v997, 1.442695
      %v1098 = vpow.pop %v1097
      %v1099 = vmul.f32 %v998, 1.442695
      %v1100 = vpow.pop %v1099
      %v1101 = vmul.f32 %v999, 1.442695
      %v1102 = vpow.pop %v1101
      %v1103 = vmul.f32 %v1000, 1.442695
      %v1104 = vpow.pop %v1103
      %v1105 = vmul.f32 %v1001, 1.442695
      %v1106 = vpow.pop %v1105
      %v1107 = vmul.f32 %v1002, 1.442695
      %v1108 = vpow.pop %v1107
      %v1109 = vmul.f32 %v1003, 1.442695
      %v1110 = vpow.pop %v1109
      %v1111 = vmul.f32 %v1004, 1.442695
      %v1112 = vpow.pop %v1111
      %v1113 = vmul.f32 %v1005, 1.442695
      %v1114 = vpow.pop %v1113
      %v1115 = vmul.f32 %v1006, 1.442695
      %v1116 = vpow.pop %v1115
      %v1117 = vmul.f32 %v1007, 1.442695
      %v1118 = vpow.pop %v1117
      %v1119 = vmul.f32 %v1008, 1.442695
      %v1120 = vpow.pop %v1119
      %v1121 = vmul.f32 %v1009, 1.442695
      %v1122 = vpow.pop %v1121
      %v1123 = vmul.f32 %v1010, 1.442695
      %v1124 = vpow.pop %v1123
      %v1125 = vmul.f32 %v1011, 1.442695
      %v1126 = vpow.pop %v1125
      %v1127 = vmul.f32 %v1012, 1.442695
      %v1128 = vpow.pop %v1127
      %v1129 = vmul.f32 %v1013, 1.442695
      %v1130 = vpow.pop %v1129
      %v1131 = vmul.f32 %v1014, 1.442695
      %v1132 = vpow.pop %v1131
      %v1133 = vmul.f32 %v1015, 1.442695
      %v1134 = vpow.pop %v1133
      %v1135 = vmul.f32 %v1016, 1.442695
      %v1136 = vpow.pop %v1135
      %v1137 = vmul.f32 %v1017, 1.442695
      %v1138 = vpow.pop %v1137
      %v1139 = vmul.f32 %v1018, 1.442695
      %v1140 = vpow.pop %v1139
      %v1141 = vmul.f32 %v1019, 1.442695
      %v1142 = vpow.pop %v1141
      %v1143 = vmul.f32 %v1020, 1.442695
      %v1144 = vpow.pop %v1143
      %v1145 = vmul.f32 %v1021, 1.442695
      %v1146 = vpow.pop %v1145
      %v1147 = vmul.f32 %v1022, 1.442695
      %v1148 = vpow.pop %v1147
      %v1149 = vmul.f32 %v1023, 1.442695
      %v1150 = vpow.pop %v1149
      %v1151 = vmul.f32 %v1024, 1.442695
      %v1152 = vpow.pop %v1151
      %v1153 = vadd.f32 %v1026, %v1028
      %1154 = vadd.xlane.f32.xlu0 %v1153
      %v1155 = vpop.xlane.xlu0 %1154
      %v1156 = vadd.f32 %v1030, %v1032
      %1157 = vadd.xlane.f32.xlu0 %v1156
      %v1158 = vpop.xlane.xlu0 %1157
      %v1159 = vadd.f32 %v1034, %v1036
      %1160 = vadd.xlane.f32.xlu0 %v1159
      %v1161 = vpop.xlane.xlu0 %1160
      %v1162 = vadd.f32 %v1038, %v1040
      %1163 = vadd.xlane.f32.xlu0 %v1162
      %v1164 = vpop.xlane.xlu0 %1163
      %v1165 = vadd.f32 %v1042, %v1044
      %1166 = vadd.xlane.f32.xlu0 %v1165
      %v1167 = vpop.xlane.xlu0 %1166
      %v1168 = vadd.f32 %v1046, %v1048
      %1169 = vadd.xlane.f32.xlu0 %v1168
      %v1170 = vpop.xlane.xlu0 %1169
      %v1171 = vadd.f32 %v1050, %v1052
      %1172 = vadd.xlane.f32.xlu0 %v1171
      %v1173 = vpop.xlane.xlu0 %1172
      %v1174 = vadd.f32 %v1054, %v1056
      %1175 = vadd.xlane.f32.xlu0 %v1174
      %v1176 = vpop.xlane.xlu0 %1175
      %v1177 = vadd.f32 %v1058, %v1060
      %1178 = vadd.xlane.f32.xlu0 %v1177
      %v1179 = vpop.xlane.xlu0 %1178
      %v1180 = vadd.f32 %v1062, %v1064
      %1181 = vadd.xlane.f32.xlu0 %v1180
      %v1182 = vpop.xlane.xlu0 %1181
      %v1183 = vadd.f32 %v1066, %v1068
      %1184 = vadd.xlane.f32.xlu0 %v1183
      %v1185 = vpop.xlane.xlu0 %1184
      %v1186 = vadd.f32 %v1070, %v1072
      %1187 = vadd.xlane.f32.xlu0 %v1186
      %v1188 = vpop.xlane.xlu0 %1187
      %v1189 = vadd.f32 %v1074, %v1076
      %1190 = vadd.xlane.f32.xlu0 %v1189
      %v1191 = vpop.xlane.xlu0 %1190
      %v1192 = vadd.f32 %v1078, %v1080
      %1193 = vadd.xlane.f32.xlu0 %v1192
      %v1194 = vpop.xlane.xlu0 %1193
      %v1195 = vadd.f32 %v1082, %v1084
      %1196 = vadd.xlane.f32.xlu0 %v1195
      %v1197 = vpop.xlane.xlu0 %1196
      %v1198 = vadd.f32 %v1086, %v1088
      %1199 = vadd.xlane.f32.xlu0 %v1198
      %v1200 = vpop.xlane.xlu0 %1199
      %v1201 = vadd.f32 %v1090, %v1092
      %1202 = vadd.xlane.f32.xlu0 %v1201
      %v1203 = vpop.xlane.xlu0 %1202
      %v1204 = vadd.f32 %v1094, %v1096
      %1205 = vadd.xlane.f32.xlu0 %v1204
      %v1206 = vpop.xlane.xlu0 %1205
      %v1207 = vadd.f32 %v1098, %v1100
      %1208 = vadd.xlane.f32.xlu0 %v1207
      %v1209 = vpop.xlane.xlu0 %1208
      %v1210 = vadd.f32 %v1102, %v1104
      %1211 = vadd.xlane.f32.xlu0 %v1210
      %v1212 = vpop.xlane.xlu0 %1211
      %v1213 = vadd.f32 %v1106, %v1108
      %1214 = vadd.xlane.f32.xlu0 %v1213
      %v1215 = vpop.xlane.xlu0 %1214
      %v1216 = vadd.f32 %v1110, %v1112
      %1217 = vadd.xlane.f32.xlu0 %v1216
      %v1218 = vpop.xlane.xlu0 %1217
      %v1219 = vadd.f32 %v1114, %v1116
      %1220 = vadd.xlane.f32.xlu0 %v1219
      %v1221 = vpop.xlane.xlu0 %1220
      %v1222 = vadd.f32 %v1118, %v1120
      %1223 = vadd.xlane.f32.xlu0 %v1222
      %v1224 = vpop.xlane.xlu0 %1223
      %v1225 = vadd.f32 %v1122, %v1124
      %1226 = vadd.xlane.f32.xlu0 %v1225
      %v1227 = vpop.xlane.xlu0 %1226
      %v1228 = vadd.f32 %v1126, %v1128
      %1229 = vadd.xlane.f32.xlu0 %v1228
      %v1230 = vpop.xlane.xlu0 %1229
      %v1231 = vadd.f32 %v1130, %v1132
      %1232 = vadd.xlane.f32.xlu0 %v1231
      %v1233 = vpop.xlane.xlu0 %1232
      %v1234 = vadd.f32 %v1134, %v1136
      %1235 = vadd.xlane.f32.xlu0 %v1234
      %v1236 = vpop.xlane.xlu0 %1235
      %v1237 = vadd.f32 %v1138, %v1140
      %1238 = vadd.xlane.f32.xlu0 %v1237
      %v1239 = vpop.xlane.xlu0 %1238
      %v1240 = vadd.f32 %v1142, %v1144
      %1241 = vadd.xlane.f32.xlu0 %v1240
      %v1242 = vpop.xlane.xlu0 %1241
      %v1243 = vadd.f32 %v1146, %v1148
      %1244 = vadd.xlane.f32.xlu0 %v1243
      %v1245 = vpop.xlane.xlu0 %1244
      %v1246 = vadd.f32 %v1150, %v1152
      %1247 = vadd.xlane.f32.xlu0 %v1246
      %v1248 = vpop.xlane.xlu0 %1247
      %v1249 = vrcp.pop %v1155
      %v1250 = vrcp.pop %v1158
      %v1251 = vrcp.pop %v1161
      %v1252 = vrcp.pop %v1164
      %v1253 = vrcp.pop %v1167
      %v1254 = vrcp.pop %v1170
      %v1255 = vrcp.pop %v1173
      %v1256 = vrcp.pop %v1176
      %v1257 = vrcp.pop %v1179
      %v1258 = vrcp.pop %v1182
      %v1259 = vrcp.pop %v1185
      %v1260 = vrcp.pop %v1188
      %v1261 = vrcp.pop %v1191
      %v1262 = vrcp.pop %v1194
      %v1263 = vrcp.pop %v1197
      %v1264 = vrcp.pop %v1200
      %v1265 = vrcp.pop %v1203
      %v1266 = vrcp.pop %v1206
      %v1267 = vrcp.pop %v1209
      %v1268 = vrcp.pop %v1212
      %v1269 = vrcp.pop %v1215
      %v1270 = vrcp.pop %v1218
      %v1271 = vrcp.pop %v1221
      %v1272 = vrcp.pop %v1224
      %v1273 = vrcp.pop %v1227
      %v1274 = vrcp.pop %v1230
      %v1275 = vrcp.pop %v1233
      %v1276 = vrcp.pop %v1236
      %v1277 = vrcp.pop %v1239
      %v1278 = vrcp.pop %v1242
      %v1279 = vrcp.pop %v1245
      %v1280 = vrcp.pop %v1248
      %v1281 = vmul.f32 %v1026, %v1249
      %v1282 = vmul.f32 %v1028, %v1249
      %v1283 = vmul.f32 %v1030, %v1250
      %v1284 = vmul.f32 %v1032, %v1250
      %v1285 = vmul.f32 %v1034, %v1251
      %v1286 = vmul.f32 %v1036, %v1251
      %v1287 = vmul.f32 %v1038, %v1252
      %v1288 = vmul.f32 %v1040, %v1252
      %v1289 = vmul.f32 %v1042, %v1253
      %v1290 = vmul.f32 %v1044, %v1253
      %v1291 = vmul.f32 %v1046, %v1254
      %v1292 = vmul.f32 %v1048, %v1254
      %v1293 = vmul.f32 %v1050, %v1255
      %v1294 = vmul.f32 %v1052, %v1255
      %v1295 = vmul.f32 %v1054, %v1256
      %v1296 = vmul.f32 %v1056, %v1256
      %v1297 = vmul.f32 %v1058, %v1257
      %v1298 = vmul.f32 %v1060, %v1257
      %v1299 = vmul.f32 %v1062, %v1258
      %v1300 = vmul.f32 %v1064, %v1258
      %v1301 = vmul.f32 %v1066, %v1259
      %v1302 = vmul.f32 %v1068, %v1259
      %v1303 = vmul.f32 %v1070, %v1260
      %v1304 = vmul.f32 %v1072, %v1260
      %v1305 = vmul.f32 %v1074, %v1261
      %v1306 = vmul.f32 %v1076, %v1261
      %v1307 = vmul.f32 %v1078, %v1262
      %v1308 = vmul.f32 %v1080, %v1262
      %v1309 = vmul.f32 %v1082, %v1263
      %v1310 = vmul.f32 %v1084, %v1263
      %v1311 = vmul.f32 %v1086, %v1264
      %v1312 = vmul.f32 %v1088, %v1264
      %v1313 = vmul.f32 %v1090, %v1265
      %v1314 = vmul.f32 %v1092, %v1265
      %v1315 = vmul.f32 %v1094, %v1266
      %v1316 = vmul.f32 %v1096, %v1266
      %v1317 = vmul.f32 %v1098, %v1267
      %v1318 = vmul.f32 %v1100, %v1267
      %v1319 = vmul.f32 %v1102, %v1268
      %v1320 = vmul.f32 %v1104, %v1268
      %v1321 = vmul.f32 %v1106, %v1269
      %v1322 = vmul.f32 %v1108, %v1269
      %v1323 = vmul.f32 %v1110, %v1270
      %v1324 = vmul.f32 %v1112, %v1270
      %v1325 = vmul.f32 %v1114, %v1271
      %v1326 = vmul.f32 %v1116, %v1271
      %v1327 = vmul.f32 %v1118, %v1272
      %v1328 = vmul.f32 %v1120, %v1272
      %v1329 = vmul.f32 %v1122, %v1273
      %v1330 = vmul.f32 %v1124, %v1273
      %v1331 = vmul.f32 %v1126, %v1274
      %v1332 = vmul.f32 %v1128, %v1274
      %v1333 = vmul.f32 %v1130, %v1275
      %v1334 = vmul.f32 %v1132, %v1275
      %v1335 = vmul.f32 %v1134, %v1276
      %v1336 = vmul.f32 %v1136, %v1276
      %v1337 = vmul.f32 %v1138, %v1277
      %v1338 = vmul.f32 %v1140, %v1277
      %v1339 = vmul.f32 %v1142, %v1278
      %v1340 = vmul.f32 %v1144, %v1278
      %v1341 = vmul.f32 %v1146, %v1279
      %v1342 = vmul.f32 %v1148, %v1279
      %v1343 = vmul.f32 %v1150, %v1280
      %v1344 = vmul.f32 %v1152, %v1280
      %1345 = vmatpush.xpose.msra.mxu0 %v1311
      %1346 = vmatpush.xpose.msra.mxu0 %v1309
      %1347 = vmatpush.xpose.msra.mxu0 %v1307
      %1348 = vmatpush.xpose.msra.mxu0 %v1305
      %1349 = vmatpush.xpose.msra.mxu0 %v1303
      %1350 = vmatpush.xpose.msra.mxu0 %v1301
      %1351 = vmatpush.xpose.msra.mxu0 %v1299
      %1352 = vmatpush.xpose.msra.mxu0 %v1297
      %1353 = vmatpush.xpose.msra.mxu0 %v1295
      %1354 = vmatpush.xpose.msra.mxu0 %v1293
      %1355 = vmatpush.xpose.msra.mxu0 %v1291
      %1356 = vmatpush.xpose.msra.mxu0 %v1289
      %1357 = vmatpush.xpose.msra.mxu0 %v1287
      %1358 = vmatpush.xpose.msra.mxu0 %v1285
      %1359 = vmatpush.xpose.msra.mxu0 %v1283
      %1360 = vmatpush.xpose.msra.mxu0 %v1281
      %1361 = vmatmul.f32.gmra.mxu0 %v451
      %v1362 = vpop.f32.mrf.mxu0
      %v1363 = vadd.f32 0.0, %v1362
      %1364 = vdwg.mxu0
      %1365 = vmatpush.xpose.msra.mxu0 %v1312
      %1366 = vmatpush.xpose.msra.mxu0 %v1310
      %1367 = vmatpush.xpose.msra.mxu0 %v1308
      %1368 = vmatpush.xpose.msra.mxu0 %v1306
      %1369 = vmatpush.xpose.msra.mxu0 %v1304
      %1370 = vmatpush.xpose.msra.mxu0 %v1302
      %1371 = vmatpush.xpose.msra.mxu0 %v1300
      %1372 = vmatpush.xpose.msra.mxu0 %v1298
      %1373 = vmatpush.xpose.msra.mxu0 %v1296
      %1374 = vmatpush.xpose.msra.mxu0 %v1294
      %1375 = vmatpush.xpose.msra.mxu0 %v1292
      %1376 = vmatpush.xpose.msra.mxu0 %v1290
      %1377 = vmatpush.xpose.msra.mxu0 %v1288
      %1378 = vmatpush.xpose.msra.mxu0 %v1286
      %1379 = vmatpush.xpose.msra.mxu0 %v1284
      %1380 = vmatpush.xpose.msra.mxu0 %v1282
      %1381 = vmatmul.f32.gmra.mxu0 %v477
      %v1382 = vpop.f32.mrf.mxu0
      %v1383 = vadd.f32 %v1363, %v1382
      %1384 = vdwg.mxu0
      %1385 = vmatpush.xpose.msra.mxu0 %v1343
      %1386 = vmatpush.xpose.msra.mxu0 %v1341
      %1387 = vmatpush.xpose.msra.mxu0 %v1339
      %1388 = vmatpush.xpose.msra.mxu0 %v1337
      %1389 = vmatpush.xpose.msra.mxu0 %v1335
      %1390 = vmatpush.xpose.msra.mxu0 %v1333
      %1391 = vmatpush.xpose.msra.mxu0 %v1331
      %1392 = vmatpush.xpose.msra.mxu0 %v1329
      %1393 = vmatpush.xpose.msra.mxu0 %v1327
      %1394 = vmatpush.xpose.msra.mxu0 %v1325
      %1395 = vmatpush.xpose.msra.mxu0 %v1323
      %1396 = vmatpush.xpose.msra.mxu0 %v1321
      %1397 = vmatpush.xpose.msra.mxu0 %v1319
      %1398 = vmatpush.xpose.msra.mxu0 %v1317
      %1399 = vmatpush.xpose.msra.mxu0 %v1315
      %1400 = vmatpush.xpose.msra.mxu0 %v1313
      %1401 = vmatmul.f32.gmra.mxu0 %v451
      %v1402 = vpop.f32.mrf.mxu0
      %v1403 = vadd.f32 0.0, %v1402
      %1404 = vdwg.mxu0
      %1405 = vmatpush.xpose.msra.mxu0 %v1344
      %1406 = vmatpush.xpose.msra.mxu0 %v1342
      %1407 = vmatpush.xpose.msra.mxu0 %v1340
      %1408 = vmatpush.xpose.msra.mxu0 %v1338
      %1409 = vmatpush.xpose.msra.mxu0 %v1336
      %1410 = vmatpush.xpose.msra.mxu0 %v1334
      %1411 = vmatpush.xpose.msra.mxu0 %v1332
      %1412 = vmatpush.xpose.msra.mxu0 %v1330
      %1413 = vmatpush.xpose.msra.mxu0 %v1328
      %1414 = vmatpush.xpose.msra.mxu0 %v1326
      %1415 = vmatpush.xpose.msra.mxu0 %v1324
      %1416 = vmatpush.xpose.msra.mxu0 %v1322
      %1417 = vmatpush.xpose.msra.mxu0 %v1320
      %1418 = vmatpush.xpose.msra.mxu0 %v1318
      %1419 = vmatpush.xpose.msra.mxu0 %v1316
      %1420 = vmatpush.xpose.msra.mxu0 %v1314
      %1421 = vmatmul.f32.gmra.mxu0 %v477
      %v1422 = vpop.f32.mrf.mxu0
      %v1423 = vadd.f32 %v1403, %v1422
      %1424 = vdwg.mxu0
      %v1425 = vld [vmem:[%s5 + $0x40] sm:$0xff]
      %v1426 = vld [vmem:[%s6 + $0x20] sm:$0xff]
      %1428 = vset.pattern.permute.xlu0 0
      %1429 = vperm.xlu0 %1428, %v1426
      %v1430 = vpop.permute.xlu0 %1429
      %v1433 = vsel %vm289, %v1425, 0
      %1435 = vmatpush.msra.mxu0 0.0
      %1436 = vmatpush.msra.mxu0 0.0
      %1437 = vmatpush.msra.mxu0 0.0
      %1438 = vmatpush.msra.mxu0 0.0
      %1439 = vmatpush.msra.mxu0 0.0
      %1440 = vmatpush.msra.mxu0 0.0
      %1441 = vmatpush.msra.mxu0 0.0
      %1442 = vmatpush.msra.mxu0 0.0
      %1443 = vmatpush.msra.mxu0 0.0
      %1444 = vmatpush.msra.mxu0 0.0
      %1445 = vmatpush.msra.mxu0 0.0
      %1446 = vmatpush.msra.mxu0 0.0
      %1447 = vmatpush.msra.mxu0 0.0
      %1448 = vmatpush.msra.mxu0 0.0
      %1449 = vmatpush.msra.mxu0 0.0
      %1450 = vmatpush.msra.mxu0 %v1383
      %1451 = vmatmul.f32.gmra.mxu0 %v1433
      %v1452 = vpop.f32.mrf.mxu0
      %v1453 = vadd.f32 %v1430, %v1452
      %1454 = vdwg.mxu0
      %1455 = vmatpush.msra.mxu0 0.0
      %1456 = vmatpush.msra.mxu0 0.0
      %1457 = vmatpush.msra.mxu0 0.0
      %1458 = vmatpush.msra.mxu0 0.0
      %1459 = vmatpush.msra.mxu0 0.0
      %1460 = vmatpush.msra.mxu0 0.0
      %1461 = vmatpush.msra.mxu0 0.0
      %1462 = vmatpush.msra.mxu0 0.0
      %1463 = vmatpush.msra.mxu0 0.0
      %1464 = vmatpush.msra.mxu0 0.0
      %1465 = vmatpush.msra.mxu0 0.0
      %1466 = vmatpush.msra.mxu0 0.0
      %1467 = vmatpush.msra.mxu0 0.0
      %1468 = vmatpush.msra.mxu0 0.0
      %1469 = vmatpush.msra.mxu0 0.0
      %1470 = vmatpush.msra.mxu0 %v1423
      %1471 = vmatmul.f32.gmra.mxu0 %v1433
      %v1472 = vpop.f32.mrf.mxu0
      %v1473 = vadd.f32 %v1430, %v1472
      %1474 = vdwg.mxu0
      %v1475 = vadd.f32 %v311, %v1453
      %v1476 = vadd.f32 %v331, %v1473
      %v1477 = vld [vmem:[%s3] sm:$0xff]
      %v1478 = vld [vmem:[%s3 + $0x8] sm:$0xff]
      %v1479 = vld [vmem:[%s3 + $0x10] sm:$0xff]
      %v1480 = vld [vmem:[%s3 + $0x18] sm:$0xff]
      %v1481 = vld [vmem:[%s3 + $0x20] sm:$0xff]
      %v1482 = vld [vmem:[%s3 + $0x28] sm:$0xff]
      %v1483 = vld [vmem:[%s3 + $0x30] sm:$0xff]
      %v1484 = vld [vmem:[%s3 + $0x38] sm:$0xff]
      %v1485 = vld [vmem:[%s3 + $0x40] sm:$0xff]
      %v1486 = vld [vmem:[%s3 + $0x48] sm:$0xff]
      %v1487 = vld [vmem:[%s3 + $0x50] sm:$0xff]
      %v1488 = vld [vmem:[%s3 + $0x58] sm:$0xff]
      %v1489 = vld [vmem:[%s3 + $0x60] sm:$0xff]
      %v1490 = vld [vmem:[%s3 + $0x68] sm:$0xff]
      %v1491 = vld [vmem:[%s3 + $0x70] sm:$0xff]
      %v1492 = vld [vmem:[%s3 + $0x78] sm:$0xff]
      %v1493 = vld [vmem:[%s3 + $0x80] sm:$0xff]
      %v1494 = vld [vmem:[%s3 + $0x88] sm:$0xff]
      %v1495 = vld [vmem:[%s3 + $0x90] sm:$0xff]
      %v1496 = vld [vmem:[%s3 + $0x98] sm:$0xff]
      %v1497 = vld [vmem:[%s3 + $0xa0] sm:$0xff]
      %v1498 = vld [vmem:[%s3 + $0xa8] sm:$0xff]
      %v1499 = vld [vmem:[%s3 + $0xb0] sm:$0xff]
      %v1500 = vld [vmem:[%s3 + $0xb8] sm:$0xff]
      %v1501 = vld [vmem:[%s3 + $0xc0] sm:$0xff]
      %v1502 = vld [vmem:[%s3 + $0xc8] sm:$0xff]
      %v1503 = vld [vmem:[%s3 + $0xd0] sm:$0xff]
      %v1504 = vld [vmem:[%s3 + $0xd8] sm:$0xff]
      %v1505 = vld [vmem:[%s3 + $0xe0] sm:$0xff]
      %v1506 = vld [vmem:[%s3 + $0xe8] sm:$0xff]
      %v1507 = vld [vmem:[%s3 + $0xf0] sm:$0xff]
      %v1508 = vld [vmem:[%s3 + $0xf8] sm:$0xff]
      %v1509 = vld [vmem:[%s3 + $0x100] sm:$0xff]
      %v1510 = vld [vmem:[%s3 + $0x108] sm:$0xff]
      %v1511 = vld [vmem:[%s3 + $0x110] sm:$0xff]
      %v1512 = vld [vmem:[%s3 + $0x118] sm:$0xff]
      %v1513 = vld [vmem:[%s3 + $0x120] sm:$0xff]
      %v1514 = vld [vmem:[%s3 + $0x128] sm:$0xff]
      %v1515 = vld [vmem:[%s3 + $0x130] sm:$0xff]
      %v1516 = vld [vmem:[%s3 + $0x138] sm:$0xff]
      %v1517 = vld [vmem:[%s3 + $0x140] sm:$0xff]
      %v1518 = vld [vmem:[%s3 + $0x148] sm:$0xff]
      %v1519 = vld [vmem:[%s3 + $0x150] sm:$0xff]
      %v1520 = vld [vmem:[%s3 + $0x158] sm:$0xff]
      %v1521 = vld [vmem:[%s3 + $0x160] sm:$0xff]
      %v1522 = vld [vmem:[%s3 + $0x168] sm:$0xff]
      %v1523 = vld [vmem:[%s3 + $0x170] sm:$0xff]
      %v1524 = vld [vmem:[%s3 + $0x178] sm:$0xff]
      %v1525 = vld [vmem:[%s3 + $0x180] sm:$0xff]
      %v1526 = vld [vmem:[%s3 + $0x188] sm:$0xff]
      %v1527 = vld [vmem:[%s3 + $0x190] sm:$0xff]
      %v1528 = vld [vmem:[%s3 + $0x198] sm:$0xff]
      %v1529 = vld [vmem:[%s3 + $0x1a0] sm:$0xff]
      %v1530 = vld [vmem:[%s3 + $0x1a8] sm:$0xff]
      %v1531 = vld [vmem:[%s3 + $0x1b0] sm:$0xff]
      %v1532 = vld [vmem:[%s3 + $0x1b8] sm:$0xff]
      %v1533 = vld [vmem:[%s3 + $0x1c0] sm:$0xff]
      %v1534 = vld [vmem:[%s3 + $0x1c8] sm:$0xff]
      %v1535 = vld [vmem:[%s3 + $0x1d0] sm:$0xff]
      %v1536 = vld [vmem:[%s3 + $0x1d8] sm:$0xff]
      %v1537 = vld [vmem:[%s3 + $0x1e0] sm:$0xff]
      %v1538 = vld [vmem:[%s3 + $0x1e8] sm:$0xff]
      %v1539 = vld [vmem:[%s3 + $0x1f0] sm:$0xff]
      %v1540 = vld [vmem:[%s3 + $0x1f8] sm:$0xff]
      %v1541 = vld [vmem:[%s5 + $0x50] sm:$0xff]
      %v1542 = vld [vmem:[%s5 + $0x60] sm:$0xff]
      %v1543 = vld [vmem:[%s5 + $0x70] sm:$0xff]
      %v1544 = vld [vmem:[%s6 + $0x28] sm:$0xff]
      %v1545 = vld [vmem:[%s6 + $0x30] sm:$0xff]
      %v1546 = vld [vmem:[%s6 + $0x38] sm:$0xff]
      %1548 = vset.pattern.permute.xlu0 0
      %1549 = vperm.xlu0 %1548, %v1544
      %v1550 = vpop.permute.xlu0 %1549
      %1553 = vset.pattern.permute.xlu0 0
      %1554 = vperm.xlu0 %1553, %v1545
      %v1555 = vpop.permute.xlu0 %1554
      %1558 = vset.pattern.permute.xlu0 0
      %1559 = vperm.xlu0 %1558, %v1546
      %v1560 = vpop.permute.xlu0 %1559
      %v1563 = vsel %vm289, %v1541, 0
      %v1566 = vsel %vm289, %v1542, 0
      %v1569 = vsel %vm289, %v1543, 0
      %1571 = vmatpush.msra.mxu0 0.0
      %1572 = vmatpush.msra.mxu0 0.0
      %1573 = vmatpush.msra.mxu0 0.0
      %1574 = vmatpush.msra.mxu0 0.0
      %1575 = vmatpush.msra.mxu0 0.0
      %1576 = vmatpush.msra.mxu0 0.0
      %1577 = vmatpush.msra.mxu0 0.0
      %1578 = vmatpush.msra.mxu0 0.0
      %1579 = vmatpush.msra.mxu0 0.0
      %1580 = vmatpush.msra.mxu0 0.0
      %1581 = vmatpush.msra.mxu0 0.0
      %1582 = vmatpush.msra.mxu0 0.0
      %1583 = vmatpush.msra.mxu0 0.0
      %1584 = vmatpush.msra.mxu0 0.0
      %1585 = vmatpush.msra.mxu0 0.0
      %1586 = vmatpush.msra.mxu0 %v1475
      %1587 = vmatmul.f32.gmra.mxu0 %v1563
      %v1588 = vpop.f32.mrf.mxu0
      %v1589 = vadd.f32 %v1550, %v1588
      %1590 = vmatmul.f32.gmra.mxu0 %v1566
      %v1591 = vpop.f32.mrf.mxu0
      %v1592 = vadd.f32 %v1555, %v1591
      %1593 = vmatmul.f32.gmra.mxu0 %v1569
      %v1594 = vpop.f32.mrf.mxu0
      %v1595 = vadd.f32 %v1560, %v1594
      %1596 = vdwg.mxu0
      %1597 = vmatpush.msra.mxu0 0.0
      %1598 = vmatpush.msra.mxu0 0.0
      %1599 = vmatpush.msra.mxu0 0.0
      %1600 = vmatpush.msra.mxu0 0.0
      %1601 = vmatpush.msra.mxu0 0.0
      %1602 = vmatpush.msra.mxu0 0.0
      %1603 = vmatpush.msra.mxu0 0.0
      %1604 = vmatpush.msra.mxu0 0.0
      %1605 = vmatpush.msra.mxu0 0.0
      %1606 = vmatpush.msra.mxu0 0.0
      %1607 = vmatpush.msra.mxu0 0.0
      %1608 = vmatpush.msra.mxu0 0.0
      %1609 = vmatpush.msra.mxu0 0.0
      %1610 = vmatpush.msra.mxu0 0.0
      %1611 = vmatpush.msra.mxu0 0.0
      %1612 = vmatpush.msra.mxu0 %v1476
      %1613 = vmatmul.f32.gmra.mxu0 %v1563
      %v1614 = vpop.f32.mrf.mxu0
      %v1615 = vadd.f32 %v1550, %v1614
      %1616 = vmatmul.f32.gmra.mxu0 %v1566
      %v1617 = vpop.f32.mrf.mxu0
      %v1618 = vadd.f32 %v1555, %v1617
      %1619 = vmatmul.f32.gmra.mxu0 %v1569
      %v1620 = vpop.f32.mrf.mxu0
      %v1621 = vadd.f32 %v1560, %v1620
      %1622 = vdwg.mxu0
      %1623 = vxpose.xlu0.b32.start [1/16] %v1589, 128
      %1624 = vxpose.xlu0.b32.cont [2/16] 0.0, 128
      %1625 = vxpose.xlu0.b32.cont [3/16] 0.0, 128
      %1626 = vxpose.xlu0.b32.cont [4/16] 0.0, 128
      %1627 = vxpose.xlu0.b32.cont [5/16] 0.0, 128
      %1628 = vxpose.xlu0.b32.cont [6/16] 0.0, 128
      %1629 = vxpose.xlu0.b32.cont [7/16] 0.0, 128
      %1630 = vxpose.xlu0.b32.cont [8/16] 0.0, 128
      %1631 = vxpose.xlu0.b32.cont [9/16] 0.0, 128
      %1632 = vxpose.xlu0.b32.cont [10/16] 0.0, 128
      %1633 = vxpose.xlu0.b32.cont [11/16] 0.0, 128
      %1634 = vxpose.xlu0.b32.cont [12/16] 0.0, 128
      %1635 = vxpose.xlu0.b32.cont [13/16] 0.0, 128
      %1636 = vxpose.xlu0.b32.cont [14/16] 0.0, 128
      %1637 = vxpose.xlu0.b32.cont [15/16] 0.0, 128
      %1638 = vxpose.xlu0.b32.end [16/16] 0.0, 128
      %v1639 = vpop.trf.xlu0
      %v1640 = vpop.trf.xlu0
      %v1641 = vpop.trf.xlu0
      %v1642 = vpop.trf.xlu0
      %v1643 = vpop.trf.xlu0
      %v1644 = vpop.trf.xlu0
      %v1645 = vpop.trf.xlu0
      %v1646 = vpop.trf.xlu0
      %v1647 = vpop.trf.xlu0
      %v1648 = vpop.trf.xlu0
      %v1649 = vpop.trf.xlu0
      %v1650 = vpop.trf.xlu0
      %v1651 = vpop.trf.xlu0
      %v1652 = vpop.trf.xlu0
      %v1653 = vpop.trf.xlu0
      %v1654 = vpop.trf.xlu0
      %1655 = vxpose.xlu0.b32.start [1/16] %v1615, 128
      %1656 = vxpose.xlu0.b32.cont [2/16] 0.0, 128
      %1657 = vxpose.xlu0.b32.cont [3/16] 0.0, 128
      %1658 = vxpose.xlu0.b32.cont [4/16] 0.0, 128
      %1659 = vxpose.xlu0.b32.cont [5/16] 0.0, 128
      %1660 = vxpose.xlu0.b32.cont [6/16] 0.0, 128
      %1661 = vxpose.xlu0.b32.cont [7/16] 0.0, 128
      %1662 = vxpose.xlu0.b32.cont [8/16] 0.0, 128
      %1663 = vxpose.xlu0.b32.cont [9/16] 0.0, 128
      %1664 = vxpose.xlu0.b32.cont [10/16] 0.0, 128
      %1665 = vxpose.xlu0.b32.cont [11/16] 0.0, 128
      %1666 = vxpose.xlu0.b32.cont [12/16] 0.0, 128
      %1667 = vxpose.xlu0.b32.cont [13/16] 0.0, 128
      %1668 = vxpose.xlu0.b32.cont [14/16] 0.0, 128
      %1669 = vxpose.xlu0.b32.cont [15/16] 0.0, 128
      %1670 = vxpose.xlu0.b32.end [16/16] 0.0, 128
      %v1671 = vpop.trf.xlu0
      %v1672 = vpop.trf.xlu0
      %v1673 = vpop.trf.xlu0
      %v1674 = vpop.trf.xlu0
      %v1675 = vpop.trf.xlu0
      %v1676 = vpop.trf.xlu0
      %v1677 = vpop.trf.xlu0
      %v1678 = vpop.trf.xlu0
      %v1679 = vpop.trf.xlu0
      %v1680 = vpop.trf.xlu0
      %v1681 = vpop.trf.xlu0
      %v1682 = vpop.trf.xlu0
      %v1683 = vpop.trf.xlu0
      %v1684 = vpop.trf.xlu0
      %v1685 = vpop.trf.xlu0
      %v1686 = vpop.trf.xlu0
      %v1688 = vsel %vm289, %v1639, 0
      %v1691 = vsel %vm289, %v1640, 0
      %v1694 = vsel %vm289, %v1641, 0
      %v1697 = vsel %vm289, %v1642, 0
      %v1700 = vsel %vm289, %v1643, 0
      %v1703 = vsel %vm289, %v1644, 0
      %v1706 = vsel %vm289, %v1645, 0
      %v1709 = vsel %vm289, %v1646, 0
      %v1712 = vsel %vm289, %v1647, 0
      %v1715 = vsel %vm289, %v1648, 0
      %v1718 = vsel %vm289, %v1649, 0
      %v1721 = vsel %vm289, %v1650, 0
      %v1724 = vsel %vm289, %v1651, 0
      %v1727 = vsel %vm289, %v1652, 0
      %v1730 = vsel %vm289, %v1653, 0
      %v1733 = vsel %vm289, %v1654, 0
      %v1736 = vsel %vm289, %v1671, 0
      %v1739 = vsel %vm289, %v1672, 0
      %v1742 = vsel %vm289, %v1673, 0
      %v1745 = vsel %vm289, %v1674, 0
      %v1748 = vsel %vm289, %v1675, 0
      %v1751 = vsel %vm289, %v1676, 0
      %v1754 = vsel %vm289, %v1677, 0
      %v1757 = vsel %vm289, %v1678, 0
      %v1760 = vsel %vm289, %v1679, 0
      %v1763 = vsel %vm289, %v1680, 0
      %v1766 = vsel %vm289, %v1681, 0
      %v1769 = vsel %vm289, %v1682, 0
      %v1772 = vsel %vm289, %v1683, 0
      %v1775 = vsel %vm289, %v1684, 0
      %v1778 = vsel %vm289, %v1685, 0
      %v1781 = vsel %vm289, %v1686, 0
      %1783 = vmatpush.msra.mxu0 0.0
      %1784 = vmatpush.msra.mxu0 0.0
      %1785 = vmatpush.msra.mxu0 0.0
      %1786 = vmatpush.msra.mxu0 0.0
      %1787 = vmatpush.msra.mxu0 0.0
      %1788 = vmatpush.msra.mxu0 0.0
      %1789 = vmatpush.msra.mxu0 0.0
      %1790 = vmatpush.msra.mxu0 0.0
      %1791 = vmatpush.msra.mxu0 0.0
      %1792 = vmatpush.msra.mxu0 0.0
      %1793 = vmatpush.msra.mxu0 0.0
      %1794 = vmatpush.msra.mxu0 0.0
      %1795 = vmatpush.msra.mxu0 0.0
      %1796 = vmatpush.msra.mxu0 0.0
      %1797 = vmatpush.msra.mxu0 0.0
      %1798 = vmatpush.msra.mxu0 %v1592
      %1799 = vmatmul.f32.gmra.mxu0 %v1688
      %v1800 = vpop.f32.mrf.mxu0
      %v1801 = vadd.f32 %v1477, %v1800
      %1802 = vmatmul.f32.gmra.mxu0 %v1691
      %v1803 = vpop.f32.mrf.mxu0
      %v1804 = vadd.f32 %v1479, %v1803
      %1805 = vmatmul.f32.gmra.mxu0 %v1694
      %v1806 = vpop.f32.mrf.mxu0
      %v1807 = vadd.f32 %v1481, %v1806
      %1808 = vmatmul.f32.gmra.mxu0 %v1697
      %v1809 = vpop.f32.mrf.mxu0
      %v1810 = vadd.f32 %v1483, %v1809
      %1811 = vmatmul.f32.gmra.mxu0 %v1700
      %v1812 = vpop.f32.mrf.mxu0
      %v1813 = vadd.f32 %v1485, %v1812
      %1814 = vmatmul.f32.gmra.mxu0 %v1703
      %v1815 = vpop.f32.mrf.mxu0
      %v1816 = vadd.f32 %v1487, %v1815
      %1817 = vmatmul.f32.gmra.mxu0 %v1706
      %v1818 = vpop.f32.mrf.mxu0
      %v1819 = vadd.f32 %v1489, %v1818
      %1820 = vmatmul.f32.gmra.mxu0 %v1709
      %v1821 = vpop.f32.mrf.mxu0
      %v1822 = vadd.f32 %v1491, %v1821
      %1823 = vmatmul.f32.gmra.mxu0 %v1712
      %v1824 = vpop.f32.mrf.mxu0
      %v1825 = vadd.f32 %v1493, %v1824
      %1826 = vmatmul.f32.gmra.mxu0 %v1715
      %v1827 = vpop.f32.mrf.mxu0
      %v1828 = vadd.f32 %v1495, %v1827
      %1829 = vmatmul.f32.gmra.mxu0 %v1718
      %v1830 = vpop.f32.mrf.mxu0
      %v1831 = vadd.f32 %v1497, %v1830
      %1832 = vmatmul.f32.gmra.mxu0 %v1721
      %v1833 = vpop.f32.mrf.mxu0
      %v1834 = vadd.f32 %v1499, %v1833
      %1835 = vmatmul.f32.gmra.mxu0 %v1724
      %v1836 = vpop.f32.mrf.mxu0
      %v1837 = vadd.f32 %v1501, %v1836
      %1838 = vmatmul.f32.gmra.mxu0 %v1727
      %v1839 = vpop.f32.mrf.mxu0
      %v1840 = vadd.f32 %v1503, %v1839
      %1841 = vmatmul.f32.gmra.mxu0 %v1730
      %v1842 = vpop.f32.mrf.mxu0
      %v1843 = vadd.f32 %v1505, %v1842
      %1844 = vmatmul.f32.gmra.mxu0 %v1733
      %v1845 = vpop.f32.mrf.mxu0
      %v1846 = vadd.f32 %v1507, %v1845
      %1847 = vmatmul.f32.gmra.mxu0 %v1736
      %v1848 = vpop.f32.mrf.mxu0
      %v1849 = vadd.f32 %v1509, %v1848
      %1850 = vmatmul.f32.gmra.mxu0 %v1739
      %v1851 = vpop.f32.mrf.mxu0
      %v1852 = vadd.f32 %v1511, %v1851
      %1853 = vmatmul.f32.gmra.mxu0 %v1742
      %v1854 = vpop.f32.mrf.mxu0
      %v1855 = vadd.f32 %v1513, %v1854
      %1856 = vmatmul.f32.gmra.mxu0 %v1745
      %v1857 = vpop.f32.mrf.mxu0
      %v1858 = vadd.f32 %v1515, %v1857
      %1859 = vmatmul.f32.gmra.mxu0 %v1748
      %v1860 = vpop.f32.mrf.mxu0
      %v1861 = vadd.f32 %v1517, %v1860
      %1862 = vmatmul.f32.gmra.mxu0 %v1751
      %v1863 = vpop.f32.mrf.mxu0
      %v1864 = vadd.f32 %v1519, %v1863
      %1865 = vmatmul.f32.gmra.mxu0 %v1754
      %v1866 = vpop.f32.mrf.mxu0
      %v1867 = vadd.f32 %v1521, %v1866
      %1868 = vmatmul.f32.gmra.mxu0 %v1757
      %v1869 = vpop.f32.mrf.mxu0
      %v1870 = vadd.f32 %v1523, %v1869
      %1871 = vmatmul.f32.gmra.mxu0 %v1760
      %v1872 = vpop.f32.mrf.mxu0
      %v1873 = vadd.f32 %v1525, %v1872
      %1874 = vmatmul.f32.gmra.mxu0 %v1763
      %v1875 = vpop.f32.mrf.mxu0
      %v1876 = vadd.f32 %v1527, %v1875
      %1877 = vmatmul.f32.gmra.mxu0 %v1766
      %v1878 = vpop.f32.mrf.mxu0
      %v1879 = vadd.f32 %v1529, %v1878
      %1880 = vmatmul.f32.gmra.mxu0 %v1769
      %v1881 = vpop.f32.mrf.mxu0
      %v1882 = vadd.f32 %v1531, %v1881
      %1883 = vmatmul.f32.gmra.mxu0 %v1772
      %v1884 = vpop.f32.mrf.mxu0
      %v1885 = vadd.f32 %v1533, %v1884
      %1886 = vmatmul.f32.gmra.mxu0 %v1775
      %v1887 = vpop.f32.mrf.mxu0
      %v1888 = vadd.f32 %v1535, %v1887
      %1889 = vmatmul.f32.gmra.mxu0 %v1778
      %v1890 = vpop.f32.mrf.mxu0
      %v1891 = vadd.f32 %v1537, %v1890
      %1892 = vmatmul.f32.gmra.mxu0 %v1781
      %v1893 = vpop.f32.mrf.mxu0
      %v1894 = vadd.f32 %v1539, %v1893
      %1895 = vdwg.mxu0
      %1896 = vmatpush.msra.mxu0 0.0
      %1897 = vmatpush.msra.mxu0 0.0
      %1898 = vmatpush.msra.mxu0 0.0
      %1899 = vmatpush.msra.mxu0 0.0
      %1900 = vmatpush.msra.mxu0 0.0
      %1901 = vmatpush.msra.mxu0 0.0
      %1902 = vmatpush.msra.mxu0 0.0
      %1903 = vmatpush.msra.mxu0 0.0
      %1904 = vmatpush.msra.mxu0 0.0
      %1905 = vmatpush.msra.mxu0 0.0
      %1906 = vmatpush.msra.mxu0 0.0
      %1907 = vmatpush.msra.mxu0 0.0
      %1908 = vmatpush.msra.mxu0 0.0
      %1909 = vmatpush.msra.mxu0 0.0
      %1910 = vmatpush.msra.mxu0 0.0
      %1911 = vmatpush.msra.mxu0 %v1618
      %1912 = vmatmul.f32.gmra.mxu0 %v1688
      %v1913 = vpop.f32.mrf.mxu0
      %v1914 = vadd.f32 %v1478, %v1913
      %1915 = vmatmul.f32.gmra.mxu0 %v1691
      %v1916 = vpop.f32.mrf.mxu0
      %v1917 = vadd.f32 %v1480, %v1916
      %1918 = vmatmul.f32.gmra.mxu0 %v1694
      %v1919 = vpop.f32.mrf.mxu0
      %v1920 = vadd.f32 %v1482, %v1919
      %1921 = vmatmul.f32.gmra.mxu0 %v1697
      %v1922 = vpop.f32.mrf.mxu0
      %v1923 = vadd.f32 %v1484, %v1922
      %1924 = vmatmul.f32.gmra.mxu0 %v1700
      %v1925 = vpop.f32.mrf.mxu0
      %v1926 = vadd.f32 %v1486, %v1925
      %1927 = vmatmul.f32.gmra.mxu0 %v1703
      %v1928 = vpop.f32.mrf.mxu0
      %v1929 = vadd.f32 %v1488, %v1928
      %1930 = vmatmul.f32.gmra.mxu0 %v1706
      %v1931 = vpop.f32.mrf.mxu0
      %v1932 = vadd.f32 %v1490, %v1931
      %1933 = vmatmul.f32.gmra.mxu0 %v1709
      %v1934 = vpop.f32.mrf.mxu0
      %v1935 = vadd.f32 %v1492, %v1934
      %1936 = vmatmul.f32.gmra.mxu0 %v1712
      %v1937 = vpop.f32.mrf.mxu0
      %v1938 = vadd.f32 %v1494, %v1937
      %1939 = vmatmul.f32.gmra.mxu0 %v1715
      %v1940 = vpop.f32.mrf.mxu0
      %v1941 = vadd.f32 %v1496, %v1940
      %1942 = vmatmul.f32.gmra.mxu0 %v1718
      %v1943 = vpop.f32.mrf.mxu0
      %v1944 = vadd.f32 %v1498, %v1943
      %1945 = vmatmul.f32.gmra.mxu0 %v1721
      %v1946 = vpop.f32.mrf.mxu0
      %v1947 = vadd.f32 %v1500, %v1946
      %1948 = vmatmul.f32.gmra.mxu0 %v1724
      %v1949 = vpop.f32.mrf.mxu0
      %v1950 = vadd.f32 %v1502, %v1949
      %1951 = vmatmul.f32.gmra.mxu0 %v1727
      %v1952 = vpop.f32.mrf.mxu0
      %v1953 = vadd.f32 %v1504, %v1952
      %1954 = vmatmul.f32.gmra.mxu0 %v1730
      %v1955 = vpop.f32.mrf.mxu0
      %v1956 = vadd.f32 %v1506, %v1955
      %1957 = vmatmul.f32.gmra.mxu0 %v1733
      %v1958 = vpop.f32.mrf.mxu0
      %v1959 = vadd.f32 %v1508, %v1958
      %1960 = vmatmul.f32.gmra.mxu0 %v1736
      %v1961 = vpop.f32.mrf.mxu0
      %v1962 = vadd.f32 %v1510, %v1961
      %1963 = vmatmul.f32.gmra.mxu0 %v1739
      %v1964 = vpop.f32.mrf.mxu0
      %v1965 = vadd.f32 %v1512, %v1964
      %1966 = vmatmul.f32.gmra.mxu0 %v1742
      %v1967 = vpop.f32.mrf.mxu0
      %v1968 = vadd.f32 %v1514, %v1967
      %1969 = vmatmul.f32.gmra.mxu0 %v1745
      %v1970 = vpop.f32.mrf.mxu0
      %v1971 = vadd.f32 %v1516, %v1970
      %1972 = vmatmul.f32.gmra.mxu0 %v1748
      %v1973 = vpop.f32.mrf.mxu0
      %v1974 = vadd.f32 %v1518, %v1973
      %1975 = vmatmul.f32.gmra.mxu0 %v1751
      %v1976 = vpop.f32.mrf.mxu0
      %v1977 = vadd.f32 %v1520, %v1976
      %1978 = vmatmul.f32.gmra.mxu0 %v1754
      %v1979 = vpop.f32.mrf.mxu0
      %v1980 = vadd.f32 %v1522, %v1979
      %1981 = vmatmul.f32.gmra.mxu0 %v1757
      %v1982 = vpop.f32.mrf.mxu0
      %v1983 = vadd.f32 %v1524, %v1982
      %1984 = vmatmul.f32.gmra.mxu0 %v1760
      %v1985 = vpop.f32.mrf.mxu0
      %v1986 = vadd.f32 %v1526, %v1985
      %1987 = vmatmul.f32.gmra.mxu0 %v1763
      %v1988 = vpop.f32.mrf.mxu0
      %v1989 = vadd.f32 %v1528, %v1988
      %1990 = vmatmul.f32.gmra.mxu0 %v1766
      %v1991 = vpop.f32.mrf.mxu0
      %v1992 = vadd.f32 %v1530, %v1991
      %1993 = vmatmul.f32.gmra.mxu0 %v1769
      %v1994 = vpop.f32.mrf.mxu0
      %v1995 = vadd.f32 %v1532, %v1994
      %1996 = vmatmul.f32.gmra.mxu0 %v1772
      %v1997 = vpop.f32.mrf.mxu0
      %v1998 = vadd.f32 %v1534, %v1997
      %1999 = vmatmul.f32.gmra.mxu0 %v1775
      %v2000 = vpop.f32.mrf.mxu0
      %v2001 = vadd.f32 %v1536, %v2000
      %2002 = vmatmul.f32.gmra.mxu0 %v1778
      %v2003 = vpop.f32.mrf.mxu0
      %v2004 = vadd.f32 %v1538, %v2003
      %2005 = vmatmul.f32.gmra.mxu0 %v1781
      %v2006 = vpop.f32.mrf.mxu0
      %v2007 = vadd.f32 %v1540, %v2006
      %2008 = vdwg.mxu0
      %v2009 = vmax.f32 %v1801, %v1914
      %2010 = vmax.xlane.f32.xlu0 %v2009
      %v2011 = vpop.xlane.xlu0 %2010
      %v2012 = vmax.f32 %v1804, %v1917
      %2013 = vmax.xlane.f32.xlu0 %v2012
      %v2014 = vpop.xlane.xlu0 %2013
      %v2015 = vmax.f32 %v1807, %v1920
      %2016 = vmax.xlane.f32.xlu0 %v2015
      %v2017 = vpop.xlane.xlu0 %2016
      %v2018 = vmax.f32 %v1810, %v1923
      %2019 = vmax.xlane.f32.xlu0 %v2018
      %v2020 = vpop.xlane.xlu0 %2019
      %v2021 = vmax.f32 %v1813, %v1926
      %2022 = vmax.xlane.f32.xlu0 %v2021
      %v2023 = vpop.xlane.xlu0 %2022
      %v2024 = vmax.f32 %v1816, %v1929
      %2025 = vmax.xlane.f32.xlu0 %v2024
      %v2026 = vpop.xlane.xlu0 %2025
      %v2027 = vmax.f32 %v1819, %v1932
      %2028 = vmax.xlane.f32.xlu0 %v2027
      %v2029 = vpop.xlane.xlu0 %2028
      %v2030 = vmax.f32 %v1822, %v1935
      %2031 = vmax.xlane.f32.xlu0 %v2030
      %v2032 = vpop.xlane.xlu0 %2031
      %v2033 = vmax.f32 %v1825, %v1938
      %2034 = vmax.xlane.f32.xlu0 %v2033
      %v2035 = vpop.xlane.xlu0 %2034
      %v2036 = vmax.f32 %v1828, %v1941
      %2037 = vmax.xlane.f32.xlu0 %v2036
      %v2038 = vpop.xlane.xlu0 %2037
      %v2039 = vmax.f32 %v1831, %v1944
      %2040 = vmax.xlane.f32.xlu0 %v2039
      %v2041 = vpop.xlane.xlu0 %2040
      %v2042 = vmax.f32 %v1834, %v1947
      %2043 = vmax.xlane.f32.xlu0 %v2042
      %v2044 = vpop.xlane.xlu0 %2043
      %v2045 = vmax.f32 %v1837, %v1950
      %2046 = vmax.xlane.f32.xlu0 %v2045
      %v2047 = vpop.xlane.xlu0 %2046
      %v2048 = vmax.f32 %v1840, %v1953
      %2049 = vmax.xlane.f32.xlu0 %v2048
      %v2050 = vpop.xlane.xlu0 %2049
      %v2051 = vmax.f32 %v1843, %v1956
      %2052 = vmax.xlane.f32.xlu0 %v2051
      %v2053 = vpop.xlane.xlu0 %2052
      %v2054 = vmax.f32 %v1846, %v1959
      %2055 = vmax.xlane.f32.xlu0 %v2054
      %v2056 = vpop.xlane.xlu0 %2055
      %v2057 = vmax.f32 %v1849, %v1962
      %2058 = vmax.xlane.f32.xlu0 %v2057
      %v2059 = vpop.xlane.xlu0 %2058
      %v2060 = vmax.f32 %v1852, %v1965
      %2061 = vmax.xlane.f32.xlu0 %v2060
      %v2062 = vpop.xlane.xlu0 %2061
      %v2063 = vmax.f32 %v1855, %v1968
      %2064 = vmax.xlane.f32.xlu0 %v2063
      %v2065 = vpop.xlane.xlu0 %2064
      %v2066 = vmax.f32 %v1858, %v1971
      %2067 = vmax.xlane.f32.xlu0 %v2066
      %v2068 = vpop.xlane.xlu0 %2067
      %v2069 = vmax.f32 %v1861, %v1974
      %2070 = vmax.xlane.f32.xlu0 %v2069
      %v2071 = vpop.xlane.xlu0 %2070
      %v2072 = vmax.f32 %v1864, %v1977
      %2073 = vmax.xlane.f32.xlu0 %v2072
      %v2074 = vpop.xlane.xlu0 %2073
      %v2075 = vmax.f32 %v1867, %v1980
      %2076 = vmax.xlane.f32.xlu0 %v2075
      %v2077 = vpop.xlane.xlu0 %2076
      %v2078 = vmax.f32 %v1870, %v1983
      %2079 = vmax.xlane.f32.xlu0 %v2078
      %v2080 = vpop.xlane.xlu0 %2079
      %v2081 = vmax.f32 %v1873, %v1986
      %2082 = vmax.xlane.f32.xlu0 %v2081
      %v2083 = vpop.xlane.xlu0 %2082
      %v2084 = vmax.f32 %v1876, %v1989
      %2085 = vmax.xlane.f32.xlu0 %v2084
      %v2086 = vpop.xlane.xlu0 %2085
      %v2087 = vmax.f32 %v1879, %v1992
      %2088 = vmax.xlane.f32.xlu0 %v2087
      %v2089 = vpop.xlane.xlu0 %2088
      %v2090 = vmax.f32 %v1882, %v1995
      %2091 = vmax.xlane.f32.xlu0 %v2090
      %v2092 = vpop.xlane.xlu0 %2091
      %v2093 = vmax.f32 %v1885, %v1998
      %2094 = vmax.xlane.f32.xlu0 %v2093
      %v2095 = vpop.xlane.xlu0 %2094
      %v2096 = vmax.f32 %v1888, %v2001
      %2097 = vmax.xlane.f32.xlu0 %v2096
      %v2098 = vpop.xlane.xlu0 %2097
      %v2099 = vmax.f32 %v1891, %v2004
      %2100 = vmax.xlane.f32.xlu0 %v2099
      %v2101 = vpop.xlane.xlu0 %2100
      %v2102 = vmax.f32 %v1894, %v2007
      %2103 = vmax.xlane.f32.xlu0 %v2102
      %v2104 = vpop.xlane.xlu0 %2103
      %v2105 = vsub.f32 %v1801, %v2011
      %v2106 = vsub.f32 %v1914, %v2011
      %v2107 = vsub.f32 %v1804, %v2014
      %v2108 = vsub.f32 %v1917, %v2014
      %v2109 = vsub.f32 %v1807, %v2017
      %v2110 = vsub.f32 %v1920, %v2017
      %v2111 = vsub.f32 %v1810, %v2020
      %v2112 = vsub.f32 %v1923, %v2020
      %v2113 = vsub.f32 %v1813, %v2023
      %v2114 = vsub.f32 %v1926, %v2023
      %v2115 = vsub.f32 %v1816, %v2026
      %v2116 = vsub.f32 %v1929, %v2026
      %v2117 = vsub.f32 %v1819, %v2029
      %v2118 = vsub.f32 %v1932, %v2029
      %v2119 = vsub.f32 %v1822, %v2032
      %v2120 = vsub.f32 %v1935, %v2032
      %v2121 = vsub.f32 %v1825, %v2035
      %v2122 = vsub.f32 %v1938, %v2035
      %v2123 = vsub.f32 %v1828, %v2038
      %v2124 = vsub.f32 %v1941, %v2038
      %v2125 = vsub.f32 %v1831, %v2041
      %v2126 = vsub.f32 %v1944, %v2041
      %v2127 = vsub.f32 %v1834, %v2044
      %v2128 = vsub.f32 %v1947, %v2044
      %v2129 = vsub.f32 %v1837, %v2047
      %v2130 = vsub.f32 %v1950, %v2047
      %v2131 = vsub.f32 %v1840, %v2050
      %v2132 = vsub.f32 %v1953, %v2050
      %v2133 = vsub.f32 %v1843, %v2053
      %v2134 = vsub.f32 %v1956, %v2053
      %v2135 = vsub.f32 %v1846, %v2056
      %v2136 = vsub.f32 %v1959, %v2056
      %v2137 = vsub.f32 %v1849, %v2059
      %v2138 = vsub.f32 %v1962, %v2059
      %v2139 = vsub.f32 %v1852, %v2062
      %v2140 = vsub.f32 %v1965, %v2062
      %v2141 = vsub.f32 %v1855, %v2065
      %v2142 = vsub.f32 %v1968, %v2065
      %v2143 = vsub.f32 %v1858, %v2068
      %v2144 = vsub.f32 %v1971, %v2068
      %v2145 = vsub.f32 %v1861, %v2071
      %v2146 = vsub.f32 %v1974, %v2071
      %v2147 = vsub.f32 %v1864, %v2074
      %v2148 = vsub.f32 %v1977, %v2074
      %v2149 = vsub.f32 %v1867, %v2077
      %v2150 = vsub.f32 %v1980, %v2077
      %v2151 = vsub.f32 %v1870, %v2080
      %v2152 = vsub.f32 %v1983, %v2080
      %v2153 = vsub.f32 %v1873, %v2083
      %v2154 = vsub.f32 %v1986, %v2083
      %v2155 = vsub.f32 %v1876, %v2086
      %v2156 = vsub.f32 %v1989, %v2086
      %v2157 = vsub.f32 %v1879, %v2089
      %v2158 = vsub.f32 %v1992, %v2089
      %v2159 = vsub.f32 %v1882, %v2092
      %v2160 = vsub.f32 %v1995, %v2092
      %v2161 = vsub.f32 %v1885, %v2095
      %v2162 = vsub.f32 %v1998, %v2095
      %v2163 = vsub.f32 %v1888, %v2098
      %v2164 = vsub.f32 %v2001, %v2098
      %v2165 = vsub.f32 %v1891, %v2101
      %v2166 = vsub.f32 %v2004, %v2101
      %v2167 = vsub.f32 %v1894, %v2104
      %v2168 = vsub.f32 %v2007, %v2104
      %v2169 = vmul.f32 %v2105, 1.442695
      %v2170 = vpow.pop %v2169
      %v2171 = vmul.f32 %v2106, 1.442695
      %v2172 = vpow.pop %v2171
      %v2173 = vmul.f32 %v2107, 1.442695
      %v2174 = vpow.pop %v2173
      %v2175 = vmul.f32 %v2108, 1.442695
      %v2176 = vpow.pop %v2175
      %v2177 = vmul.f32 %v2109, 1.442695
      %v2178 = vpow.pop %v2177
      %v2179 = vmul.f32 %v2110, 1.442695
      %v2180 = vpow.pop %v2179
      %v2181 = vmul.f32 %v2111, 1.442695
      %v2182 = vpow.pop %v2181
      %v2183 = vmul.f32 %v2112, 1.442695
      %v2184 = vpow.pop %v2183
      %v2185 = vmul.f32 %v2113, 1.442695
      %v2186 = vpow.pop %v2185
      %v2187 = vmul.f32 %v2114, 1.442695
      %v2188 = vpow.pop %v2187
      %v2189 = vmul.f32 %v2115, 1.442695
      %v2190 = vpow.pop %v2189
      %v2191 = vmul.f32 %v2116, 1.442695
      %v2192 = vpow.pop %v2191
      %v2193 = vmul.f32 %v2117, 1.442695
      %v2194 = vpow.pop %v2193
      %v2195 = vmul.f32 %v2118, 1.442695
      %v2196 = vpow.pop %v2195
      %v2197 = vmul.f32 %v2119, 1.442695
      %v2198 = vpow.pop %v2197
      %v2199 = vmul.f32 %v2120, 1.442695
      %v2200 = vpow.pop %v2199
      %v2201 = vmul.f32 %v2121, 1.442695
      %v2202 = vpow.pop %v2201
      %v2203 = vmul.f32 %v2122, 1.442695
      %v2204 = vpow.pop %v2203
      %v2205 = vmul.f32 %v2123, 1.442695
      %v2206 = vpow.pop %v2205
      %v2207 = vmul.f32 %v2124, 1.442695
      %v2208 = vpow.pop %v2207
      %v2209 = vmul.f32 %v2125, 1.442695
      %v2210 = vpow.pop %v2209
      %v2211 = vmul.f32 %v2126, 1.442695
      %v2212 = vpow.pop %v2211
      %v2213 = vmul.f32 %v2127, 1.442695
      %v2214 = vpow.pop %v2213
      %v2215 = vmul.f32 %v2128, 1.442695
      %v2216 = vpow.pop %v2215
      %v2217 = vmul.f32 %v2129, 1.442695
      %v2218 = vpow.pop %v2217
      %v2219 = vmul.f32 %v2130, 1.442695
      %v2220 = vpow.pop %v2219
      %v2221 = vmul.f32 %v2131, 1.442695
      %v2222 = vpow.pop %v2221
      %v2223 = vmul.f32 %v2132, 1.442695
      %v2224 = vpow.pop %v2223
      %v2225 = vmul.f32 %v2133, 1.442695
      %v2226 = vpow.pop %v2225
      %v2227 = vmul.f32 %v2134, 1.442695
      %v2228 = vpow.pop %v2227
      %v2229 = vmul.f32 %v2135, 1.442695
      %v2230 = vpow.pop %v2229
      %v2231 = vmul.f32 %v2136, 1.442695
      %v2232 = vpow.pop %v2231
      %v2233 = vmul.f32 %v2137, 1.442695
      %v2234 = vpow.pop %v2233
      %v2235 = vmul.f32 %v2138, 1.442695
      %v2236 = vpow.pop %v2235
      %v2237 = vmul.f32 %v2139, 1.442695
      %v2238 = vpow.pop %v2237
      %v2239 = vmul.f32 %v2140, 1.442695
      %v2240 = vpow.pop %v2239
      %v2241 = vmul.f32 %v2141, 1.442695
      %v2242 = vpow.pop %v2241
      %v2243 = vmul.f32 %v2142, 1.442695
      %v2244 = vpow.pop %v2243
      %v2245 = vmul.f32 %v2143, 1.442695
      %v2246 = vpow.pop %v2245
      %v2247 = vmul.f32 %v2144, 1.442695
      %v2248 = vpow.pop %v2247
      %v2249 = vmul.f32 %v2145, 1.442695
      %v2250 = vpow.pop %v2249
      %v2251 = vmul.f32 %v2146, 1.442695
      %v2252 = vpow.pop %v2251
      %v2253 = vmul.f32 %v2147, 1.442695
      %v2254 = vpow.pop %v2253
      %v2255 = vmul.f32 %v2148, 1.442695
      %v2256 = vpow.pop %v2255
      %v2257 = vmul.f32 %v2149, 1.442695
      %v2258 = vpow.pop %v2257
      %v2259 = vmul.f32 %v2150, 1.442695
      %v2260 = vpow.pop %v2259
      %v2261 = vmul.f32 %v2151, 1.442695
      %v2262 = vpow.pop %v2261
      %v2263 = vmul.f32 %v2152, 1.442695
      %v2264 = vpow.pop %v2263
      %v2265 = vmul.f32 %v2153, 1.442695
      %v2266 = vpow.pop %v2265
      %v2267 = vmul.f32 %v2154, 1.442695
      %v2268 = vpow.pop %v2267
      %v2269 = vmul.f32 %v2155, 1.442695
      %v2270 = vpow.pop %v2269
      %v2271 = vmul.f32 %v2156, 1.442695
      %v2272 = vpow.pop %v2271
      %v2273 = vmul.f32 %v2157, 1.442695
      %v2274 = vpow.pop %v2273
      %v2275 = vmul.f32 %v2158, 1.442695
      %v2276 = vpow.pop %v2275
      %v2277 = vmul.f32 %v2159, 1.442695
      %v2278 = vpow.pop %v2277
      %v2279 = vmul.f32 %v2160, 1.442695
      %v2280 = vpow.pop %v2279
      %v2281 = vmul.f32 %v2161, 1.442695
      %v2282 = vpow.pop %v2281
      %v2283 = vmul.f32 %v2162, 1.442695
      %v2284 = vpow.pop %v2283
      %v2285 = vmul.f32 %v2163, 1.442695
      %v2286 = vpow.pop %v2285
      %v2287 = vmul.f32 %v2164, 1.442695
      %v2288 = vpow.pop %v2287
      %v2289 = vmul.f32 %v2165, 1.442695
      %v2290 = vpow.pop %v2289
      %v2291 = vmul.f32 %v2166, 1.442695
      %v2292 = vpow.pop %v2291
      %v2293 = vmul.f32 %v2167, 1.442695
      %v2294 = vpow.pop %v2293
      %v2295 = vmul.f32 %v2168, 1.442695
      %v2296 = vpow.pop %v2295
      %v2297 = vadd.f32 %v2170, %v2172
      %2298 = vadd.xlane.f32.xlu0 %v2297
      %v2299 = vpop.xlane.xlu0 %2298
      %v2300 = vadd.f32 %v2174, %v2176
      %2301 = vadd.xlane.f32.xlu0 %v2300
      %v2302 = vpop.xlane.xlu0 %2301
      %v2303 = vadd.f32 %v2178, %v2180
      %2304 = vadd.xlane.f32.xlu0 %v2303
      %v2305 = vpop.xlane.xlu0 %2304
      %v2306 = vadd.f32 %v2182, %v2184
      %2307 = vadd.xlane.f32.xlu0 %v2306
      %v2308 = vpop.xlane.xlu0 %2307
      %v2309 = vadd.f32 %v2186, %v2188
      %2310 = vadd.xlane.f32.xlu0 %v2309
      %v2311 = vpop.xlane.xlu0 %2310
      %v2312 = vadd.f32 %v2190, %v2192
      %2313 = vadd.xlane.f32.xlu0 %v2312
      %v2314 = vpop.xlane.xlu0 %2313
      %v2315 = vadd.f32 %v2194, %v2196
      %2316 = vadd.xlane.f32.xlu0 %v2315
      %v2317 = vpop.xlane.xlu0 %2316
      %v2318 = vadd.f32 %v2198, %v2200
      %2319 = vadd.xlane.f32.xlu0 %v2318
      %v2320 = vpop.xlane.xlu0 %2319
      %v2321 = vadd.f32 %v2202, %v2204
      %2322 = vadd.xlane.f32.xlu0 %v2321
      %v2323 = vpop.xlane.xlu0 %2322
      %v2324 = vadd.f32 %v2206, %v2208
      %2325 = vadd.xlane.f32.xlu0 %v2324
      %v2326 = vpop.xlane.xlu0 %2325
      %v2327 = vadd.f32 %v2210, %v2212
      %2328 = vadd.xlane.f32.xlu0 %v2327
      %v2329 = vpop.xlane.xlu0 %2328
      %v2330 = vadd.f32 %v2214, %v2216
      %2331 = vadd.xlane.f32.xlu0 %v2330
      %v2332 = vpop.xlane.xlu0 %2331
      %v2333 = vadd.f32 %v2218, %v2220
      %2334 = vadd.xlane.f32.xlu0 %v2333
      %v2335 = vpop.xlane.xlu0 %2334
      %v2336 = vadd.f32 %v2222, %v2224
      %2337 = vadd.xlane.f32.xlu0 %v2336
      %v2338 = vpop.xlane.xlu0 %2337
      %v2339 = vadd.f32 %v2226, %v2228
      %2340 = vadd.xlane.f32.xlu0 %v2339
      %v2341 = vpop.xlane.xlu0 %2340
      %v2342 = vadd.f32 %v2230, %v2232
      %2343 = vadd.xlane.f32.xlu0 %v2342
      %v2344 = vpop.xlane.xlu0 %2343
      %v2345 = vadd.f32 %v2234, %v2236
      %2346 = vadd.xlane.f32.xlu0 %v2345
      %v2347 = vpop.xlane.xlu0 %2346
      %v2348 = vadd.f32 %v2238, %v2240
      %2349 = vadd.xlane.f32.xlu0 %v2348
      %v2350 = vpop.xlane.xlu0 %2349
      %v2351 = vadd.f32 %v2242, %v2244
      %2352 = vadd.xlane.f32.xlu0 %v2351
      %v2353 = vpop.xlane.xlu0 %2352
      %v2354 = vadd.f32 %v2246, %v2248
      %2355 = vadd.xlane.f32.xlu0 %v2354
      %v2356 = vpop.xlane.xlu0 %2355
      %v2357 = vadd.f32 %v2250, %v2252
      %2358 = vadd.xlane.f32.xlu0 %v2357
      %v2359 = vpop.xlane.xlu0 %2358
      %v2360 = vadd.f32 %v2254, %v2256
      %2361 = vadd.xlane.f32.xlu0 %v2360
      %v2362 = vpop.xlane.xlu0 %2361
      %v2363 = vadd.f32 %v2258, %v2260
      %2364 = vadd.xlane.f32.xlu0 %v2363
      %v2365 = vpop.xlane.xlu0 %2364
      %v2366 = vadd.f32 %v2262, %v2264
      %2367 = vadd.xlane.f32.xlu0 %v2366
      %v2368 = vpop.xlane.xlu0 %2367
      %v2369 = vadd.f32 %v2266, %v2268
      %2370 = vadd.xlane.f32.xlu0 %v2369
      %v2371 = vpop.xlane.xlu0 %2370
      %v2372 = vadd.f32 %v2270, %v2272
      %2373 = vadd.xlane.f32.xlu0 %v2372
      %v2374 = vpop.xlane.xlu0 %2373
      %v2375 = vadd.f32 %v2274, %v2276
      %2376 = vadd.xlane.f32.xlu0 %v2375
      %v2377 = vpop.xlane.xlu0 %2376
      %v2378 = vadd.f32 %v2278, %v2280
      %2379 = vadd.xlane.f32.xlu0 %v2378
      %v2380 = vpop.xlane.xlu0 %2379
      %v2381 = vadd.f32 %v2282, %v2284
      %2382 = vadd.xlane.f32.xlu0 %v2381
      %v2383 = vpop.xlane.xlu0 %2382
      %v2384 = vadd.f32 %v2286, %v2288
      %2385 = vadd.xlane.f32.xlu0 %v2384
      %v2386 = vpop.xlane.xlu0 %2385
      %v2387 = vadd.f32 %v2290, %v2292
      %2388 = vadd.xlane.f32.xlu0 %v2387
      %v2389 = vpop.xlane.xlu0 %2388
      %v2390 = vadd.f32 %v2294, %v2296
      %2391 = vadd.xlane.f32.xlu0 %v2390
      %v2392 = vpop.xlane.xlu0 %2391
      %v2393 = vrcp.pop %v2299
      %v2394 = vrcp.pop %v2302
      %v2395 = vrcp.pop %v2305
      %v2396 = vrcp.pop %v2308
      %v2397 = vrcp.pop %v2311
      %v2398 = vrcp.pop %v2314
      %v2399 = vrcp.pop %v2317
      %v2400 = vrcp.pop %v2320
      %v2401 = vrcp.pop %v2323
      %v2402 = vrcp.pop %v2326
      %v2403 = vrcp.pop %v2329
      %v2404 = vrcp.pop %v2332
      %v2405 = vrcp.pop %v2335
      %v2406 = vrcp.pop %v2338
      %v2407 = vrcp.pop %v2341
      %v2408 = vrcp.pop %v2344
      %v2409 = vrcp.pop %v2347
      %v2410 = vrcp.pop %v2350
      %v2411 = vrcp.pop %v2353
      %v2412 = vrcp.pop %v2356
      %v2413 = vrcp.pop %v2359
      %v2414 = vrcp.pop %v2362
      %v2415 = vrcp.pop %v2365
      %v2416 = vrcp.pop %v2368
      %v2417 = vrcp.pop %v2371
      %v2418 = vrcp.pop %v2374
      %v2419 = vrcp.pop %v2377
      %v2420 = vrcp.pop %v2380
      %v2421 = vrcp.pop %v2383
      %v2422 = vrcp.pop %v2386
      %v2423 = vrcp.pop %v2389
      %v2424 = vrcp.pop %v2392
      %v2425 = vmul.f32 %v2170, %v2393
      %v2426 = vmul.f32 %v2172, %v2393
      %v2427 = vmul.f32 %v2174, %v2394
      %v2428 = vmul.f32 %v2176, %v2394
      %v2429 = vmul.f32 %v2178, %v2395
      %v2430 = vmul.f32 %v2180, %v2395
      %v2431 = vmul.f32 %v2182, %v2396
      %v2432 = vmul.f32 %v2184, %v2396
      %v2433 = vmul.f32 %v2186, %v2397
      %v2434 = vmul.f32 %v2188, %v2397
      %v2435 = vmul.f32 %v2190, %v2398
      %v2436 = vmul.f32 %v2192, %v2398
      %v2437 = vmul.f32 %v2194, %v2399
      %v2438 = vmul.f32 %v2196, %v2399
      %v2439 = vmul.f32 %v2198, %v2400
      %v2440 = vmul.f32 %v2200, %v2400
      %v2441 = vmul.f32 %v2202, %v2401
      %v2442 = vmul.f32 %v2204, %v2401
      %v2443 = vmul.f32 %v2206, %v2402
      %v2444 = vmul.f32 %v2208, %v2402
      %v2445 = vmul.f32 %v2210, %v2403
      %v2446 = vmul.f32 %v2212, %v2403
      %v2447 = vmul.f32 %v2214, %v2404
      %v2448 = vmul.f32 %v2216, %v2404
      %v2449 = vmul.f32 %v2218, %v2405
      %v2450 = vmul.f32 %v2220, %v2405
      %v2451 = vmul.f32 %v2222, %v2406
      %v2452 = vmul.f32 %v2224, %v2406
      %v2453 = vmul.f32 %v2226, %v2407
      %v2454 = vmul.f32 %v2228, %v2407
      %v2455 = vmul.f32 %v2230, %v2408
      %v2456 = vmul.f32 %v2232, %v2408
      %v2457 = vmul.f32 %v2234, %v2409
      %v2458 = vmul.f32 %v2236, %v2409
      %v2459 = vmul.f32 %v2238, %v2410
      %v2460 = vmul.f32 %v2240, %v2410
      %v2461 = vmul.f32 %v2242, %v2411
      %v2462 = vmul.f32 %v2244, %v2411
      %v2463 = vmul.f32 %v2246, %v2412
      %v2464 = vmul.f32 %v2248, %v2412
      %v2465 = vmul.f32 %v2250, %v2413
      %v2466 = vmul.f32 %v2252, %v2413
      %v2467 = vmul.f32 %v2254, %v2414
      %v2468 = vmul.f32 %v2256, %v2414
      %v2469 = vmul.f32 %v2258, %v2415
      %v2470 = vmul.f32 %v2260, %v2415
      %v2471 = vmul.f32 %v2262, %v2416
      %v2472 = vmul.f32 %v2264, %v2416
      %v2473 = vmul.f32 %v2266, %v2417
      %v2474 = vmul.f32 %v2268, %v2417
      %v2475 = vmul.f32 %v2270, %v2418
      %v2476 = vmul.f32 %v2272, %v2418
      %v2477 = vmul.f32 %v2274, %v2419
      %v2478 = vmul.f32 %v2276, %v2419
      %v2479 = vmul.f32 %v2278, %v2420
      %v2480 = vmul.f32 %v2280, %v2420
      %v2481 = vmul.f32 %v2282, %v2421
      %v2482 = vmul.f32 %v2284, %v2421
      %v2483 = vmul.f32 %v2286, %v2422
      %v2484 = vmul.f32 %v2288, %v2422
      %v2485 = vmul.f32 %v2290, %v2423
      %v2486 = vmul.f32 %v2292, %v2423
      %v2487 = vmul.f32 %v2294, %v2424
      %v2488 = vmul.f32 %v2296, %v2424
      %2489 = vmatpush.xpose.msra.mxu0 %v2455
      %2490 = vmatpush.xpose.msra.mxu0 %v2453
      %2491 = vmatpush.xpose.msra.mxu0 %v2451
      %2492 = vmatpush.xpose.msra.mxu0 %v2449
      %2493 = vmatpush.xpose.msra.mxu0 %v2447
      %2494 = vmatpush.xpose.msra.mxu0 %v2445
      %2495 = vmatpush.xpose.msra.mxu0 %v2443
      %2496 = vmatpush.xpose.msra.mxu0 %v2441
      %2497 = vmatpush.xpose.msra.mxu0 %v2439
      %2498 = vmatpush.xpose.msra.mxu0 %v2437
      %2499 = vmatpush.xpose.msra.mxu0 %v2435
      %2500 = vmatpush.xpose.msra.mxu0 %v2433
      %2501 = vmatpush.xpose.msra.mxu0 %v2431
      %2502 = vmatpush.xpose.msra.mxu0 %v2429
      %2503 = vmatpush.xpose.msra.mxu0 %v2427
      %2504 = vmatpush.xpose.msra.mxu0 %v2425
      %2505 = vmatmul.f32.gmra.mxu0 %v1595
      %v2506 = vpop.f32.mrf.mxu0
      %v2507 = vadd.f32 0.0, %v2506
      %2508 = vdwg.mxu0
      %2509 = vmatpush.xpose.msra.mxu0 %v2456
      %2510 = vmatpush.xpose.msra.mxu0 %v2454
      %2511 = vmatpush.xpose.msra.mxu0 %v2452
      %2512 = vmatpush.xpose.msra.mxu0 %v2450
      %2513 = vmatpush.xpose.msra.mxu0 %v2448
      %2514 = vmatpush.xpose.msra.mxu0 %v2446
      %2515 = vmatpush.xpose.msra.mxu0 %v2444
      %2516 = vmatpush.xpose.msra.mxu0 %v2442
      %2517 = vmatpush.xpose.msra.mxu0 %v2440
      %2518 = vmatpush.xpose.msra.mxu0 %v2438
      %2519 = vmatpush.xpose.msra.mxu0 %v2436
      %2520 = vmatpush.xpose.msra.mxu0 %v2434
      %2521 = vmatpush.xpose.msra.mxu0 %v2432
      %2522 = vmatpush.xpose.msra.mxu0 %v2430
      %2523 = vmatpush.xpose.msra.mxu0 %v2428
      %2524 = vmatpush.xpose.msra.mxu0 %v2426
      %2525 = vmatmul.f32.gmra.mxu0 %v1621
      %v2526 = vpop.f32.mrf.mxu0
      %v2527 = vadd.f32 %v2507, %v2526
      %2528 = vdwg.mxu0
      %2529 = vmatpush.xpose.msra.mxu0 %v2487
      %2530 = vmatpush.xpose.msra.mxu0 %v2485
      %2531 = vmatpush.xpose.msra.mxu0 %v2483
      %2532 = vmatpush.xpose.msra.mxu0 %v2481
      %2533 = vmatpush.xpose.msra.mxu0 %v2479
      %2534 = vmatpush.xpose.msra.mxu0 %v2477
      %2535 = vmatpush.xpose.msra.mxu0 %v2475
      %2536 = vmatpush.xpose.msra.mxu0 %v2473
      %2537 = vmatpush.xpose.msra.mxu0 %v2471
      %2538 = vmatpush.xpose.msra.mxu0 %v2469
      %2539 = vmatpush.xpose.msra.mxu0 %v2467
      %2540 = vmatpush.xpose.msra.mxu0 %v2465
      %2541 = vmatpush.xpose.msra.mxu0 %v2463
      %2542 = vmatpush.xpose.msra.mxu0 %v2461
      %2543 = vmatpush.xpose.msra.mxu0 %v2459
      %2544 = vmatpush.xpose.msra.mxu0 %v2457
      %2545 = vmatmul.f32.gmra.mxu0 %v1595
      %v2546 = vpop.f32.mrf.mxu0
      %v2547 = vadd.f32 0.0, %v2546
      %2548 = vdwg.mxu0
      %2549 = vmatpush.xpose.msra.mxu0 %v2488
      %2550 = vmatpush.xpose.msra.mxu0 %v2486
      %2551 = vmatpush.xpose.msra.mxu0 %v2484
      %2552 = vmatpush.xpose.msra.mxu0 %v2482
      %2553 = vmatpush.xpose.msra.mxu0 %v2480
      %2554 = vmatpush.xpose.msra.mxu0 %v2478
      %2555 = vmatpush.xpose.msra.mxu0 %v2476
      %2556 = vmatpush.xpose.msra.mxu0 %v2474
      %2557 = vmatpush.xpose.msra.mxu0 %v2472
      %2558 = vmatpush.xpose.msra.mxu0 %v2470
      %2559 = vmatpush.xpose.msra.mxu0 %v2468
      %2560 = vmatpush.xpose.msra.mxu0 %v2466
      %2561 = vmatpush.xpose.msra.mxu0 %v2464
      %2562 = vmatpush.xpose.msra.mxu0 %v2462
      %2563 = vmatpush.xpose.msra.mxu0 %v2460
      %2564 = vmatpush.xpose.msra.mxu0 %v2458
      %2565 = vmatmul.f32.gmra.mxu0 %v1621
      %v2566 = vpop.f32.mrf.mxu0
      %v2567 = vadd.f32 %v2547, %v2566
      %2568 = vdwg.mxu0
      %v2569 = vld [vmem:[%s5 + $0x80] sm:$0xff]
      %v2570 = vld [vmem:[%s6 + $0x40] sm:$0xff]
      %2572 = vset.pattern.permute.xlu0 0
      %2573 = vperm.xlu0 %2572, %v2570
      %v2574 = vpop.permute.xlu0 %2573
      %v2577 = vsel %vm289, %v2569, 0
      %2579 = vmatpush.msra.mxu0 0.0
      %2580 = vmatpush.msra.mxu0 0.0
      %2581 = vmatpush.msra.mxu0 0.0
      %2582 = vmatpush.msra.mxu0 0.0
      %2583 = vmatpush.msra.mxu0 0.0
      %2584 = vmatpush.msra.mxu0 0.0
      %2585 = vmatpush.msra.mxu0 0.0
      %2586 = vmatpush.msra.mxu0 0.0
      %2587 = vmatpush.msra.mxu0 0.0
      %2588 = vmatpush.msra.mxu0 0.0
      %2589 = vmatpush.msra.mxu0 0.0
      %2590 = vmatpush.msra.mxu0 0.0
      %2591 = vmatpush.msra.mxu0 0.0
      %2592 = vmatpush.msra.mxu0 0.0
      %2593 = vmatpush.msra.mxu0 0.0
      %2594 = vmatpush.msra.mxu0 %v2527
      %2595 = vmatmul.f32.gmra.mxu0 %v2577
      %v2596 = vpop.f32.mrf.mxu0
      %v2597 = vadd.f32 %v2574, %v2596
      %2598 = vdwg.mxu0
      %2599 = vmatpush.msra.mxu0 0.0
      %2600 = vmatpush.msra.mxu0 0.0
      %2601 = vmatpush.msra.mxu0 0.0
      %2602 = vmatpush.msra.mxu0 0.0
      %2603 = vmatpush.msra.mxu0 0.0
      %2604 = vmatpush.msra.mxu0 0.0
      %2605 = vmatpush.msra.mxu0 0.0
      %2606 = vmatpush.msra.mxu0 0.0
      %2607 = vmatpush.msra.mxu0 0.0
      %2608 = vmatpush.msra.mxu0 0.0
      %2609 = vmatpush.msra.mxu0 0.0
      %2610 = vmatpush.msra.mxu0 0.0
      %2611 = vmatpush.msra.mxu0 0.0
      %2612 = vmatpush.msra.mxu0 0.0
      %2613 = vmatpush.msra.mxu0 0.0
      %2614 = vmatpush.msra.mxu0 %v2567
      %2615 = vmatmul.f32.gmra.mxu0 %v2577
      %v2616 = vpop.f32.mrf.mxu0
      %v2617 = vadd.f32 %v2574, %v2616
      %2618 = vdwg.mxu0
      %v2619 = vadd.f32 %v1475, %v2597
      %v2620 = vadd.f32 %v1476, %v2617
      %v2621 = vld [vmem:[%s5 + $0x90] sm:$0xff]
      %v2622 = vld [vmem:[%s6 + $0x48] sm:$0xff]
      %2624 = vset.pattern.permute.xlu0 0
      %2625 = vperm.xlu0 %2624, %v2622
      %v2626 = vpop.permute.xlu0 %2625
      %v2629 = vsel %vm289, %v2621, 0
      %2631 = vmatpush.msra.mxu0 0.0
      %2632 = vmatpush.msra.mxu0 0.0
      %2633 = vmatpush.msra.mxu0 0.0
      %2634 = vmatpush.msra.mxu0 0.0
      %2635 = vmatpush.msra.mxu0 0.0
      %2636 = vmatpush.msra.mxu0 0.0
      %2637 = vmatpush.msra.mxu0 0.0
      %2638 = vmatpush.msra.mxu0 0.0
      %2639 = vmatpush.msra.mxu0 0.0
      %2640 = vmatpush.msra.mxu0 0.0
      %2641 = vmatpush.msra.mxu0 0.0
      %2642 = vmatpush.msra.mxu0 0.0
      %2643 = vmatpush.msra.mxu0 0.0
      %2644 = vmatpush.msra.mxu0 0.0
      %2645 = vmatpush.msra.mxu0 0.0
      %2646 = vmatpush.msra.mxu0 %v2619
      %2647 = vmatmul.f32.gmra.mxu0 %v2629
      %v2648 = vpop.f32.mrf.mxu0
      %v2649 = vadd.f32 %v2626, %v2648
      %2650 = vdwg.mxu0
      %2651 = vmatpush.msra.mxu0 0.0
      %2652 = vmatpush.msra.mxu0 0.0
      %2653 = vmatpush.msra.mxu0 0.0
      %2654 = vmatpush.msra.mxu0 0.0
      %2655 = vmatpush.msra.mxu0 0.0
      %2656 = vmatpush.msra.mxu0 0.0
      %2657 = vmatpush.msra.mxu0 0.0
      %2658 = vmatpush.msra.mxu0 0.0
      %2659 = vmatpush.msra.mxu0 0.0
      %2660 = vmatpush.msra.mxu0 0.0
      %2661 = vmatpush.msra.mxu0 0.0
      %2662 = vmatpush.msra.mxu0 0.0
      %2663 = vmatpush.msra.mxu0 0.0
      %2664 = vmatpush.msra.mxu0 0.0
      %2665 = vmatpush.msra.mxu0 0.0
      %2666 = vmatpush.msra.mxu0 %v2620
      %2667 = vmatmul.f32.gmra.mxu0 %v2629
      %v2668 = vpop.f32.mrf.mxu0
      %v2669 = vadd.f32 %v2626, %v2668
      %2670 = vdwg.mxu0
      %2672 = vrot.lane.b32.xlu0 %v280, 17
      %v2673 = vpop.permute.xlu0 %2672
      %2676 = vrot.lane.b32.xlu0 %v279, 17
      %v2677 = vpop.permute.xlu0 %2676
      %vm2678 = vcmask 138240
      %v2679 = vsel %vm2678, %v2677, %v2673
      %v2682 = vsel %vm2678, %v2673, %v2677
      %2683 = vrot.lane.b32.xlu0 %v280, 16
      %v2684 = vpop.permute.xlu0 %2683
      %2686 = vrot.lane.b32.xlu0 %v279, 16
      %v2687 = vpop.permute.xlu0 %2686
      %vm2688 = vcmask 130048
      %v2689 = vsel %vm2688, %v2687, %v2684
      %v2692 = vsel %vm2688, %v2684, %v2687
      %2693 = vrot.lane.b32.xlu0 %v280, 15
      %v2694 = vpop.permute.xlu0 %2693
      %2696 = vrot.lane.b32.xlu0 %v279, 15
      %v2697 = vpop.permute.xlu0 %2696
      %vm2698 = vcmask 121856
      %v2699 = vsel %vm2698, %v2697, %v2694
      %v2702 = vsel %vm2698, %v2694, %v2697
      %2703 = vrot.lane.b32.xlu0 %v280, 1
      %v2704 = vpop.permute.xlu0 %2703
      %2706 = vrot.lane.b32.xlu0 %v279, 1
      %v2707 = vpop.permute.xlu0 %2706
      %vm2708 = vcmask 7168
      %v2709 = vsel %vm2708, %v2707, %v2704
      %v2712 = vsel %vm2708, %v2704, %v2707
      %2713 = vrot.lane.b32.xlu0 %v279, 127
      %v2714 = vpop.permute.xlu0 %2713
      %2715 = vrot.lane.b32.xlu0 %v280, 127
      %v2716 = vpop.permute.xlu0 %2715
      %vm2717 = vcmask 1039360
      %v2718 = vsel %vm2717, %v2714, %v2716
      %v2722 = vsel %vm2717, %v2716, %v2714
      %2723 = vrot.lane.b32.xlu0 %v279, 113
      %v2724 = vpop.permute.xlu0 %2723
      %2725 = vrot.lane.b32.xlu0 %v280, 113
      %v2726 = vpop.permute.xlu0 %2725
      %vm2727 = vcmask 924672
      %v2728 = vsel %vm2727, %v2724, %v2726
      %v2732 = vsel %vm2727, %v2726, %v2724
      %2733 = vrot.lane.b32.xlu0 %v279, 112
      %v2734 = vpop.permute.xlu0 %2733
      %2735 = vrot.lane.b32.xlu0 %v280, 112
      %v2736 = vpop.permute.xlu0 %2735
      %vm2737 = vcmask 916480
      %v2738 = vsel %vm2737, %v2734, %v2736
      %v2742 = vsel %vm2737, %v2736, %v2734
      %2743 = vrot.lane.b32.xlu0 %v279, 111
      %v2744 = vpop.permute.xlu0 %2743
      %2745 = vrot.lane.b32.xlu0 %v280, 111
      %v2746 = vpop.permute.xlu0 %2745
      %vm2747 = vcmask 908288
      %v2748 = vsel %vm2747, %v2744, %v2746
      %v2752 = vsel %vm2747, %v2746, %v2744
      %v2753 = vld [vmem:[%s5 + $0xa0] sm:$0xff]
      %v2754 = vld [vmem:[%s6 + $0x50] sm:$0xff]
      %2756 = vset.pattern.permute.xlu0 0
      %2757 = vperm.xlu0 %2756, %v2754
      %v2758 = vpop.permute.xlu0 %2757
      %vm2760 = vcmask 588800
      %v2762 = vsel %vm2760, %v2753, 0
      %2764 = vmatpush.msra.mxu0 0.0
      %2765 = vmatpush.msra.mxu0 0.0
      %2766 = vmatpush.msra.mxu0 0.0
      %2767 = vmatpush.msra.mxu0 0.0
      %2768 = vmatpush.msra.mxu0 0.0
      %2769 = vmatpush.msra.mxu0 0.0
      %2770 = vmatpush.msra.mxu0 0.0
      %2771 = vmatpush.msra.mxu0 %v2748
      %2772 = vmatpush.msra.mxu0 %v2738
      %2773 = vmatpush.msra.mxu0 %v2728
      %2774 = vmatpush.msra.mxu0 %v2718
      %2775 = vmatpush.msra.mxu0 %v279
      %2776 = vmatpush.msra.mxu0 %v2712
      %2777 = vmatpush.msra.mxu0 %v2702
      %2778 = vmatpush.msra.mxu0 %v2692
      %2779 = vmatpush.msra.mxu0 %v2682
      %2780 = vmatmul.f32.gmra.mxu0 %v2762
      %v2781 = vpop.f32.mrf.mxu0
      %v2782 = vadd.f32 %v2758, %v2781
      %2783 = vdwg.mxu0
      %2784 = vmatpush.msra.mxu0 0.0
      %2785 = vmatpush.msra.mxu0 0.0
      %2786 = vmatpush.msra.mxu0 0.0
      %2787 = vmatpush.msra.mxu0 0.0
      %2788 = vmatpush.msra.mxu0 0.0
      %2789 = vmatpush.msra.mxu0 0.0
      %2790 = vmatpush.msra.mxu0 0.0
      %2791 = vmatpush.msra.mxu0 %v2752
      %2792 = vmatpush.msra.mxu0 %v2742
      %2793 = vmatpush.msra.mxu0 %v2732
      %2794 = vmatpush.msra.mxu0 %v2722
      %2795 = vmatpush.msra.mxu0 %v280
      %2796 = vmatpush.msra.mxu0 %v2709
      %2797 = vmatpush.msra.mxu0 %v2699
      %2798 = vmatpush.msra.mxu0 %v2689
      %2799 = vmatpush.msra.mxu0 %v2679
      %2800 = vmatmul.f32.gmra.mxu0 %v2762
      %v2801 = vpop.f32.mrf.mxu0
      %v2802 = vadd.f32 %v2758, %v2801
      %2803 = vdwg.mxu0
      %v2804 = vmax.f32 %v2782, 0.0
      %v2805 = vmax.f32 %v2802, 0.0
      %v2806 = vld [vmem:[%s5 + $0xb0] sm:$0xff]
      %v2808 = vsel %vm289, %v2806, 0
      %2810 = vmatpush.msra.mxu0 0.0
      %2811 = vmatpush.msra.mxu0 0.0
      %2812 = vmatpush.msra.mxu0 0.0
      %2813 = vmatpush.msra.mxu0 0.0
      %2814 = vmatpush.msra.mxu0 0.0
      %2815 = vmatpush.msra.mxu0 0.0
      %2816 = vmatpush.msra.mxu0 0.0
      %2817 = vmatpush.msra.mxu0 0.0
      %2818 = vmatpush.msra.mxu0 0.0
      %2819 = vmatpush.msra.mxu0 0.0
      %2820 = vmatpush.msra.mxu0 0.0
      %2821 = vmatpush.msra.mxu0 0.0
      %2822 = vmatpush.msra.mxu0 0.0
      %2823 = vmatpush.msra.mxu0 0.0
      %2824 = vmatpush.msra.mxu0 0.0
      %2825 = vmatpush.msra.mxu0 %v2804
      %2826 = vmatmul.f32.gmra.mxu0 %v2808
      %v2827 = vpop.f32.mrf.mxu0
      %v2828 = vadd.f32 0.0, %v2827
      %2829 = vdwg.mxu0
      %2830 = vmatpush.msra.mxu0 0.0
      %2831 = vmatpush.msra.mxu0 0.0
      %2832 = vmatpush.msra.mxu0 0.0
      %2833 = vmatpush.msra.mxu0 0.0
      %2834 = vmatpush.msra.mxu0 0.0
      %2835 = vmatpush.msra.mxu0 0.0
      %2836 = vmatpush.msra.mxu0 0.0
      %2837 = vmatpush.msra.mxu0 0.0
      %2838 = vmatpush.msra.mxu0 0.0
      %2839 = vmatpush.msra.mxu0 0.0
      %2840 = vmatpush.msra.mxu0 0.0
      %2841 = vmatpush.msra.mxu0 0.0
      %2842 = vmatpush.msra.mxu0 0.0
      %2843 = vmatpush.msra.mxu0 0.0
      %2844 = vmatpush.msra.mxu0 0.0
      %2845 = vmatpush.msra.mxu0 %v2805
      %2846 = vmatmul.f32.gmra.mxu0 %v2808
      %v2847 = vpop.f32.mrf.mxu0
      %v2848 = vadd.f32 0.0, %v2847
      %2849 = vdwg.mxu0
      %v2851 = vperm.slane %v281, 0
      %v2852 = vperm.slane %v281, 1
      %v2855 = vmul.f32 %v2828, %v2851
      %v2856 = vmul.f32 %v2848, %v2852
      %v2857 = vadd.f32 %v2855, %v2856
      %2858 = vadd.xlane.f32.xlu0 %v2857
      %v2859 = vpop.xlane.xlu0 %2858
      %v2860 = vrot.slane %v2859, 4
      %v2861 = vadd.f32 %v2859, %v2860
      %v2862 = vrot.slane %v2861, 2
      %v2863 = vadd.f32 %v2861, %v2862
      %v2864 = vrot.slane %v2863, 1
      %v2865 = vadd.f32 %v2863, %v2864
      %v2866 = vmul.f32 %v2865, 0.0006377551
      %v2867 = vsub.f32 %v2828, %v2866
      %v2868 = vsub.f32 %v2848, %v2866
      %v2869 = vmul.f32 %v2867, %v2851
      %v2870 = vmul.f32 %v2868, %v2852
      %v2871 = vmul.f32 %v2869, %v2869
      %v2872 = vmul.f32 %v2870, %v2870
      %v2873 = vadd.f32 %v2871, %v2872
      %2874 = vadd.xlane.f32.xlu0 %v2873
      %v2875 = vpop.xlane.xlu0 %2874
      %v2876 = vrot.slane %v2875, 4
      %v2877 = vadd.f32 %v2875, %v2876
      %v2878 = vrot.slane %v2877, 2
      %v2879 = vadd.f32 %v2877, %v2878
      %v2880 = vrot.slane %v2879, 1
      %v2881 = vadd.f32 %v2879, %v2880
      %v2882 = vmul.f32 %v2881, 0.0006377551
      %v2883 = vadd.f32 %v2882, 1e-05
      %v2884 = vrsqrt.pop %v2883
      %v2885 = vmul.f32 %v2884, %v2883
      %v2886 = vmul.f32 %v2885, %v2884
      %v2887 = vmul.f32 0.5, %v2886
      %v2888 = vsub.f32 1.5, %v2887
      %v2889 = vmul.f32 %v2884, %v2888
      %vm2890 = vweird.f32 %v2883
      %vm2891 = vweird.f32 %v2884
      %vm2892 = vmor %vm2890, %vm2891
      %v2893 = vsel %vm2892, %v2884, %v2889
      %v2894 = vmul.f32 %v2867, %v2893
      %v2895 = vmul.f32 %v2868, %v2893
      %v2896 = vld [vmem:[%s6 + $0x58] sm:$0xff]
      %2898 = vset.pattern.permute.xlu0 0
      %2899 = vperm.xlu0 %2898, %v2896
      %v2900 = vpop.permute.xlu0 %2899
      %v2902 = vmul.f32 %v2894, %v2900
      %v2903 = vmul.f32 %v2895, %v2900
      %v2904 = vld [vmem:[%s6 + $0x60] sm:$0xff]
      %2906 = vset.pattern.permute.xlu0 0
      %2907 = vperm.xlu0 %2906, %v2904
      %v2908 = vpop.permute.xlu0 %2907
      %v2910 = vadd.f32 %v2902, %v2908
      %v2911 = vadd.f32 %v2903, %v2908
      %v2912 = vld [vmem:[%s5 + $0xc0] sm:$0xff]
      %v2913 = vld [vmem:[%s5 + $0xd0] sm:$0xff]
      %v2914 = vld [vmem:[%s5 + $0xe0] sm:$0x1]
      %v2915 = vld [vmem:[%s6 + $0x68] sm:$0xff]
      %v2916 = vld [vmem:[%s6 + $0x70] sm:$0xff]
      %v2917 = vld [vmem:[%s6 + $0x78] sm:$0x1]
      %2919 = vset.pattern.permute.xlu0 0
      %2920 = vperm.xlu0 %2919, %v2915
      %v2921 = vpop.permute.xlu0 %2920
      %2924 = vset.pattern.permute.xlu0 0
      %2925 = vperm.xlu0 %2924, %v2916
      %v2926 = vpop.permute.xlu0 %2925
      %2929 = vset.pattern.permute.xlu0 0
      %2930 = vperm.xlu0 %2929, %v2917
      %v2931 = vpop.permute.xlu0 %2930
      %v2934 = vsel %vm289, %v2912, 0
      %v2937 = vsel %vm289, %v2913, 0
      %v2940 = vsel %vm289, %v2914, 0
      %2942 = vmatpush.msra.mxu0 0.0
      %2943 = vmatpush.msra.mxu0 0.0
      %2944 = vmatpush.msra.mxu0 0.0
      %2945 = vmatpush.msra.mxu0 0.0
      %2946 = vmatpush.msra.mxu0 0.0
      %2947 = vmatpush.msra.mxu0 0.0
      %2948 = vmatpush.msra.mxu0 0.0
      %2949 = vmatpush.msra.mxu0 0.0
      %2950 = vmatpush.msra.mxu0 0.0
      %2951 = vmatpush.msra.mxu0 0.0
      %2952 = vmatpush.msra.mxu0 0.0
      %2953 = vmatpush.msra.mxu0 0.0
      %2954 = vmatpush.msra.mxu0 0.0
      %2955 = vmatpush.msra.mxu0 0.0
      %2956 = vmatpush.msra.mxu0 0.0
      %2957 = vmatpush.msra.mxu0 %v2910
      %2958 = vmatmul.f32.gmra.mxu0 %v2934
      %v2959 = vpop.f32.mrf.mxu0
      %v2960 = vadd.f32 %v2921, %v2959
      %2961 = vmatmul.f32.gmra.mxu0 %v2937
      %v2962 = vpop.f32.mrf.mxu0
      %v2963 = vadd.f32 %v2926, %v2962
      %2964 = vmatmul.f32.gmra.mxu0 %v2940
      %v2965 = vpop.f32.mrf.mxu0
      %v2966 = vadd.f32 %v2931, %v2965
      %2967 = vdwg.mxu0
      %2968 = vmatpush.msra.mxu0 0.0
      %2969 = vmatpush.msra.mxu0 0.0
      %2970 = vmatpush.msra.mxu0 0.0
      %2971 = vmatpush.msra.mxu0 0.0
      %2972 = vmatpush.msra.mxu0 0.0
      %2973 = vmatpush.msra.mxu0 0.0
      %2974 = vmatpush.msra.mxu0 0.0
      %2975 = vmatpush.msra.mxu0 0.0
      %2976 = vmatpush.msra.mxu0 0.0
      %2977 = vmatpush.msra.mxu0 0.0
      %2978 = vmatpush.msra.mxu0 0.0
      %2979 = vmatpush.msra.mxu0 0.0
      %2980 = vmatpush.msra.mxu0 0.0
      %2981 = vmatpush.msra.mxu0 0.0
      %2982 = vmatpush.msra.mxu0 0.0
      %2983 = vmatpush.msra.mxu0 %v2911
      %2984 = vmatmul.f32.gmra.mxu0 %v2934
      %v2985 = vpop.f32.mrf.mxu0
      %v2986 = vadd.f32 %v2921, %v2985
      %2987 = vmatmul.f32.gmra.mxu0 %v2937
      %v2988 = vpop.f32.mrf.mxu0
      %v2989 = vadd.f32 %v2926, %v2988
      %2990 = vmatmul.f32.gmra.mxu0 %v2940
      %v2991 = vpop.f32.mrf.mxu0
      %v2992 = vadd.f32 %v2931, %v2991
      %2993 = vdwg.mxu0
      %v2994 = vld [vmem:[%s4] sm:$0xff]
      %v2995 = vld [vmem:[%s4 + $0x8] sm:$0xff]
      %v2996 = vld [vmem:[%s4 + $0x10] sm:$0xff]
      %v2997 = vld [vmem:[%s4 + $0x18] sm:$0xff]
      %v2998 = vld [vmem:[%s4 + $0x20] sm:$0xff]
      %v2999 = vld [vmem:[%s4 + $0x28] sm:$0xff]
      %v3000 = vld [vmem:[%s4 + $0x30] sm:$0xff]
      %v3001 = vld [vmem:[%s4 + $0x38] sm:$0xff]
      %v3002 = vld [vmem:[%s4 + $0x40] sm:$0xff]
      %v3003 = vld [vmem:[%s4 + $0x48] sm:$0xff]
      %v3004 = vld [vmem:[%s4 + $0x50] sm:$0xff]
      %v3005 = vld [vmem:[%s4 + $0x58] sm:$0xff]
      %v3006 = vld [vmem:[%s4 + $0x60] sm:$0xff]
      %v3007 = vld [vmem:[%s4 + $0x68] sm:$0xff]
      %v3008 = vld [vmem:[%s4 + $0x70] sm:$0xff]
      %v3009 = vld [vmem:[%s4 + $0x78] sm:$0xff]
      %v3010 = vld [vmem:[%s4 + $0x80] sm:$0xff]
      %v3011 = vld [vmem:[%s4 + $0x88] sm:$0xff]
      %v3012 = vld [vmem:[%s4 + $0x90] sm:$0xff]
      %v3013 = vld [vmem:[%s4 + $0x98] sm:$0xff]
      %v3014 = vld [vmem:[%s4 + $0xa0] sm:$0xff]
      %v3015 = vld [vmem:[%s4 + $0xa8] sm:$0xff]
      %v3016 = vld [vmem:[%s4 + $0xb0] sm:$0xff]
      %v3017 = vld [vmem:[%s4 + $0xb8] sm:$0xff]
      %v3018 = vld [vmem:[%s4 + $0xc0] sm:$0xff]
      %v3019 = vld [vmem:[%s4 + $0xc8] sm:$0xff]
      %v3020 = vld [vmem:[%s4 + $0xd0] sm:$0xff]
      %v3021 = vld [vmem:[%s4 + $0xd8] sm:$0xff]
      %v3022 = vld [vmem:[%s4 + $0xe0] sm:$0xff]
      %v3023 = vld [vmem:[%s4 + $0xe8] sm:$0xff]
      %v3024 = vld [vmem:[%s4 + $0xf0] sm:$0xff]
      %v3025 = vld [vmem:[%s4 + $0xf8] sm:$0xff]
      %v3026 = vld [vmem:[%s4 + $0x100] sm:$0xff]
      %v3027 = vld [vmem:[%s4 + $0x108] sm:$0xff]
      %v3028 = vld [vmem:[%s4 + $0x110] sm:$0xff]
      %v3029 = vld [vmem:[%s4 + $0x118] sm:$0xff]
      %v3030 = vld [vmem:[%s4 + $0x120] sm:$0xff]
      %v3031 = vld [vmem:[%s4 + $0x128] sm:$0xff]
      %v3032 = vld [vmem:[%s4 + $0x130] sm:$0xff]
      %v3033 = vld [vmem:[%s4 + $0x138] sm:$0xff]
      %v3034 = vld [vmem:[%s4 + $0x140] sm:$0xff]
      %v3035 = vld [vmem:[%s4 + $0x148] sm:$0xff]
      %v3036 = vld [vmem:[%s4 + $0x150] sm:$0xff]
      %v3037 = vld [vmem:[%s4 + $0x158] sm:$0xff]
      %v3038 = vld [vmem:[%s4 + $0x160] sm:$0xff]
      %v3039 = vld [vmem:[%s4 + $0x168] sm:$0xff]
      %v3040 = vld [vmem:[%s4 + $0x170] sm:$0xff]
      %v3041 = vld [vmem:[%s4 + $0x178] sm:$0xff]
      %v3042 = vld [vmem:[%s4 + $0x180] sm:$0xff]
      %v3043 = vld [vmem:[%s4 + $0x188] sm:$0xff]
      %v3044 = vld [vmem:[%s4 + $0x190] sm:$0xff]
      %v3045 = vld [vmem:[%s4 + $0x198] sm:$0xff]
      %v3046 = vld [vmem:[%s4 + $0x1a0] sm:$0xff]
      %v3047 = vld [vmem:[%s4 + $0x1a8] sm:$0xff]
      %v3048 = vld [vmem:[%s4 + $0x1b0] sm:$0xff]
      %v3049 = vld [vmem:[%s4 + $0x1b8] sm:$0xff]
      %v3050 = vld [vmem:[%s4 + $0x1c0] sm:$0xff]
      %v3051 = vld [vmem:[%s4 + $0x1c8] sm:$0xff]
      %v3052 = vld [vmem:[%s4 + $0x1d0] sm:$0xff]
      %v3053 = vld [vmem:[%s4 + $0x1d8] sm:$0xff]
      %v3054 = vld [vmem:[%s4 + $0x1e0] sm:$0xff]
      %v3055 = vld [vmem:[%s4 + $0x1e8] sm:$0xff]
      %v3056 = vld [vmem:[%s4 + $0x1f0] sm:$0xff]
      %v3057 = vld [vmem:[%s4 + $0x1f8] sm:$0xff]
      %vm3058 = vcmp.gt.f32.partialorder %v281, 0.0
      %v3061 = vrot.slane %v2992, 7
      %vm3062 = vcmask 1040384
      %v3063 = vsel %vm3062, %v2966, %v3061
      %v3065 = vsel %vm3058, %v3063, -1e+30
      %v3067 = vperm.slane %v3065, 0
      %v3068 = vperm.slane %v3065, 1
      %v3071 = vsel %vm3062, %v3067, -inf
      %v3072 = vsel %vm3062, %v3068, -inf
      %v3073 = vmax.f32 %v3071, %v3072
      %3074 = vmax.xlane.f32.xlu0 %v3073
      %v3075 = vpop.xlane.xlu0 %3074
      %v3076 = vsub.f32 %v2966, %v3075
      %v3077 = vsub.f32 %v2992, %v3075
      %v3078 = vmul.f32 %v3076, 1.442695
      %v3079 = vpow.pop %v3078
      %v3080 = vmul.f32 %v3077, 1.442695
      %v3081 = vpow.pop %v3080
      %v3082 = vmul.f32 %v3079, %v2851
      %v3083 = vmul.f32 %v3081, %v2852
      %v3084 = vsub.f32 1.0, %v281
      %v3086 = vperm.slane %v3084, 0
      %v3087 = vperm.slane %v3084, 1
      %3090 = vmatpush.msra.mxu0 %v3024
      %3091 = vmatpush.msra.mxu0 %v3022
      %3092 = vmatpush.msra.mxu0 %v3020
      %3093 = vmatpush.msra.mxu0 %v3018
      %3094 = vmatpush.msra.mxu0 %v3016
      %3095 = vmatpush.msra.mxu0 %v3014
      %3096 = vmatpush.msra.mxu0 %v3012
      %3097 = vmatpush.msra.mxu0 %v3010
      %3098 = vmatpush.msra.mxu0 %v3008
      %3099 = vmatpush.msra.mxu0 %v3006
      %3100 = vmatpush.msra.mxu0 %v3004
      %3101 = vmatpush.msra.mxu0 %v3002
      %3102 = vmatpush.msra.mxu0 %v3000
      %3103 = vmatpush.msra.mxu0 %v2998
      %3104 = vmatpush.msra.mxu0 %v2996
      %3105 = vmatpush.msra.mxu0 %v2994
      %3106 = vmatmul.f32.gmra.mxu0 %v3082
      %v3107 = vpop.f32.mrf.mxu0
      %v3108 = vadd.f32 %v3086, %v3107
      %3109 = vdwg.mxu0
      %3110 = vmatpush.msra.mxu0 %v3056
      %3111 = vmatpush.msra.mxu0 %v3054
      %3112 = vmatpush.msra.mxu0 %v3052
      %3113 = vmatpush.msra.mxu0 %v3050
      %3114 = vmatpush.msra.mxu0 %v3048
      %3115 = vmatpush.msra.mxu0 %v3046
      %3116 = vmatpush.msra.mxu0 %v3044
      %3117 = vmatpush.msra.mxu0 %v3042
      %3118 = vmatpush.msra.mxu0 %v3040
      %3119 = vmatpush.msra.mxu0 %v3038
      %3120 = vmatpush.msra.mxu0 %v3036
      %3121 = vmatpush.msra.mxu0 %v3034
      %3122 = vmatpush.msra.mxu0 %v3032
      %3123 = vmatpush.msra.mxu0 %v3030
      %3124 = vmatpush.msra.mxu0 %v3028
      %3125 = vmatpush.msra.mxu0 %v3026
      %3126 = vmatmul.f32.gmra.mxu0 %v3083
      %v3127 = vpop.f32.mrf.mxu0
      %v3128 = vadd.f32 %v3108, %v3127
      %3129 = vdwg.mxu0
      %3130 = vmatpush.msra.mxu0 %v3025
      %3131 = vmatpush.msra.mxu0 %v3023
      %3132 = vmatpush.msra.mxu0 %v3021
      %3133 = vmatpush.msra.mxu0 %v3019
      %3134 = vmatpush.msra.mxu0 %v3017
      %3135 = vmatpush.msra.mxu0 %v3015
      %3136 = vmatpush.msra.mxu0 %v3013
      %3137 = vmatpush.msra.mxu0 %v3011
      %3138 = vmatpush.msra.mxu0 %v3009
      %3139 = vmatpush.msra.mxu0 %v3007
      %3140 = vmatpush.msra.mxu0 %v3005
      %3141 = vmatpush.msra.mxu0 %v3003
      %3142 = vmatpush.msra.mxu0 %v3001
      %3143 = vmatpush.msra.mxu0 %v2999
      %3144 = vmatpush.msra.mxu0 %v2997
      %3145 = vmatpush.msra.mxu0 %v2995
      %3146 = vmatmul.f32.gmra.mxu0 %v3082
      %v3147 = vpop.f32.mrf.mxu0
      %v3148 = vadd.f32 %v3087, %v3147
      %3149 = vdwg.mxu0
      %3150 = vmatpush.msra.mxu0 %v3057
      %3151 = vmatpush.msra.mxu0 %v3055
      %3152 = vmatpush.msra.mxu0 %v3053
      %3153 = vmatpush.msra.mxu0 %v3051
      %3154 = vmatpush.msra.mxu0 %v3049
      %3155 = vmatpush.msra.mxu0 %v3047
      %3156 = vmatpush.msra.mxu0 %v3045
      %3157 = vmatpush.msra.mxu0 %v3043
      %3158 = vmatpush.msra.mxu0 %v3041
      %3159 = vmatpush.msra.mxu0 %v3039
      %3160 = vmatpush.msra.mxu0 %v3037
      %3161 = vmatpush.msra.mxu0 %v3035
      %3162 = vmatpush.msra.mxu0 %v3033
      %3163 = vmatpush.msra.mxu0 %v3031
      %3164 = vmatpush.msra.mxu0 %v3029
      %3165 = vmatpush.msra.mxu0 %v3027
      %3166 = vmatmul.f32.gmra.mxu0 %v3083
      %v3167 = vpop.f32.mrf.mxu0
      %v3168 = vadd.f32 %v3148, %v3167
      %3169 = vdwg.mxu0
      %v3170 = vrcp.pop %v3128
      %v3171 = vrcp.pop %v3168
      %v3172 = vmul.f32 %v3082, %v3170
      %v3173 = vmul.f32 %v3083, %v3171
      %v3174 = vperm.slane %v3172, 0
      %v3175 = vperm.slane %v3173, 0
      %v3176 = vmul.f32 %v2960, %v3174
      %v3177 = vmul.f32 %v2986, %v3175
      %3178 = vmatpush.msra.mxu0 %v3024
      %3179 = vmatpush.msra.mxu0 %v3022
      %3180 = vmatpush.msra.mxu0 %v3020
      %3181 = vmatpush.msra.mxu0 %v3018
      %3182 = vmatpush.msra.mxu0 %v3016
      %3183 = vmatpush.msra.mxu0 %v3014
      %3184 = vmatpush.msra.mxu0 %v3012
      %3185 = vmatpush.msra.mxu0 %v3010
      %3186 = vmatpush.msra.mxu0 %v3008
      %3187 = vmatpush.msra.mxu0 %v3006
      %3188 = vmatpush.msra.mxu0 %v3004
      %3189 = vmatpush.msra.mxu0 %v3002
      %3190 = vmatpush.msra.mxu0 %v3000
      %3191 = vmatpush.msra.mxu0 %v2998
      %3192 = vmatpush.msra.mxu0 %v2996
      %3193 = vmatpush.msra.mxu0 %v2994
      %3194 = vmatmul.f32.gmra.mxu0 %v3176
      %v3195 = vpop.f32.mrf.mxu0
      %v3196 = vadd.f32 0.0, %v3195
      %3197 = vdwg.mxu0
      %3198 = vmatpush.msra.mxu0 %v3056
      %3199 = vmatpush.msra.mxu0 %v3054
      %3200 = vmatpush.msra.mxu0 %v3052
      %3201 = vmatpush.msra.mxu0 %v3050
      %3202 = vmatpush.msra.mxu0 %v3048
      %3203 = vmatpush.msra.mxu0 %v3046
      %3204 = vmatpush.msra.mxu0 %v3044
      %3205 = vmatpush.msra.mxu0 %v3042
      %3206 = vmatpush.msra.mxu0 %v3040
      %3207 = vmatpush.msra.mxu0 %v3038
      %3208 = vmatpush.msra.mxu0 %v3036
      %3209 = vmatpush.msra.mxu0 %v3034
      %3210 = vmatpush.msra.mxu0 %v3032
      %3211 = vmatpush.msra.mxu0 %v3030
      %3212 = vmatpush.msra.mxu0 %v3028
      %3213 = vmatpush.msra.mxu0 %v3026
      %3214 = vmatmul.f32.gmra.mxu0 %v3177
      %v3215 = vpop.f32.mrf.mxu0
      %v3216 = vadd.f32 %v3196, %v3215
      %3217 = vdwg.mxu0
      %3218 = vmatpush.msra.mxu0 %v3025
      %3219 = vmatpush.msra.mxu0 %v3023
      %3220 = vmatpush.msra.mxu0 %v3021
      %3221 = vmatpush.msra.mxu0 %v3019
      %3222 = vmatpush.msra.mxu0 %v3017
      %3223 = vmatpush.msra.mxu0 %v3015
      %3224 = vmatpush.msra.mxu0 %v3013
      %3225 = vmatpush.msra.mxu0 %v3011
      %3226 = vmatpush.msra.mxu0 %v3009
      %3227 = vmatpush.msra.mxu0 %v3007
      %3228 = vmatpush.msra.mxu0 %v3005
      %3229 = vmatpush.msra.mxu0 %v3003
      %3230 = vmatpush.msra.mxu0 %v3001
      %3231 = vmatpush.msra.mxu0 %v2999
      %3232 = vmatpush.msra.mxu0 %v2997
      %3233 = vmatpush.msra.mxu0 %v2995
      %3234 = vmatmul.f32.gmra.mxu0 %v3176
      %v3235 = vpop.f32.mrf.mxu0
      %v3236 = vadd.f32 0.0, %v3235
      %3237 = vdwg.mxu0
      %3238 = vmatpush.msra.mxu0 %v3057
      %3239 = vmatpush.msra.mxu0 %v3055
      %3240 = vmatpush.msra.mxu0 %v3053
      %3241 = vmatpush.msra.mxu0 %v3051
      %3242 = vmatpush.msra.mxu0 %v3049
      %3243 = vmatpush.msra.mxu0 %v3047
      %3244 = vmatpush.msra.mxu0 %v3045
      %3245 = vmatpush.msra.mxu0 %v3043
      %3246 = vmatpush.msra.mxu0 %v3041
      %3247 = vmatpush.msra.mxu0 %v3039
      %3248 = vmatpush.msra.mxu0 %v3037
      %3249 = vmatpush.msra.mxu0 %v3035
      %3250 = vmatpush.msra.mxu0 %v3033
      %3251 = vmatpush.msra.mxu0 %v3031
      %3252 = vmatpush.msra.mxu0 %v3029
      %3253 = vmatpush.msra.mxu0 %v3027
      %3254 = vmatmul.f32.gmra.mxu0 %v3177
      %v3255 = vpop.f32.mrf.mxu0
      %v3256 = vadd.f32 %v3236, %v3255
      %3257 = vdwg.mxu0
      %v3258 = vmax.f32 %v2963, 0.0
      %v3259 = vmax.f32 %v2989, 0.0
      %v3260 = vmul.f32 %v3258, %v3216
      %v3261 = vmul.f32 %v3259, %v3256
      %v3262 = vld [vmem:[%s5 + $0xf0] sm:$0xff]
      %v3264 = vsel %vm289, %v3262, 0
      %3266 = vmatpush.msra.mxu0 0.0
      %3267 = vmatpush.msra.mxu0 0.0
      %3268 = vmatpush.msra.mxu0 0.0
      %3269 = vmatpush.msra.mxu0 0.0
      %3270 = vmatpush.msra.mxu0 0.0
      %3271 = vmatpush.msra.mxu0 0.0
      %3272 = vmatpush.msra.mxu0 0.0
      %3273 = vmatpush.msra.mxu0 0.0
      %3274 = vmatpush.msra.mxu0 0.0
      %3275 = vmatpush.msra.mxu0 0.0
      %3276 = vmatpush.msra.mxu0 0.0
      %3277 = vmatpush.msra.mxu0 0.0
      %3278 = vmatpush.msra.mxu0 0.0
      %3279 = vmatpush.msra.mxu0 0.0
      %3280 = vmatpush.msra.mxu0 0.0
      %3281 = vmatpush.msra.mxu0 %v3260
      %3282 = vmatmul.f32.gmra.mxu0 %v3264
      %v3283 = vpop.f32.mrf.mxu0
      %v3284 = vadd.f32 0.0, %v3283
      %3285 = vdwg.mxu0
      %3286 = vmatpush.msra.mxu0 0.0
      %3287 = vmatpush.msra.mxu0 0.0
      %3288 = vmatpush.msra.mxu0 0.0
      %3289 = vmatpush.msra.mxu0 0.0
      %3290 = vmatpush.msra.mxu0 0.0
      %3291 = vmatpush.msra.mxu0 0.0
      %3292 = vmatpush.msra.mxu0 0.0
      %3293 = vmatpush.msra.mxu0 0.0
      %3294 = vmatpush.msra.mxu0 0.0
      %3295 = vmatpush.msra.mxu0 0.0
      %3296 = vmatpush.msra.mxu0 0.0
      %3297 = vmatpush.msra.mxu0 0.0
      %3298 = vmatpush.msra.mxu0 0.0
      %3299 = vmatpush.msra.mxu0 0.0
      %3300 = vmatpush.msra.mxu0 0.0
      %3301 = vmatpush.msra.mxu0 %v3261
      %3302 = vmatmul.f32.gmra.mxu0 %v3264
      %v3303 = vpop.f32.mrf.mxu0
      %v3304 = vadd.f32 0.0, %v3303
      %3305 = vdwg.mxu0
      %v3306 = vadd.f32 %v2828, %v3284
      %v3307 = vadd.f32 %v2848, %v3304
      %v3308 = vld [vmem:[%s6 + $0x80] sm:$0xff]
      %3310 = vset.pattern.permute.xlu0 0
      %3311 = vperm.xlu0 %3310, %v3308
      %v3312 = vpop.permute.xlu0 %3311
      %v3314 = vadd.f32 %v3306, %v3312
      %v3315 = vadd.f32 %v3307, %v3312
      %v3316 = vmul.f32 %v3314, %v2851
      %v3317 = vmul.f32 %v3315, %v2852
      %v3318 = vadd.f32 %v3316, %v3317
      %3319 = vadd.xlane.f32.xlu0 %v3318
      %v3320 = vpop.xlane.xlu0 %3319
      %v3321 = vrot.slane %v3320, 4
      %v3322 = vadd.f32 %v3320, %v3321
      %v3323 = vrot.slane %v3322, 2
      %v3324 = vadd.f32 %v3322, %v3323
      %v3325 = vrot.slane %v3324, 1
      %v3326 = vadd.f32 %v3324, %v3325
      %v3327 = vmul.f32 %v3326, 0.0006377551
      %v3328 = vsub.f32 %v3314, %v3327
      %v3329 = vsub.f32 %v3315, %v3327
      %v3330 = vmul.f32 %v3328, %v2851
      %v3331 = vmul.f32 %v3329, %v2852
      %v3332 = vmul.f32 %v3330, %v3330
      %v3333 = vmul.f32 %v3331, %v3331
      %v3334 = vadd.f32 %v3332, %v3333
      %3335 = vadd.xlane.f32.xlu0 %v3334
      %v3336 = vpop.xlane.xlu0 %3335
      %v3337 = vrot.slane %v3336, 4
      %v3338 = vadd.f32 %v3336, %v3337
      %v3339 = vrot.slane %v3338, 2
      %v3340 = vadd.f32 %v3338, %v3339
      %v3341 = vrot.slane %v3340, 1
      %v3342 = vadd.f32 %v3340, %v3341
      %v3343 = vmul.f32 %v3342, 0.0006377551
      %v3344 = vadd.f32 %v3343, 1e-05
      %v3345 = vrsqrt.pop %v3344
      %v3346 = vmul.f32 %v3345, %v3344
      %v3347 = vmul.f32 %v3346, %v3345
      %v3348 = vmul.f32 0.5, %v3347
      %v3349 = vsub.f32 1.5, %v3348
      %v3350 = vmul.f32 %v3345, %v3349
      %vm3351 = vweird.f32 %v3344
      %vm3352 = vweird.f32 %v3345
      %vm3353 = vmor %vm3351, %vm3352
      %v3354 = vsel %vm3353, %v3345, %v3350
      %v3355 = vmul.f32 %v3328, %v3354
      %v3356 = vmul.f32 %v3329, %v3354
      %v3357 = vld [vmem:[%s6 + $0x88] sm:$0xff]
      %3359 = vset.pattern.permute.xlu0 0
      %3360 = vperm.xlu0 %3359, %v3357
      %v3361 = vpop.permute.xlu0 %3360
      %v3363 = vmul.f32 %v3355, %v3361
      %v3364 = vmul.f32 %v3356, %v3361
      %v3365 = vld [vmem:[%s6 + $0x90] sm:$0xff]
      %3367 = vset.pattern.permute.xlu0 0
      %3368 = vperm.xlu0 %3367, %v3365
      %v3369 = vpop.permute.xlu0 %3368
      %v3371 = vadd.f32 %v3363, %v3369
      %v3372 = vadd.f32 %v3364, %v3369
      %v3373 = vld [vmem:[%s5 + $0x100] sm:$0xff]
      %v3374 = vld [vmem:[%s5 + $0x110] sm:$0xff]
      %v3375 = vld [vmem:[%s6 + $0x98] sm:$0xff]
      %v3376 = vld [vmem:[%s6 + $0xa0] sm:$0xff]
      %3378 = vset.pattern.permute.xlu0 0
      %3379 = vperm.xlu0 %3378, %v3375
      %v3380 = vpop.permute.xlu0 %3379
      %3383 = vset.pattern.permute.xlu0 0
      %3384 = vperm.xlu0 %3383, %v3376
      %v3385 = vpop.permute.xlu0 %3384
      %v3388 = vsel %vm289, %v3373, 0
      %v3391 = vsel %vm289, %v3374, 0
      %3393 = vmatpush.msra.mxu0 0.0
      %3394 = vmatpush.msra.mxu0 0.0
      %3395 = vmatpush.msra.mxu0 0.0
      %3396 = vmatpush.msra.mxu0 0.0
      %3397 = vmatpush.msra.mxu0 0.0
      %3398 = vmatpush.msra.mxu0 0.0
      %3399 = vmatpush.msra.mxu0 0.0
      %3400 = vmatpush.msra.mxu0 0.0
      %3401 = vmatpush.msra.mxu0 0.0
      %3402 = vmatpush.msra.mxu0 0.0
      %3403 = vmatpush.msra.mxu0 0.0
      %3404 = vmatpush.msra.mxu0 0.0
      %3405 = vmatpush.msra.mxu0 0.0
      %3406 = vmatpush.msra.mxu0 0.0
      %3407 = vmatpush.msra.mxu0 0.0
      %3408 = vmatpush.msra.mxu0 %v3371
      %3409 = vmatmul.f32.gmra.mxu0 %v3388
      %v3410 = vpop.f32.mrf.mxu0
      %v3411 = vadd.f32 %v3380, %v3410
      %3412 = vmatmul.f32.gmra.mxu0 %v3391
      %v3413 = vpop.f32.mrf.mxu0
      %v3414 = vadd.f32 %v3385, %v3413
      %3415 = vdwg.mxu0
      %3416 = vmatpush.msra.mxu0 0.0
      %3417 = vmatpush.msra.mxu0 0.0
      %3418 = vmatpush.msra.mxu0 0.0
      %3419 = vmatpush.msra.mxu0 0.0
      %3420 = vmatpush.msra.mxu0 0.0
      %3421 = vmatpush.msra.mxu0 0.0
      %3422 = vmatpush.msra.mxu0 0.0
      %3423 = vmatpush.msra.mxu0 0.0
      %3424 = vmatpush.msra.mxu0 0.0
      %3425 = vmatpush.msra.mxu0 0.0
      %3426 = vmatpush.msra.mxu0 0.0
      %3427 = vmatpush.msra.mxu0 0.0
      %3428 = vmatpush.msra.mxu0 0.0
      %3429 = vmatpush.msra.mxu0 0.0
      %3430 = vmatpush.msra.mxu0 0.0
      %3431 = vmatpush.msra.mxu0 %v3372
      %3432 = vmatmul.f32.gmra.mxu0 %v3388
      %v3433 = vpop.f32.mrf.mxu0
      %v3434 = vadd.f32 %v3380, %v3433
      %3435 = vmatmul.f32.gmra.mxu0 %v3391
      %v3436 = vpop.f32.mrf.mxu0
      %v3437 = vadd.f32 %v3385, %v3436
      %3438 = vdwg.mxu0
      %v3439 = vxor.u32 %v3411, 2147483648
      %v3440 = vxor.u32 %v3434, 2147483648
      %v3441 = vxor.u32 %v3414, 2147483648
      %v3442 = vxor.u32 %v3437, 2147483648
      %v3443 = vmul.f32 %v3439, 1.442695
      %v3444 = vpow.pop %v3443
      %v3445 = vmul.f32 %v3440, 1.442695
      %v3446 = vpow.pop %v3445
      %v3447 = vmul.f32 %v3441, 1.442695
      %v3448 = vpow.pop %v3447
      %v3449 = vmul.f32 %v3442, 1.442695
      %v3450 = vpow.pop %v3449
      %v3451 = vadd.f32 %v3444, 1.0
      %v3452 = vadd.f32 %v3446, 1.0
      %v3453 = vadd.f32 %v3448, 1.0
      %v3454 = vadd.f32 %v3450, 1.0
      %v3455 = vrcp.pop %v3451
      %v3456 = vmul.f32 %v3451, %v3455
      %v3457 = vsub.f32 1.0, %v3456
      %v3458 = vmul.f32 %v3455, %v3457
      %v3459 = vadd.f32 %v3455, %v3458
      %vm3460 = vweird.f32 %v3451
      %vm3461 = vweird.f32 %v3455
      %vm3462 = vmor %vm3460, %vm3461
      %v3463 = vsel %vm3462, %v3455, %v3459
      %v3464 = vand.u32 2147483647, %v3451
      %vm3465 = vcmp.eq.f32.partialorder %v3464, 8.507059e+37
      %v3466 = vand.u32 %v3451, 2147483648
      %v3467 = vor.u32 1.1754944e-38, %v3466
      %v3468 = vsel %vm3465, %v3467, %v3463
      %v3469 = vmul.f32 1.0, %v3468
      %v3470 = vrcp.pop %v3452
      %v3471 = vmul.f32 %v3452, %v3470
      %v3472 = vsub.f32 1.0, %v3471
      %v3473 = vmul.f32 %v3470, %v3472
      %v3474 = vadd.f32 %v3470, %v3473
      %vm3475 = vweird.f32 %v3452
      %vm3476 = vweird.f32 %v3470
      %vm3477 = vmor %vm3475, %vm3476
      %v3478 = vsel %vm3477, %v3470, %v3474
      %v3479 = vand.u32 2147483647, %v3452
      %vm3480 = vcmp.eq.f32.partialorder %v3479, 8.507059e+37
      %v3481 = vand.u32 %v3452, 2147483648
      %v3482 = vor.u32 1.1754944e-38, %v3481
      %v3483 = vsel %vm3480, %v3482, %v3478
      %v3484 = vmul.f32 1.0, %v3483
      %v3485 = vrcp.pop %v3453
      %v3486 = vmul.f32 %v3453, %v3485
      %v3487 = vsub.f32 1.0, %v3486
      %v3488 = vmul.f32 %v3485, %v3487
      %v3489 = vadd.f32 %v3485, %v3488
      %vm3490 = vweird.f32 %v3453
      %vm3491 = vweird.f32 %v3485
      %vm3492 = vmor %vm3490, %vm3491
      %v3493 = vsel %vm3492, %v3485, %v3489
      %v3494 = vand.u32 2147483647, %v3453
      %vm3495 = vcmp.eq.f32.partialorder %v3494, 8.507059e+37
      %v3496 = vand.u32 %v3453, 2147483648
      %v3497 = vor.u32 1.1754944e-38, %v3496
      %v3498 = vsel %vm3495, %v3497, %v3493
      %v3499 = vmul.f32 1.0, %v3498
      %v3500 = vrcp.pop %v3454
      %v3501 = vmul.f32 %v3454, %v3500
      %v3502 = vsub.f32 1.0, %v3501
      %v3503 = vmul.f32 %v3500, %v3502
      %v3504 = vadd.f32 %v3500, %v3503
      %vm3505 = vweird.f32 %v3454
      %vm3506 = vweird.f32 %v3500
      %vm3507 = vmor %vm3505, %vm3506
      %v3508 = vsel %vm3507, %v3500, %v3504
      %v3509 = vand.u32 2147483647, %v3454
      %vm3510 = vcmp.eq.f32.partialorder %v3509, 8.507059e+37
      %v3511 = vand.u32 %v3454, 2147483648
      %v3512 = vor.u32 1.1754944e-38, %v3511
      %v3513 = vsel %vm3510, %v3512, %v3508
      %v3514 = vmul.f32 1.0, %v3513
      %v3515 = vmul.f32 %v3411, %v3469
      %v3516 = vmul.f32 %v3434, %v3484
      %v3517 = vmul.f32 %v3414, %v3499
      %v3518 = vmul.f32 %v3437, %v3514
      %v3519 = vld [vmem:[%s5 + $0x120] sm:$0xff]
      %v3521 = vsel %vm2688, %v3519, 0
      %3523 = vmatpush.msra.mxu0 0.0
      %3524 = vmatpush.msra.mxu0 0.0
      %3525 = vmatpush.msra.mxu0 0.0
      %3526 = vmatpush.msra.mxu0 0.0
      %3527 = vmatpush.msra.mxu0 0.0
      %3528 = vmatpush.msra.mxu0 0.0
      %3529 = vmatpush.msra.mxu0 0.0
      %3530 = vmatpush.msra.mxu0 0.0
      %3531 = vmatpush.msra.mxu0 0.0
      %3532 = vmatpush.msra.mxu0 0.0
      %3533 = vmatpush.msra.mxu0 0.0
      %3534 = vmatpush.msra.mxu0 0.0
      %3535 = vmatpush.msra.mxu0 0.0
      %3536 = vmatpush.msra.mxu0 0.0
      %3537 = vmatpush.msra.mxu0 %v3517
      %3538 = vmatpush.msra.mxu0 %v3515
      %3539 = vmatmul.f32.gmra.mxu0 %v3521
      %v3540 = vpop.f32.mrf.mxu0
      %v3541 = vadd.f32 0.0, %v3540
      %3542 = vdwg.mxu0
      %3543 = vmatpush.msra.mxu0 0.0
      %3544 = vmatpush.msra.mxu0 0.0
      %3545 = vmatpush.msra.mxu0 0.0
      %3546 = vmatpush.msra.mxu0 0.0
      %3547 = vmatpush.msra.mxu0 0.0
      %3548 = vmatpush.msra.mxu0 0.0
      %3549 = vmatpush.msra.mxu0 0.0
      %3550 = vmatpush.msra.mxu0 0.0
      %3551 = vmatpush.msra.mxu0 0.0
      %3552 = vmatpush.msra.mxu0 0.0
      %3553 = vmatpush.msra.mxu0 0.0
      %3554 = vmatpush.msra.mxu0 0.0
      %3555 = vmatpush.msra.mxu0 0.0
      %3556 = vmatpush.msra.mxu0 0.0
      %3557 = vmatpush.msra.mxu0 %v3518
      %3558 = vmatpush.msra.mxu0 %v3516
      %3559 = vmatmul.f32.gmra.mxu0 %v3521
      %v3560 = vpop.f32.mrf.mxu0
      %v3561 = vadd.f32 0.0, %v3560
      %3562 = vdwg.mxu0
      %v3563 = vadd.f32 %v3314, %v3541
      %v3564 = vadd.f32 %v3315, %v3561
      %v3565 = vld [vmem:[%s6 + $0xa8] sm:$0xff]
      %3567 = vset.pattern.permute.xlu0 0
      %3568 = vperm.xlu0 %3567, %v3565
      %v3569 = vpop.permute.xlu0 %3568
      %v3571 = vadd.f32 %v3563, %v3569
      %v3572 = vadd.f32 %v3564, %v3569
      %v3573 = vmul.f32 %v3571, %v2851
      %v3574 = vmul.f32 %v3572, %v2852
      %v3575 = vadd.f32 %v3573, %v3574
      %3576 = vadd.xlane.f32.xlu0 %v3575
      %v3577 = vpop.xlane.xlu0 %3576
      %v3578 = vrot.slane %v3577, 4
      %v3579 = vadd.f32 %v3577, %v3578
      %v3580 = vrot.slane %v3579, 2
      %v3581 = vadd.f32 %v3579, %v3580
      %v3582 = vrot.slane %v3581, 1
      %v3583 = vadd.f32 %v3581, %v3582
      %v3584 = vmul.f32 %v3583, 0.0006377551
      %v3585 = vsub.f32 %v3571, %v3584
      %v3586 = vsub.f32 %v3572, %v3584
      %v3587 = vmul.f32 %v3585, %v2851
      %v3588 = vmul.f32 %v3586, %v2852
      %v3589 = vmul.f32 %v3587, %v3587
      %v3590 = vmul.f32 %v3588, %v3588
      %v3591 = vadd.f32 %v3589, %v3590
      %3592 = vadd.xlane.f32.xlu0 %v3591
      %v3593 = vpop.xlane.xlu0 %3592
      %v3594 = vrot.slane %v3593, 4
      %v3595 = vadd.f32 %v3593, %v3594
      %v3596 = vrot.slane %v3595, 2
      %v3597 = vadd.f32 %v3595, %v3596
      %v3598 = vrot.slane %v3597, 1
      %v3599 = vadd.f32 %v3597, %v3598
      %v3600 = vmul.f32 %v3599, 0.0006377551
      %v3601 = vadd.f32 %v3600, 1e-05
      %v3602 = vrsqrt.pop %v3601
      %v3603 = vmul.f32 %v3602, %v3601
      %v3604 = vmul.f32 %v3603, %v3602
      %v3605 = vmul.f32 0.5, %v3604
      %v3606 = vsub.f32 1.5, %v3605
      %v3607 = vmul.f32 %v3602, %v3606
      %vm3608 = vweird.f32 %v3601
      %vm3609 = vweird.f32 %v3602
      %vm3610 = vmor %vm3608, %vm3609
      %v3611 = vsel %vm3610, %v3602, %v3607
      %v3612 = vmul.f32 %v3585, %v3611
      %v3613 = vmul.f32 %v3586, %v3611
      %v3614 = vld [vmem:[%s6 + $0xb0] sm:$0xff]
      %3616 = vset.pattern.permute.xlu0 0
      %3617 = vperm.xlu0 %3616, %v3614
      %v3618 = vpop.permute.xlu0 %3617
      %v3620 = vmul.f32 %v3612, %v3618
      %v3621 = vmul.f32 %v3613, %v3618
      %v3622 = vld [vmem:[%s6 + $0xb8] sm:$0xff]
      %3624 = vset.pattern.permute.xlu0 0
      %3625 = vperm.xlu0 %3624, %v3622
      %v3626 = vpop.permute.xlu0 %3625
      %v3628 = vadd.f32 %v3620, %v3626
      %v3629 = vadd.f32 %v3621, %v3626
      %v3630 = vld [vmem:[%s5 + $0x130] sm:$0xff]
      %v3631 = vld [vmem:[%s5 + $0x140] sm:$0xff]
      %v3632 = vld [vmem:[%s5 + $0x150] sm:$0x1]
      %v3633 = vld [vmem:[%s6 + $0xc0] sm:$0xff]
      %v3634 = vld [vmem:[%s6 + $0xc8] sm:$0xff]
      %v3635 = vld [vmem:[%s6 + $0xd0] sm:$0x1]
      %3637 = vset.pattern.permute.xlu0 0
      %3638 = vperm.xlu0 %3637, %v3633
      %v3639 = vpop.permute.xlu0 %3638
      %3642 = vset.pattern.permute.xlu0 0
      %3643 = vperm.xlu0 %3642, %v3634
      %v3644 = vpop.permute.xlu0 %3643
      %3647 = vset.pattern.permute.xlu0 0
      %3648 = vperm.xlu0 %3647, %v3635
      %v3649 = vpop.permute.xlu0 %3648
      %v3652 = vsel %vm289, %v3630, 0
      %v3655 = vsel %vm289, %v3631, 0
      %v3658 = vsel %vm289, %v3632, 0
      %3660 = vmatpush.msra.mxu0 0.0
      %3661 = vmatpush.msra.mxu0 0.0
      %3662 = vmatpush.msra.mxu0 0.0
      %3663 = vmatpush.msra.mxu0 0.0
      %3664 = vmatpush.msra.mxu0 0.0
      %3665 = vmatpush.msra.mxu0 0.0
      %3666 = vmatpush.msra.mxu0 0.0
      %3667 = vmatpush.msra.mxu0 0.0
      %3668 = vmatpush.msra.mxu0 0.0
      %3669 = vmatpush.msra.mxu0 0.0
      %3670 = vmatpush.msra.mxu0 0.0
      %3671 = vmatpush.msra.mxu0 0.0
      %3672 = vmatpush.msra.mxu0 0.0
      %3673 = vmatpush.msra.mxu0 0.0
      %3674 = vmatpush.msra.mxu0 0.0
      %3675 = vmatpush.msra.mxu0 %v3628
      %3676 = vmatmul.f32.gmra.mxu0 %v3652
      %v3677 = vpop.f32.mrf.mxu0
      %v3678 = vadd.f32 %v3639, %v3677
      %3679 = vmatmul.f32.gmra.mxu0 %v3655
      %v3680 = vpop.f32.mrf.mxu0
      %v3681 = vadd.f32 %v3644, %v3680
      %3682 = vmatmul.f32.gmra.mxu0 %v3658
      %v3683 = vpop.f32.mrf.mxu0
      %v3684 = vadd.f32 %v3649, %v3683
      %3685 = vdwg.mxu0
      %3686 = vmatpush.msra.mxu0 0.0
      %3687 = vmatpush.msra.mxu0 0.0
      %3688 = vmatpush.msra.mxu0 0.0
      %3689 = vmatpush.msra.mxu0 0.0
      %3690 = vmatpush.msra.mxu0 0.0
      %3691 = vmatpush.msra.mxu0 0.0
      %3692 = vmatpush.msra.mxu0 0.0
      %3693 = vmatpush.msra.mxu0 0.0
      %3694 = vmatpush.msra.mxu0 0.0
      %3695 = vmatpush.msra.mxu0 0.0
      %3696 = vmatpush.msra.mxu0 0.0
      %3697 = vmatpush.msra.mxu0 0.0
      %3698 = vmatpush.msra.mxu0 0.0
      %3699 = vmatpush.msra.mxu0 0.0
      %3700 = vmatpush.msra.mxu0 0.0
      %3701 = vmatpush.msra.mxu0 %v3629
      %3702 = vmatmul.f32.gmra.mxu0 %v3652
      %v3703 = vpop.f32.mrf.mxu0
      %v3704 = vadd.f32 %v3639, %v3703
      %3705 = vmatmul.f32.gmra.mxu0 %v3655
      %v3706 = vpop.f32.mrf.mxu0
      %v3707 = vadd.f32 %v3644, %v3706
      %3708 = vmatmul.f32.gmra.mxu0 %v3658
      %v3709 = vpop.f32.mrf.mxu0
      %v3710 = vadd.f32 %v3649, %v3709
      %3711 = vdwg.mxu0
      %v3714 = vrot.slane %v3710, 7
      %v3715 = vsel %vm3062, %v3684, %v3714
      %v3717 = vsel %vm3058, %v3715, -1e+30
      %v3719 = vperm.slane %v3717, 0
      %v3720 = vperm.slane %v3717, 1
      %v3723 = vsel %vm3062, %v3719, -inf
      %v3724 = vsel %vm3062, %v3720, -inf
      %v3725 = vmax.f32 %v3723, %v3724
      %3726 = vmax.xlane.f32.xlu0 %v3725
      %v3727 = vpop.xlane.xlu0 %3726
      %v3728 = vsub.f32 %v3684, %v3727
      %v3729 = vsub.f32 %v3710, %v3727
      %v3730 = vmul.f32 %v3728, 1.442695
      %v3731 = vpow.pop %v3730
      %v3732 = vmul.f32 %v3729, 1.442695
      %v3733 = vpow.pop %v3732
      %v3734 = vmul.f32 %v3731, %v2851
      %v3735 = vmul.f32 %v3733, %v2852
      %3736 = vmatpush.msra.mxu0 %v3024
      %3737 = vmatpush.msra.mxu0 %v3022
      %3738 = vmatpush.msra.mxu0 %v3020
      %3739 = vmatpush.msra.mxu0 %v3018
      %3740 = vmatpush.msra.mxu0 %v3016
      %3741 = vmatpush.msra.mxu0 %v3014
      %3742 = vmatpush.msra.mxu0 %v3012
      %3743 = vmatpush.msra.mxu0 %v3010
      %3744 = vmatpush.msra.mxu0 %v3008
      %3745 = vmatpush.msra.mxu0 %v3006
      %3746 = vmatpush.msra.mxu0 %v3004
      %3747 = vmatpush.msra.mxu0 %v3002
      %3748 = vmatpush.msra.mxu0 %v3000
      %3749 = vmatpush.msra.mxu0 %v2998
      %3750 = vmatpush.msra.mxu0 %v2996
      %3751 = vmatpush.msra.mxu0 %v2994
      %3752 = vmatmul.f32.gmra.mxu0 %v3734
      %v3753 = vpop.f32.mrf.mxu0
      %v3754 = vadd.f32 %v3086, %v3753
      %3755 = vdwg.mxu0
      %3756 = vmatpush.msra.mxu0 %v3056
      %3757 = vmatpush.msra.mxu0 %v3054
      %3758 = vmatpush.msra.mxu0 %v3052
      %3759 = vmatpush.msra.mxu0 %v3050
      %3760 = vmatpush.msra.mxu0 %v3048
      %3761 = vmatpush.msra.mxu0 %v3046
      %3762 = vmatpush.msra.mxu0 %v3044
      %3763 = vmatpush.msra.mxu0 %v3042
      %3764 = vmatpush.msra.mxu0 %v3040
      %3765 = vmatpush.msra.mxu0 %v3038
      %3766 = vmatpush.msra.mxu0 %v3036
      %3767 = vmatpush.msra.mxu0 %v3034
      %3768 = vmatpush.msra.mxu0 %v3032
      %3769 = vmatpush.msra.mxu0 %v3030
      %3770 = vmatpush.msra.mxu0 %v3028
      %3771 = vmatpush.msra.mxu0 %v3026
      %3772 = vmatmul.f32.gmra.mxu0 %v3735
      %v3773 = vpop.f32.mrf.mxu0
      %v3774 = vadd.f32 %v3754, %v3773
      %3775 = vdwg.mxu0
      %3776 = vmatpush.msra.mxu0 %v3025
      %3777 = vmatpush.msra.mxu0 %v3023
      %3778 = vmatpush.msra.mxu0 %v3021
      %3779 = vmatpush.msra.mxu0 %v3019
      %3780 = vmatpush.msra.mxu0 %v3017
      %3781 = vmatpush.msra.mxu0 %v3015
      %3782 = vmatpush.msra.mxu0 %v3013
      %3783 = vmatpush.msra.mxu0 %v3011
      %3784 = vmatpush.msra.mxu0 %v3009
      %3785 = vmatpush.msra.mxu0 %v3007
      %3786 = vmatpush.msra.mxu0 %v3005
      %3787 = vmatpush.msra.mxu0 %v3003
      %3788 = vmatpush.msra.mxu0 %v3001
      %3789 = vmatpush.msra.mxu0 %v2999
      %3790 = vmatpush.msra.mxu0 %v2997
      %3791 = vmatpush.msra.mxu0 %v2995
      %3792 = vmatmul.f32.gmra.mxu0 %v3734
      %v3793 = vpop.f32.mrf.mxu0
      %v3794 = vadd.f32 %v3087, %v3793
      %3795 = vdwg.mxu0
      %3796 = vmatpush.msra.mxu0 %v3057
      %3797 = vmatpush.msra.mxu0 %v3055
      %3798 = vmatpush.msra.mxu0 %v3053
      %3799 = vmatpush.msra.mxu0 %v3051
      %3800 = vmatpush.msra.mxu0 %v3049
      %3801 = vmatpush.msra.mxu0 %v3047
      %3802 = vmatpush.msra.mxu0 %v3045
      %3803 = vmatpush.msra.mxu0 %v3043
      %3804 = vmatpush.msra.mxu0 %v3041
      %3805 = vmatpush.msra.mxu0 %v3039
      %3806 = vmatpush.msra.mxu0 %v3037
      %3807 = vmatpush.msra.mxu0 %v3035
      %3808 = vmatpush.msra.mxu0 %v3033
      %3809 = vmatpush.msra.mxu0 %v3031
      %3810 = vmatpush.msra.mxu0 %v3029
      %3811 = vmatpush.msra.mxu0 %v3027
      %3812 = vmatmul.f32.gmra.mxu0 %v3735
      %v3813 = vpop.f32.mrf.mxu0
      %v3814 = vadd.f32 %v3794, %v3813
      %3815 = vdwg.mxu0
      %v3816 = vrcp.pop %v3774
      %v3817 = vrcp.pop %v3814
      %v3818 = vmul.f32 %v3734, %v3816
      %v3819 = vmul.f32 %v3735, %v3817
      %v3820 = vperm.slane %v3818, 0
      %v3821 = vperm.slane %v3819, 0
      %v3822 = vmul.f32 %v3678, %v3820
      %v3823 = vmul.f32 %v3704, %v3821
      %3824 = vmatpush.msra.mxu0 %v3024
      %3825 = vmatpush.msra.mxu0 %v3022
      %3826 = vmatpush.msra.mxu0 %v3020
      %3827 = vmatpush.msra.mxu0 %v3018
      %3828 = vmatpush.msra.mxu0 %v3016
      %3829 = vmatpush.msra.mxu0 %v3014
      %3830 = vmatpush.msra.mxu0 %v3012
      %3831 = vmatpush.msra.mxu0 %v3010
      %3832 = vmatpush.msra.mxu0 %v3008
      %3833 = vmatpush.msra.mxu0 %v3006
      %3834 = vmatpush.msra.mxu0 %v3004
      %3835 = vmatpush.msra.mxu0 %v3002
      %3836 = vmatpush.msra.mxu0 %v3000
      %3837 = vmatpush.msra.mxu0 %v2998
      %3838 = vmatpush.msra.mxu0 %v2996
      %3839 = vmatpush.msra.mxu0 %v2994
      %3840 = vmatmul.f32.gmra.mxu0 %v3822
      %v3841 = vpop.f32.mrf.mxu0
      %v3842 = vadd.f32 0.0, %v3841
      %3843 = vdwg.mxu0
      %3844 = vmatpush.msra.mxu0 %v3056
      %3845 = vmatpush.msra.mxu0 %v3054
      %3846 = vmatpush.msra.mxu0 %v3052
      %3847 = vmatpush.msra.mxu0 %v3050
      %3848 = vmatpush.msra.mxu0 %v3048
      %3849 = vmatpush.msra.mxu0 %v3046
      %3850 = vmatpush.msra.mxu0 %v3044
      %3851 = vmatpush.msra.mxu0 %v3042
      %3852 = vmatpush.msra.mxu0 %v3040
      %3853 = vmatpush.msra.mxu0 %v3038
      %3854 = vmatpush.msra.mxu0 %v3036
      %3855 = vmatpush.msra.mxu0 %v3034
      %3856 = vmatpush.msra.mxu0 %v3032
      %3857 = vmatpush.msra.mxu0 %v3030
      %3858 = vmatpush.msra.mxu0 %v3028
      %3859 = vmatpush.msra.mxu0 %v3026
      %3860 = vmatmul.f32.gmra.mxu0 %v3823
      %v3861 = vpop.f32.mrf.mxu0
      %v3862 = vadd.f32 %v3842, %v3861
      %3863 = vdwg.mxu0
      %3864 = vmatpush.msra.mxu0 %v3025
      %3865 = vmatpush.msra.mxu0 %v3023
      %3866 = vmatpush.msra.mxu0 %v3021
      %3867 = vmatpush.msra.mxu0 %v3019
      %3868 = vmatpush.msra.mxu0 %v3017
      %3869 = vmatpush.msra.mxu0 %v3015
      %3870 = vmatpush.msra.mxu0 %v3013
      %3871 = vmatpush.msra.mxu0 %v3011
      %3872 = vmatpush.msra.mxu0 %v3009
      %3873 = vmatpush.msra.mxu0 %v3007
      %3874 = vmatpush.msra.mxu0 %v3005
      %3875 = vmatpush.msra.mxu0 %v3003
      %3876 = vmatpush.msra.mxu0 %v3001
      %3877 = vmatpush.msra.mxu0 %v2999
      %3878 = vmatpush.msra.mxu0 %v2997
      %3879 = vmatpush.msra.mxu0 %v2995
      %3880 = vmatmul.f32.gmra.mxu0 %v3822
      %v3881 = vpop.f32.mrf.mxu0
      %v3882 = vadd.f32 0.0, %v3881
      %3883 = vdwg.mxu0
      %3884 = vmatpush.msra.mxu0 %v3057
      %3885 = vmatpush.msra.mxu0 %v3055
      %3886 = vmatpush.msra.mxu0 %v3053
      %3887 = vmatpush.msra.mxu0 %v3051
      %3888 = vmatpush.msra.mxu0 %v3049
      %3889 = vmatpush.msra.mxu0 %v3047
      %3890 = vmatpush.msra.mxu0 %v3045
      %3891 = vmatpush.msra.mxu0 %v3043
      %3892 = vmatpush.msra.mxu0 %v3041
      %3893 = vmatpush.msra.mxu0 %v3039
      %3894 = vmatpush.msra.mxu0 %v3037
      %3895 = vmatpush.msra.mxu0 %v3035
      %3896 = vmatpush.msra.mxu0 %v3033
      %3897 = vmatpush.msra.mxu0 %v3031
      %3898 = vmatpush.msra.mxu0 %v3029
      %3899 = vmatpush.msra.mxu0 %v3027
      %3900 = vmatmul.f32.gmra.mxu0 %v3823
      %v3901 = vpop.f32.mrf.mxu0
      %v3902 = vadd.f32 %v3882, %v3901
      %3903 = vdwg.mxu0
      %v3904 = vmax.f32 %v3681, 0.0
      %v3905 = vmax.f32 %v3707, 0.0
      %v3906 = vmul.f32 %v3904, %v3862
      %v3907 = vmul.f32 %v3905, %v3902
      %v3908 = vld [vmem:[%s5 + $0x160] sm:$0xff]
      %v3910 = vsel %vm289, %v3908, 0
      %3912 = vmatpush.msra.mxu0 0.0
      %3913 = vmatpush.msra.mxu0 0.0
      %3914 = vmatpush.msra.mxu0 0.0
      %3915 = vmatpush.msra.mxu0 0.0
      %3916 = vmatpush.msra.mxu0 0.0
      %3917 = vmatpush.msra.mxu0 0.0
      %3918 = vmatpush.msra.mxu0 0.0
      %3919 = vmatpush.msra.mxu0 0.0
      %3920 = vmatpush.msra.mxu0 0.0
      %3921 = vmatpush.msra.mxu0 0.0
      %3922 = vmatpush.msra.mxu0 0.0
      %3923 = vmatpush.msra.mxu0 0.0
      %3924 = vmatpush.msra.mxu0 0.0
      %3925 = vmatpush.msra.mxu0 0.0
      %3926 = vmatpush.msra.mxu0 0.0
      %3927 = vmatpush.msra.mxu0 %v3906
      %3928 = vmatmul.f32.gmra.mxu0 %v3910
      %v3929 = vpop.f32.mrf.mxu0
      %v3930 = vadd.f32 0.0, %v3929
      %3931 = vdwg.mxu0
      %3932 = vmatpush.msra.mxu0 0.0
      %3933 = vmatpush.msra.mxu0 0.0
      %3934 = vmatpush.msra.mxu0 0.0
      %3935 = vmatpush.msra.mxu0 0.0
      %3936 = vmatpush.msra.mxu0 0.0
      %3937 = vmatpush.msra.mxu0 0.0
      %3938 = vmatpush.msra.mxu0 0.0
      %3939 = vmatpush.msra.mxu0 0.0
      %3940 = vmatpush.msra.mxu0 0.0
      %3941 = vmatpush.msra.mxu0 0.0
      %3942 = vmatpush.msra.mxu0 0.0
      %3943 = vmatpush.msra.mxu0 0.0
      %3944 = vmatpush.msra.mxu0 0.0
      %3945 = vmatpush.msra.mxu0 0.0
      %3946 = vmatpush.msra.mxu0 0.0
      %3947 = vmatpush.msra.mxu0 %v3907
      %3948 = vmatmul.f32.gmra.mxu0 %v3910
      %v3949 = vpop.f32.mrf.mxu0
      %v3950 = vadd.f32 0.0, %v3949
      %3951 = vdwg.mxu0
      %v3952 = vadd.f32 %v3571, %v3930
      %v3953 = vadd.f32 %v3572, %v3950
      %v3954 = vld [vmem:[%s6 + $0xd8] sm:$0xff]
      %3956 = vset.pattern.permute.xlu0 0
      %3957 = vperm.xlu0 %3956, %v3954
      %v3958 = vpop.permute.xlu0 %3957
      %v3960 = vadd.f32 %v3952, %v3958
      %v3961 = vadd.f32 %v3953, %v3958
      %v3962 = vmul.f32 %v3960, %v2851
      %v3963 = vmul.f32 %v3961, %v2852
      %v3964 = vadd.f32 %v3962, %v3963
      %3965 = vadd.xlane.f32.xlu0 %v3964
      %v3966 = vpop.xlane.xlu0 %3965
      %v3967 = vrot.slane %v3966, 4
      %v3968 = vadd.f32 %v3966, %v3967
      %v3969 = vrot.slane %v3968, 2
      %v3970 = vadd.f32 %v3968, %v3969
      %v3971 = vrot.slane %v3970, 1
      %v3972 = vadd.f32 %v3970, %v3971
      %v3973 = vmul.f32 %v3972, 0.0006377551
      %v3974 = vsub.f32 %v3960, %v3973
      %v3975 = vsub.f32 %v3961, %v3973
      %v3976 = vmul.f32 %v3974, %v2851
      %v3977 = vmul.f32 %v3975, %v2852
      %v3978 = vmul.f32 %v3976, %v3976
      %v3979 = vmul.f32 %v3977, %v3977
      %v3980 = vadd.f32 %v3978, %v3979
      %3981 = vadd.xlane.f32.xlu0 %v3980
      %v3982 = vpop.xlane.xlu0 %3981
      %v3983 = vrot.slane %v3982, 4
      %v3984 = vadd.f32 %v3982, %v3983
      %v3985 = vrot.slane %v3984, 2
      %v3986 = vadd.f32 %v3984, %v3985
      %v3987 = vrot.slane %v3986, 1
      %v3988 = vadd.f32 %v3986, %v3987
      %v3989 = vmul.f32 %v3988, 0.0006377551
      %v3990 = vadd.f32 %v3989, 1e-05
      %v3991 = vrsqrt.pop %v3990
      %v3992 = vmul.f32 %v3991, %v3990
      %v3993 = vmul.f32 %v3992, %v3991
      %v3994 = vmul.f32 0.5, %v3993
      %v3995 = vsub.f32 1.5, %v3994
      %v3996 = vmul.f32 %v3991, %v3995
      %vm3997 = vweird.f32 %v3990
      %vm3998 = vweird.f32 %v3991
      %vm3999 = vmor %vm3997, %vm3998
      %v4000 = vsel %vm3999, %v3991, %v3996
      %v4001 = vmul.f32 %v3974, %v4000
      %v4002 = vmul.f32 %v3975, %v4000
      %v4003 = vld [vmem:[%s6 + $0xe0] sm:$0xff]
      %4005 = vset.pattern.permute.xlu0 0
      %4006 = vperm.xlu0 %4005, %v4003
      %v4007 = vpop.permute.xlu0 %4006
      %v4009 = vmul.f32 %v4001, %v4007
      %v4010 = vmul.f32 %v4002, %v4007
      %v4011 = vld [vmem:[%s6 + $0xe8] sm:$0xff]
      %4013 = vset.pattern.permute.xlu0 0
      %4014 = vperm.xlu0 %4013, %v4011
      %v4015 = vpop.permute.xlu0 %4014
      %v4017 = vadd.f32 %v4009, %v4015
      %v4018 = vadd.f32 %v4010, %v4015
      %v4019 = vld [vmem:[%s5 + $0x170] sm:$0xff]
      %v4020 = vld [vmem:[%s5 + $0x180] sm:$0xff]
      %v4021 = vld [vmem:[%s6 + $0xf0] sm:$0xff]
      %v4022 = vld [vmem:[%s6 + $0xf8] sm:$0xff]
      %4024 = vset.pattern.permute.xlu0 0
      %4025 = vperm.xlu0 %4024, %v4021
      %v4026 = vpop.permute.xlu0 %4025
      %4029 = vset.pattern.permute.xlu0 0
      %4030 = vperm.xlu0 %4029, %v4022
      %v4031 = vpop.permute.xlu0 %4030
      %v4034 = vsel %vm289, %v4019, 0
      %v4037 = vsel %vm289, %v4020, 0
      %4039 = vmatpush.msra.mxu0 0.0
      %4040 = vmatpush.msra.mxu0 0.0
      %4041 = vmatpush.msra.mxu0 0.0
      %4042 = vmatpush.msra.mxu0 0.0
      %4043 = vmatpush.msra.mxu0 0.0
      %4044 = vmatpush.msra.mxu0 0.0
      %4045 = vmatpush.msra.mxu0 0.0
      %4046 = vmatpush.msra.mxu0 0.0
      %4047 = vmatpush.msra.mxu0 0.0
      %4048 = vmatpush.msra.mxu0 0.0
      %4049 = vmatpush.msra.mxu0 0.0
      %4050 = vmatpush.msra.mxu0 0.0
      %4051 = vmatpush.msra.mxu0 0.0
      %4052 = vmatpush.msra.mxu0 0.0
      %4053 = vmatpush.msra.mxu0 0.0
      %4054 = vmatpush.msra.mxu0 %v4017
      %4055 = vmatmul.f32.gmra.mxu0 %v4034
      %v4056 = vpop.f32.mrf.mxu0
      %v4057 = vadd.f32 %v4026, %v4056
      %4058 = vmatmul.f32.gmra.mxu0 %v4037
      %v4059 = vpop.f32.mrf.mxu0
      %v4060 = vadd.f32 %v4031, %v4059
      %4061 = vdwg.mxu0
      %4062 = vmatpush.msra.mxu0 0.0
      %4063 = vmatpush.msra.mxu0 0.0
      %4064 = vmatpush.msra.mxu0 0.0
      %4065 = vmatpush.msra.mxu0 0.0
      %4066 = vmatpush.msra.mxu0 0.0
      %4067 = vmatpush.msra.mxu0 0.0
      %4068 = vmatpush.msra.mxu0 0.0
      %4069 = vmatpush.msra.mxu0 0.0
      %4070 = vmatpush.msra.mxu0 0.0
      %4071 = vmatpush.msra.mxu0 0.0
      %4072 = vmatpush.msra.mxu0 0.0
      %4073 = vmatpush.msra.mxu0 0.0
      %4074 = vmatpush.msra.mxu0 0.0
      %4075 = vmatpush.msra.mxu0 0.0
      %4076 = vmatpush.msra.mxu0 0.0
      %4077 = vmatpush.msra.mxu0 %v4018
      %4078 = vmatmul.f32.gmra.mxu0 %v4034
      %v4079 = vpop.f32.mrf.mxu0
      %v4080 = vadd.f32 %v4026, %v4079
      %4081 = vmatmul.f32.gmra.mxu0 %v4037
      %v4082 = vpop.f32.mrf.mxu0
      %v4083 = vadd.f32 %v4031, %v4082
      %4084 = vdwg.mxu0
      %v4085 = vxor.u32 %v4057, 2147483648
      %v4086 = vxor.u32 %v4080, 2147483648
      %v4087 = vxor.u32 %v4060, 2147483648
      %v4088 = vxor.u32 %v4083, 2147483648
      %v4089 = vmul.f32 %v4085, 1.442695
      %v4090 = vpow.pop %v4089
      %v4091 = vmul.f32 %v4086, 1.442695
      %v4092 = vpow.pop %v4091
      %v4093 = vmul.f32 %v4087, 1.442695
      %v4094 = vpow.pop %v4093
      %v4095 = vmul.f32 %v4088, 1.442695
      %v4096 = vpow.pop %v4095
      %v4097 = vadd.f32 %v4090, 1.0
      %v4098 = vadd.f32 %v4092, 1.0
      %v4099 = vadd.f32 %v4094, 1.0
      %v4100 = vadd.f32 %v4096, 1.0
      %v4101 = vrcp.pop %v4097
      %v4102 = vmul.f32 %v4097, %v4101
      %v4103 = vsub.f32 1.0, %v4102
      %v4104 = vmul.f32 %v4101, %v4103
      %v4105 = vadd.f32 %v4101, %v4104
      %vm4106 = vweird.f32 %v4097
      %vm4107 = vweird.f32 %v4101
      %vm4108 = vmor %vm4106, %vm4107
      %v4109 = vsel %vm4108, %v4101, %v4105
      %v4110 = vand.u32 2147483647, %v4097
      %vm4111 = vcmp.eq.f32.partialorder %v4110, 8.507059e+37
      %v4112 = vand.u32 %v4097, 2147483648
      %v4113 = vor.u32 1.1754944e-38, %v4112
      %v4114 = vsel %vm4111, %v4113, %v4109
      %v4115 = vmul.f32 1.0, %v4114
      %v4116 = vrcp.pop %v4098
      %v4117 = vmul.f32 %v4098, %v4116
      %v4118 = vsub.f32 1.0, %v4117
      %v4119 = vmul.f32 %v4116, %v4118
      %v4120 = vadd.f32 %v4116, %v4119
      %vm4121 = vweird.f32 %v4098
      %vm4122 = vweird.f32 %v4116
      %vm4123 = vmor %vm4121, %vm4122
      %v4124 = vsel %vm4123, %v4116, %v4120
      %v4125 = vand.u32 2147483647, %v4098
      %vm4126 = vcmp.eq.f32.partialorder %v4125, 8.507059e+37
      %v4127 = vand.u32 %v4098, 2147483648
      %v4128 = vor.u32 1.1754944e-38, %v4127
      %v4129 = vsel %vm4126, %v4128, %v4124
      %v4130 = vmul.f32 1.0, %v4129
      %v4131 = vrcp.pop %v4099
      %v4132 = vmul.f32 %v4099, %v4131
      %v4133 = vsub.f32 1.0, %v4132
      %v4134 = vmul.f32 %v4131, %v4133
      %v4135 = vadd.f32 %v4131, %v4134
      %vm4136 = vweird.f32 %v4099
      %vm4137 = vweird.f32 %v4131
      %vm4138 = vmor %vm4136, %vm4137
      %v4139 = vsel %vm4138, %v4131, %v4135
      %v4140 = vand.u32 2147483647, %v4099
      %vm4141 = vcmp.eq.f32.partialorder %v4140, 8.507059e+37
      %v4142 = vand.u32 %v4099, 2147483648
      %v4143 = vor.u32 1.1754944e-38, %v4142
      %v4144 = vsel %vm4141, %v4143, %v4139
      %v4145 = vmul.f32 1.0, %v4144
      %v4146 = vrcp.pop %v4100
      %v4147 = vmul.f32 %v4100, %v4146
      %v4148 = vsub.f32 1.0, %v4147
      %v4149 = vmul.f32 %v4146, %v4148
      %v4150 = vadd.f32 %v4146, %v4149
      %vm4151 = vweird.f32 %v4100
      %vm4152 = vweird.f32 %v4146
      %vm4153 = vmor %vm4151, %vm4152
      %v4154 = vsel %vm4153, %v4146, %v4150
      %v4155 = vand.u32 2147483647, %v4100
      %vm4156 = vcmp.eq.f32.partialorder %v4155, 8.507059e+37
      %v4157 = vand.u32 %v4100, 2147483648
      %v4158 = vor.u32 1.1754944e-38, %v4157
      %v4159 = vsel %vm4156, %v4158, %v4154
      %v4160 = vmul.f32 1.0, %v4159
      %v4161 = vmul.f32 %v4057, %v4115
      %v4162 = vmul.f32 %v4080, %v4130
      %v4163 = vmul.f32 %v4060, %v4145
      %v4164 = vmul.f32 %v4083, %v4160
      %v4165 = vld [vmem:[%s5 + $0x190] sm:$0xff]
      %v4167 = vsel %vm2688, %v4165, 0
      %4169 = vmatpush.msra.mxu0 0.0
      %4170 = vmatpush.msra.mxu0 0.0
      %4171 = vmatpush.msra.mxu0 0.0
      %4172 = vmatpush.msra.mxu0 0.0
      %4173 = vmatpush.msra.mxu0 0.0
      %4174 = vmatpush.msra.mxu0 0.0
      %4175 = vmatpush.msra.mxu0 0.0
      %4176 = vmatpush.msra.mxu0 0.0
      %4177 = vmatpush.msra.mxu0 0.0
      %4178 = vmatpush.msra.mxu0 0.0
      %4179 = vmatpush.msra.mxu0 0.0
      %4180 = vmatpush.msra.mxu0 0.0
      %4181 = vmatpush.msra.mxu0 0.0
      %4182 = vmatpush.msra.mxu0 0.0
      %4183 = vmatpush.msra.mxu0 %v4163
      %4184 = vmatpush.msra.mxu0 %v4161
      %4185 = vmatmul.f32.gmra.mxu0 %v4167
      %v4186 = vpop.f32.mrf.mxu0
      %v4187 = vadd.f32 0.0, %v4186
      %4188 = vdwg.mxu0
      %4189 = vmatpush.msra.mxu0 0.0
      %4190 = vmatpush.msra.mxu0 0.0
      %4191 = vmatpush.msra.mxu0 0.0
      %4192 = vmatpush.msra.mxu0 0.0
      %4193 = vmatpush.msra.mxu0 0.0
      %4194 = vmatpush.msra.mxu0 0.0
      %4195 = vmatpush.msra.mxu0 0.0
      %4196 = vmatpush.msra.mxu0 0.0
      %4197 = vmatpush.msra.mxu0 0.0
      %4198 = vmatpush.msra.mxu0 0.0
      %4199 = vmatpush.msra.mxu0 0.0
      %4200 = vmatpush.msra.mxu0 0.0
      %4201 = vmatpush.msra.mxu0 0.0
      %4202 = vmatpush.msra.mxu0 0.0
      %4203 = vmatpush.msra.mxu0 %v4164
      %4204 = vmatpush.msra.mxu0 %v4162
      %4205 = vmatmul.f32.gmra.mxu0 %v4167
      %v4206 = vpop.f32.mrf.mxu0
      %v4207 = vadd.f32 0.0, %v4206
      %4208 = vdwg.mxu0
      %v4209 = vadd.f32 %v3960, %v4187
      %v4210 = vadd.f32 %v3961, %v4207
      %v4211 = vld [vmem:[%s6 + $0x100] sm:$0xff]
      %4213 = vset.pattern.permute.xlu0 0
      %4214 = vperm.xlu0 %4213, %v4211
      %v4215 = vpop.permute.xlu0 %4214
      %v4217 = vadd.f32 %v4209, %v4215
      %v4218 = vadd.f32 %v4210, %v4215
      %v4219 = vmul.f32 %v4217, %v2851
      %v4220 = vmul.f32 %v4218, %v2852
      %v4221 = vadd.f32 %v4219, %v4220
      %4222 = vadd.xlane.f32.xlu0 %v4221
      %v4223 = vpop.xlane.xlu0 %4222
      %v4224 = vrot.slane %v4223, 4
      %v4225 = vadd.f32 %v4223, %v4224
      %v4226 = vrot.slane %v4225, 2
      %v4227 = vadd.f32 %v4225, %v4226
      %v4228 = vrot.slane %v4227, 1
      %v4229 = vadd.f32 %v4227, %v4228
      %v4230 = vmul.f32 %v4229, 0.0006377551
      %v4231 = vsub.f32 %v4217, %v4230
      %v4232 = vsub.f32 %v4218, %v4230
      %v4233 = vmul.f32 %v4231, %v2851
      %v4234 = vmul.f32 %v4232, %v2852
      %v4235 = vmul.f32 %v4233, %v4233
      %v4236 = vmul.f32 %v4234, %v4234
      %v4237 = vadd.f32 %v4235, %v4236
      %4238 = vadd.xlane.f32.xlu0 %v4237
      %v4239 = vpop.xlane.xlu0 %4238
      %v4240 = vrot.slane %v4239, 4
      %v4241 = vadd.f32 %v4239, %v4240
      %v4242 = vrot.slane %v4241, 2
      %v4243 = vadd.f32 %v4241, %v4242
      %v4244 = vrot.slane %v4243, 1
      %v4245 = vadd.f32 %v4243, %v4244
      %v4246 = vmul.f32 %v4245, 0.0006377551
      %v4247 = vadd.f32 %v4246, 1e-05
      %v4248 = vrsqrt.pop %v4247
      %v4249 = vmul.f32 %v4248, %v4247
      %v4250 = vmul.f32 %v4249, %v4248
      %v4251 = vmul.f32 0.5, %v4250
      %v4252 = vsub.f32 1.5, %v4251
      %v4253 = vmul.f32 %v4248, %v4252
      %vm4254 = vweird.f32 %v4247
      %vm4255 = vweird.f32 %v4248
      %vm4256 = vmor %vm4254, %vm4255
      %v4257 = vsel %vm4256, %v4248, %v4253
      %v4258 = vmul.f32 %v4231, %v4257
      %v4259 = vmul.f32 %v4232, %v4257
      %v4260 = vld [vmem:[%s6 + $0x108] sm:$0xff]
      %4262 = vset.pattern.permute.xlu0 0
      %4263 = vperm.xlu0 %4262, %v4260
      %v4264 = vpop.permute.xlu0 %4263
      %v4266 = vmul.f32 %v4258, %v4264
      %v4267 = vmul.f32 %v4259, %v4264
      %v4268 = vld [vmem:[%s6 + $0x110] sm:$0xff]
      %4270 = vset.pattern.permute.xlu0 0
      %4271 = vperm.xlu0 %4270, %v4268
      %v4272 = vpop.permute.xlu0 %4271
      %v4274 = vadd.f32 %v4266, %v4272
      %v4275 = vadd.f32 %v4267, %v4272
      %v4276 = vld [vmem:[%s5 + $0x1a0] sm:$0xff]
      %v4277 = vld [vmem:[%s6 + $0x118] sm:$0xff]
      %4279 = vset.pattern.permute.xlu0 0
      %4280 = vperm.xlu0 %4279, %v4277
      %v4281 = vpop.permute.xlu0 %4280
      %v4284 = vsel %vm289, %v4276, 0
      %4286 = vmatpush.msra.mxu0 0.0
      %4287 = vmatpush.msra.mxu0 0.0
      %4288 = vmatpush.msra.mxu0 0.0
      %4289 = vmatpush.msra.mxu0 0.0
      %4290 = vmatpush.msra.mxu0 0.0
      %4291 = vmatpush.msra.mxu0 0.0
      %4292 = vmatpush.msra.mxu0 0.0
      %4293 = vmatpush.msra.mxu0 0.0
      %4294 = vmatpush.msra.mxu0 0.0
      %4295 = vmatpush.msra.mxu0 0.0
      %4296 = vmatpush.msra.mxu0 0.0
      %4297 = vmatpush.msra.mxu0 0.0
      %4298 = vmatpush.msra.mxu0 0.0
      %4299 = vmatpush.msra.mxu0 0.0
      %4300 = vmatpush.msra.mxu0 0.0
      %4301 = vmatpush.msra.mxu0 %v4274
      %4302 = vmatmul.f32.gmra.mxu0 %v4284
      %v4303 = vpop.f32.mrf.mxu0
      %v4304 = vadd.f32 %v4281, %v4303
      %4305 = vdwg.mxu0
      %4306 = vmatpush.msra.mxu0 0.0
      %4307 = vmatpush.msra.mxu0 0.0
      %4308 = vmatpush.msra.mxu0 0.0
      %4309 = vmatpush.msra.mxu0 0.0
      %4310 = vmatpush.msra.mxu0 0.0
      %4311 = vmatpush.msra.mxu0 0.0
      %4312 = vmatpush.msra.mxu0 0.0
      %4313 = vmatpush.msra.mxu0 0.0
      %4314 = vmatpush.msra.mxu0 0.0
      %4315 = vmatpush.msra.mxu0 0.0
      %4316 = vmatpush.msra.mxu0 0.0
      %4317 = vmatpush.msra.mxu0 0.0
      %4318 = vmatpush.msra.mxu0 0.0
      %4319 = vmatpush.msra.mxu0 0.0
      %4320 = vmatpush.msra.mxu0 0.0
      %4321 = vmatpush.msra.mxu0 %v4275
      %4322 = vmatmul.f32.gmra.mxu0 %v4284
      %v4323 = vpop.f32.mrf.mxu0
      %v4324 = vadd.f32 %v4281, %v4323
      %4325 = vdwg.mxu0
      %v4326 = vmul.f32 %v2649, %v2851
      %v4327 = vmul.f32 %v2669, %v2852
      %v4328 = vmul.f32 %v4304, %v2851
      %v4329 = vmul.f32 %v4324, %v2852
      %4332 = vrot.lane.b32.xlu0 %v4327, 17
      %v4333 = vpop.permute.xlu0 %4332
      %4334 = vrot.lane.b32.xlu0 %v4329, 17
      %v4335 = vpop.permute.xlu0 %4334
      %4340 = vrot.lane.b32.xlu0 %v4326, 17
      %v4341 = vpop.permute.xlu0 %4340
      %4342 = vrot.lane.b32.xlu0 %v4328, 17
      %v4343 = vpop.permute.xlu0 %4342
      %v4344 = vsel %vm2678, %v4341, %v4333
      %v4345 = vsel %vm2678, %v4343, %v4335
      %v4350 = vsel %vm2678, %v4333, %v4341
      %v4351 = vsel %vm2678, %v4335, %v4343
      %4352 = vrot.lane.b32.xlu0 %v4327, 16
      %v4353 = vpop.permute.xlu0 %4352
      %4354 = vrot.lane.b32.xlu0 %v4329, 16
      %v4355 = vpop.permute.xlu0 %4354
      %4358 = vrot.lane.b32.xlu0 %v4326, 16
      %v4359 = vpop.permute.xlu0 %4358
      %4360 = vrot.lane.b32.xlu0 %v4328, 16
      %v4361 = vpop.permute.xlu0 %4360
      %v4362 = vsel %vm2688, %v4359, %v4353
      %v4363 = vsel %vm2688, %v4361, %v4355
      %v4368 = vsel %vm2688, %v4353, %v4359
      %v4369 = vsel %vm2688, %v4355, %v4361
      %4370 = vrot.lane.b32.xlu0 %v4327, 15
      %v4371 = vpop.permute.xlu0 %4370
      %4372 = vrot.lane.b32.xlu0 %v4329, 15
      %v4373 = vpop.permute.xlu0 %4372
      %4376 = vrot.lane.b32.xlu0 %v4326, 15
      %v4377 = vpop.permute.xlu0 %4376
      %4378 = vrot.lane.b32.xlu0 %v4328, 15
      %v4379 = vpop.permute.xlu0 %4378
      %v4380 = vsel %vm2698, %v4377, %v4371
      %v4381 = vsel %vm2698, %v4379, %v4373
      %v4386 = vsel %vm2698, %v4371, %v4377
      %v4387 = vsel %vm2698, %v4373, %v4379
      %4388 = vrot.lane.b32.xlu0 %v4327, 1
      %v4389 = vpop.permute.xlu0 %4388
      %4390 = vrot.lane.b32.xlu0 %v4329, 1
      %v4391 = vpop.permute.xlu0 %4390
      %4394 = vrot.lane.b32.xlu0 %v4326, 1
      %v4395 = vpop.permute.xlu0 %4394
      %4396 = vrot.lane.b32.xlu0 %v4328, 1
      %v4397 = vpop.permute.xlu0 %4396
      %v4398 = vsel %vm2708, %v4395, %v4389
      %v4399 = vsel %vm2708, %v4397, %v4391
      %v4404 = vsel %vm2708, %v4389, %v4395
      %v4405 = vsel %vm2708, %v4391, %v4397
      %4406 = vrot.lane.b32.xlu0 %v4326, 127
      %v4407 = vpop.permute.xlu0 %4406
      %4408 = vrot.lane.b32.xlu0 %v4327, 127
      %v4409 = vpop.permute.xlu0 %4408
      %4410 = vrot.lane.b32.xlu0 %v4328, 127
      %v4411 = vpop.permute.xlu0 %4410
      %4412 = vrot.lane.b32.xlu0 %v4329, 127
      %v4413 = vpop.permute.xlu0 %4412
      %v4414 = vsel %vm2717, %v4407, %v4409
      %v4415 = vsel %vm2717, %v4411, %v4413
      %v4422 = vsel %vm2717, %v4409, %v4407
      %v4423 = vsel %vm2717, %v4413, %v4411
      %4424 = vrot.lane.b32.xlu0 %v4326, 113
      %v4425 = vpop.permute.xlu0 %4424
      %4426 = vrot.lane.b32.xlu0 %v4327, 113
      %v4427 = vpop.permute.xlu0 %4426
      %4428 = vrot.lane.b32.xlu0 %v4328, 113
      %v4429 = vpop.permute.xlu0 %4428
      %4430 = vrot.lane.b32.xlu0 %v4329, 113
      %v4431 = vpop.permute.xlu0 %4430
      %v4432 = vsel %vm2727, %v4425, %v4427
      %v4433 = vsel %vm2727, %v4429, %v4431
      %v4440 = vsel %vm2727, %v4427, %v4425
      %v4441 = vsel %vm2727, %v4431, %v4429
      %4442 = vrot.lane.b32.xlu0 %v4326, 112
      %v4443 = vpop.permute.xlu0 %4442
      %4444 = vrot.lane.b32.xlu0 %v4327, 112
      %v4445 = vpop.permute.xlu0 %4444
      %4446 = vrot.lane.b32.xlu0 %v4328, 112
      %v4447 = vpop.permute.xlu0 %4446
      %4448 = vrot.lane.b32.xlu0 %v4329, 112
      %v4449 = vpop.permute.xlu0 %4448
      %v4450 = vsel %vm2737, %v4443, %v4445
      %v4451 = vsel %vm2737, %v4447, %v4449
      %v4458 = vsel %vm2737, %v4445, %v4443
      %v4459 = vsel %vm2737, %v4449, %v4447
      %4460 = vrot.lane.b32.xlu0 %v4326, 111
      %v4461 = vpop.permute.xlu0 %4460
      %4462 = vrot.lane.b32.xlu0 %v4327, 111
      %v4463 = vpop.permute.xlu0 %4462
      %4464 = vrot.lane.b32.xlu0 %v4328, 111
      %v4465 = vpop.permute.xlu0 %4464
      %4466 = vrot.lane.b32.xlu0 %v4329, 111
      %v4467 = vpop.permute.xlu0 %4466
      %v4468 = vsel %vm2747, %v4461, %v4463
      %v4469 = vsel %vm2747, %v4465, %v4467
      %v4476 = vsel %vm2747, %v4463, %v4461
      %v4477 = vsel %vm2747, %v4467, %v4465
      %v4478 = vld [vmem:[%s5 + $0x1b0] sm:$0xff]
      %v4479 = vld [vmem:[%s5 + $0x1b8] sm:$0xff]
      %v4480 = vld [vmem:[%s6 + $0x120] sm:$0xff]
      %4482 = vset.pattern.permute.xlu0 0
      %4483 = vperm.xlu0 %4482, %v4480
      %v4484 = vpop.permute.xlu0 %4483
      %v4487 = vsel %vm2688, %v4479, 0
      %4489 = vmatpush.msra.mxu0 %v4451
      %4490 = vmatpush.msra.mxu0 %v4450
      %4491 = vmatpush.msra.mxu0 %v4433
      %4492 = vmatpush.msra.mxu0 %v4432
      %4493 = vmatpush.msra.mxu0 %v4415
      %4494 = vmatpush.msra.mxu0 %v4414
      %4495 = vmatpush.msra.mxu0 %v4328
      %4496 = vmatpush.msra.mxu0 %v4326
      %4497 = vmatpush.msra.mxu0 %v4405
      %4498 = vmatpush.msra.mxu0 %v4404
      %4499 = vmatpush.msra.mxu0 %v4387
      %4500 = vmatpush.msra.mxu0 %v4386
      %4501 = vmatpush.msra.mxu0 %v4369
      %4502 = vmatpush.msra.mxu0 %v4368
      %4503 = vmatpush.msra.mxu0 %v4351
      %4504 = vmatpush.msra.mxu0 %v4350
      %4505 = vmatmul.f32.gmra.mxu0 %v4478
      %v4506 = vpop.f32.mrf.mxu0
      %v4507 = vadd.f32 %v4484, %v4506
      %4508 = vdwg.mxu0
      %4509 = vmatpush.msra.mxu0 0.0
      %4510 = vmatpush.msra.mxu0 0.0
      %4511 = vmatpush.msra.mxu0 0.0
      %4512 = vmatpush.msra.mxu0 0.0
      %4513 = vmatpush.msra.mxu0 0.0
      %4514 = vmatpush.msra.mxu0 0.0
      %4515 = vmatpush.msra.mxu0 0.0
      %4516 = vmatpush.msra.mxu0 0.0
      %4517 = vmatpush.msra.mxu0 0.0
      %4518 = vmatpush.msra.mxu0 0.0
      %4519 = vmatpush.msra.mxu0 0.0
      %4520 = vmatpush.msra.mxu0 0.0
      %4521 = vmatpush.msra.mxu0 0.0
      %4522 = vmatpush.msra.mxu0 0.0
      %4523 = vmatpush.msra.mxu0 %v4469
      %4524 = vmatpush.msra.mxu0 %v4468
      %4525 = vmatmul.f32.gmra.mxu0 %v4487
      %v4526 = vpop.f32.mrf.mxu0
      %v4527 = vadd.f32 %v4507, %v4526
      %4528 = vdwg.mxu0
      %4529 = vmatpush.msra.mxu0 %v4459
      %4530 = vmatpush.msra.mxu0 %v4458
      %4531 = vmatpush.msra.mxu0 %v4441
      %4532 = vmatpush.msra.mxu0 %v4440
      %4533 = vmatpush.msra.mxu0 %v4423
      %4534 = vmatpush.msra.mxu0 %v4422
      %4535 = vmatpush.msra.mxu0 %v4329
      %4536 = vmatpush.msra.mxu0 %v4327
      %4537 = vmatpush.msra.mxu0 %v4399
      %4538 = vmatpush.msra.mxu0 %v4398
      %4539 = vmatpush.msra.mxu0 %v4381
      %4540 = vmatpush.msra.mxu0 %v4380
      %4541 = vmatpush.msra.mxu0 %v4363
      %4542 = vmatpush.msra.mxu0 %v4362
      %4543 = vmatpush.msra.mxu0 %v4345
      %4544 = vmatpush.msra.mxu0 %v4344
      %4545 = vmatmul.f32.gmra.mxu0 %v4478
      %v4546 = vpop.f32.mrf.mxu0
      %v4547 = vadd.f32 %v4484, %v4546
      %4548 = vdwg.mxu0
      %4549 = vmatpush.msra.mxu0 0.0
      %4550 = vmatpush.msra.mxu0 0.0
      %4551 = vmatpush.msra.mxu0 0.0
      %4552 = vmatpush.msra.mxu0 0.0
      %4553 = vmatpush.msra.mxu0 0.0
      %4554 = vmatpush.msra.mxu0 0.0
      %4555 = vmatpush.msra.mxu0 0.0
      %4556 = vmatpush.msra.mxu0 0.0
      %4557 = vmatpush.msra.mxu0 0.0
      %4558 = vmatpush.msra.mxu0 0.0
      %4559 = vmatpush.msra.mxu0 0.0
      %4560 = vmatpush.msra.mxu0 0.0
      %4561 = vmatpush.msra.mxu0 0.0
      %4562 = vmatpush.msra.mxu0 0.0
      %4563 = vmatpush.msra.mxu0 %v4477
      %4564 = vmatpush.msra.mxu0 %v4476
      %4565 = vmatmul.f32.gmra.mxu0 %v4487
      %v4566 = vpop.f32.mrf.mxu0
      %v4567 = vadd.f32 %v4547, %v4566
      %4568 = vdwg.mxu0
      %v4569 = vmax.f32 %v4527, 0.0
      %v4570 = vmax.f32 %v4567, 0.0
      %4571 = vst [vmem:[%s278] sm:$0xff] %v4569
      %4572 = vst [vmem:[%s278 + $0x8] sm:$0xff] %v4570
      %p4573 = scmp.lt.s32.totalorder %s18, 1
      %s4574 = scalar_select %p4573, %s18, 1
      %s4575 = smul.addr %s4574, 2
      %s4576 = smul.addr %s4575, 8
      %s4577 = scalar_lea.vmem %s7, %s4576
      // Predicated region
      $region49: #{mvit2_block_forward.1} parent=47 // pred_check
        %p4578 = pneg %p188
      $region50: #{mvit2_block_forward.1} parent=47 // pred_check_branch
        %4580 = sbr.rel (%p4578) target = $region52
      $region51: #{mvit2_block_forward.1} parent=47 // pred_region
        _
      $region52: #{mvit2_block_forward.1} parent=47 // pred_fallthru
        _
    $region48: #{mvit2_block_forward.1} parent=5 // pred_fallthru
      _
    %p4581 = scmp.le.s32.totalorder 2, %s13
    // Predicated region
    $region53: #{mvit2_block_forward.1} parent=5 // pred_check
      %p4582 = pneg %p4581
    $region54: #{mvit2_block_forward.1} parent=5 // pred_check_branch
      %4584 = sbr.rel (%p4582) target = $region56
    $region55: #{mvit2_block_forward.1} parent=5 // pred_region
      %s4585 = ssub.s32 %s13, 2
      // Predicated region
      $region57: #{mvit2_block_forward.1} parent=55 // pred_check
        %p4586 = pneg %p194
      $region58: #{mvit2_block_forward.1} parent=55 // pred_check_branch
        %4588 = sbr.rel (%p4586) target = $region60
      $region59: #{mvit2_block_forward.1} parent=55 // pred_region
        %p4589 = scmp.lt.s32.totalorder %s19, 1
        %s4590 = scalar_select %p4589, %s19, 1
        %s4591 = smul.addr %s4590, 2
        %s4592 = smul.addr %s4591, 8
        %s4593 = scalar_lea.vmem %s7, %s4592
      $region60: #{mvit2_block_forward.1} parent=55 // pred_fallthru
        _
    $region56: #{mvit2_block_forward.1} parent=5 // pred_fallthru
      _
  $region6: #{mvit2_block_forward.1} parent=0 // loop_footer
    %s17 = sadd.s32 1, %s13
  $region7: #{mvit2_block_forward.1} parent=0 // loop_footer_branch
    %12 = sbr.rel target = $region3
  $region8: #{mvit2_block_forward.1} parent=0 // loop_exit
    _

</llo_original>
